<compile_context>
chip_gen: v6e
topology: v6e:2x2x1
jax: 0.10.0
libtpu: 0.0.40
codegen_flags: <defaults>
</compile_context>

<pallas_src>
import jax
import jax.numpy as jnp
import numpy as np
from jax.experimental import pallas as pl
from jax.experimental.pallas import tpu as pltpu

_SELU_ALPHA = 1.6732632423543772
_SELU_SCALE = 1.0507009873554805
_LN_EPS = 1e-5  # torch.nn.LayerNorm default


def _selu(x):
    # scale * (max(0,x) + min(0, alpha*(exp(x)-1)))
    return _SELU_SCALE * jnp.where(
        x > 0.0, x, _SELU_ALPHA * (jnp.exp(jnp.minimum(x, 0.0)) - 1.0)
    )


def _layer_norm(x, w, b):
    mu = jnp.mean(x, axis=-1, keepdims=True)
    var = jnp.mean((x - mu) ** 2, axis=-1, keepdims=True)
    return (x - mu) * jax.lax.rsqrt(var + _LN_EPS) * w + b


def make_parameter_dqn_kernel(conv_size, num_hidden):
    """Fused: conv1d(k=1)+{mean,max,min} -> SELU -> cat -> MLP(SELU+LN) -> head."""

    def kernel(*refs):
        o_ref = refs[0]
        out_ref = refs[-1]

        conv_w = refs[1][...]       # (1, K)  f32
        conv_b = refs[2][...]       # (1, K)  f32
        w0_mean = refs[3][...]      # (K, H0)
        w0_max = refs[4][...]       # (K, H0)
        w0_min = refs[5][...]       # (K, H0)
        w0b = refs[6][...]          # (input_size, H0), zeros in stock rows
        b0 = refs[7][...]           # (1, H0) f32
        lnw0 = refs[8][...]
        lnb0 = refs[9][...]
        idx = 10

        cdt = w0b.dtype             # matmul compute dtype (f32 or bf16)

        o = o_ref[...]                             # (T, input_size) in stream dtype
        of = o.astype(jnp.float32)

        # Per-row mean/max/min of the stock columns via a lane mask
        # (no sub-128 column slicing inside the kernel).
        col = jax.lax.broadcasted_iota(jnp.int32, of.shape, 1)
        is_stock = col < conv_size
        big = float(np.finfo(np.float32).max)
        s_sum = jnp.sum(jnp.where(is_stock, of, 0.0), axis=-1, keepdims=True)
        s_mean = s_sum * (1.0 / conv_size)                                  # (T, 1)
        s_max = jnp.max(jnp.where(is_stock, of, -big), axis=-1, keepdims=True)
        s_min = jnp.min(jnp.where(is_stock, of, big), axis=-1, keepdims=True)

        # Analytic collapse of Conv1d(1,K,ks=1) + pooling.
        mean_feat = s_mean * conv_w + conv_b                                # (T, K)
        hi = s_max * conv_w
        lo = s_min * conv_w
        max_feat = jnp.maximum(hi, lo) + conv_b
        min_feat = jnp.minimum(hi, lo) + conv_b

        # First hidden layer: the torch `cat((selu(summary), chars))` is fused
        # into four matmuls (mean/max/min pieces + full-row char piece).
        h = (jnp.dot(_selu(mean_feat).astype(cdt), w0_mean,
                     preferred_element_type=jnp.float32)
             + jnp.dot(_selu(max_feat).astype(cdt), w0_max,
                       preferred_element_type=jnp.float32)
             + jnp.dot(_selu(min_feat).astype(cdt), w0_min,
                       preferred_element_type=jnp.float32)
             + jnp.dot(o.astype(cdt), w0b,
                       preferred_element_type=jnp.float32)
             + b0)
        h = _layer_norm(_selu(h), lnw0, lnb0)

        # Remaining hidden layers: Linear -> SELU -> LayerNorm (f32 elementwise).
        for _ in range(num_hidden - 1):
            w = refs[idx][...]
            b = refs[idx + 1][...]
            lnw = refs[idx + 2][...]
            lnb = refs[idx + 3][...]
            idx += 4
            h = jnp.dot(h.astype(cdt), w, preferred_element_type=jnp.float32) + b
            h = _layer_norm(_selu(h), lnw, lnb)

        # Final head: lane-dense (padded to a multiple of 128) Linear.
        wf = refs[idx][...]
        bf = refs[idx + 1][...]
        out_ref[...] = jnp.dot(h.astype(cdt), wf,
                               preferred_element_type=jnp.float32) + bf

    return kernel


def init_params(key, input_size, conv_size, hidden_sizes, n_kernels, output_size):
    """Deterministic synthetic parameters with the torch module's shapes."""
    char_size = input_size - conv_size
    transf_in = char_size + 3 * n_kernels
    sizes = [transf_in] + list(hidden_sizes)

    keys = jax.random.split(key, 4 + 4 * len(hidden_sizes) + 4)
    ki = iter(keys)

    def nrm(shape, scale):
        return (scale * jax.random.normal(next(ki), shape)).astype(jnp.float32)

    params = {
        "conv_w": nrm((1, n_kernels), 0.5),   # Conv1d(1,K,1) weight, flattened
        "conv_b": nrm((1, n_kernels), 0.1),
        "hidden": [],
    }
    for n_in, n_out in zip(sizes[:-1], sizes[1:]):
        s = 1.0 / np.sqrt(n_in)
        w = nrm((n_in, n_out), s)
        b = nrm((1, n_out), s)
        lnw = 1.0 + nrm((1, n_out), 0.1)
        lnb = nrm((1, n_out), 0.1)
        params["hidden"].append((w, b, lnw, lnb))

    last = hidden_sizes[-1]
    s = 1.0 / np.sqrt(last)
    params["head"] = (nrm((last, output_size), s), nrm((1, output_size), s))
    return params


def _prepare_kernel_params(params, *, input_size, conv_size, n_kernels, matmul_dtype):
    """Split/zero-pad parameters into the layout the kernel consumes."""
    K = n_kernels
    mdt = matmul_dtype
    conv_w, conv_b = params["conv_w"], params["conv_b"]
    hidden = params["hidden"]

    w0, b0, lnw0, lnb0 = hidden[0]
    H0 = w0.shape[1]
    w0_mean = w0[:K].astype(mdt)
    w0_max = w0[K:2 * K].astype(mdt)
    w0_min = w0[2 * K:3 * K].astype(mdt)
    w0_char = w0[3 * K:]                                   # (char_size, H0)
    w0b_pad = (jnp.zeros((input_size, H0), jnp.float32)
               .at[conv_size:].set(w0_char)).astype(mdt)   # zeros over stock cols

    arrs = [conv_w, conv_b, w0_mean, w0_max, w0_min, w0b_pad, b0, lnw0, lnb0]
    for (w, b, lnw, lnb) in hidden[1:]:
        arrs += [w.astype(mdt), b, lnw, lnb]

    wf, bf = params["head"]
    out_size = wf.shape[1]
    out_pad = ((out_size + 127) // 128) * 128              # lane-dense head width
    wf_pad = (jnp.zeros((wf.shape[0], out_pad), jnp.float32)
              .at[:, :out_size].set(wf)).astype(mdt)
    bf_pad = jnp.zeros((1, out_pad), jnp.float32).at[:, :out_size].set(bf)
    arrs += [wf_pad, bf_pad]
    return arrs, out_pad


def parameter_dqn_forward(o, params, *, conv_size, n_kernels, output_size,
                          batch_tile=256, matmul_dtype=jnp.float32):
    B, input_size = o.shape
    num_hidden = len(params["hidden"])

    arrs, out_pad = _prepare_kernel_params(
        params, input_size=input_size, conv_size=conv_size,
        n_kernels=n_kernels, matmul_dtype=matmul_dtype)

    # Stream the batch-scaled input in the matmul dtype (bf16 halves HBM traffic
    # on v6e/v7x); everything else stays f32 unless it is a matmul operand.
    o_c = o.astype(matmul_dtype)

    # Big batch tiles (multiple of 8); pad the batch so the grid divides evenly.
    tile = int(min(batch_tile, B))
    tile = max(8, (tile // 8) * 8)
    B_pad = ((B + tile - 1) // tile) * tile
    if B_pad != B:
        o_c = jnp.pad(o_c, ((0, B_pad - B), (0, 0)))

    kernel = make_parameter_dqn_kernel(conv_size, num_hidden)

    in_specs = [pl.BlockSpec((tile, input_size), lambda i: (i, 0))]
    # Broadcast params: constant index_map. (pipeline_mode=pl.Buffered(1) would
    # shave their double-buffering, but VMEM footprint here is tiny anyway.)
    in_specs += [pl.BlockSpec(a.shape, lambda i: (0, 0)) for a in arrs]
    out_specs = pl.BlockSpec((tile, out_pad), lambda i: (i, 0))

    res = pl.pallas_call(
        kernel,
        out_shape=jax.ShapeDtypeStruct((B_pad, out_pad), jnp.float32),
        grid_spec=pltpu.PrefetchScalarGridSpec(
            num_scalar_prefetch=0,
            grid=(B_pad // tile,),
            in_specs=in_specs,
            out_specs=out_specs,
        ),
        compiler_params=pltpu.CompilerParams(
            dimension_semantics=("parallel",)),
    )(o_c, *arrs)

    res = res[:B, :output_size]
    # The torch module builds l1..l4 from the SAME layer objects (shared
    # parameters), so all four lambdas are identical.
    return res, res, res, res


def parameter_dqn_reference(o, params, *, conv_size, matmul_dtype=jnp.float32):
    """Pure-JAX mirror of the torch forward (single shared head)."""
    conv_w, conv_b = params["conv_w"], params["conv_b"]
    K = conv_w.shape[1]

    o_s = o.astype(matmul_dtype).astype(jnp.float32)       # match HBM streaming dtype
    stock = o_s[:, :conv_size]
    chars = o_s[:, conv_size:]

    conv_res = stock[:, None, :] * conv_w.reshape(1, K, 1) + conv_b.reshape(1, K, 1)
    stock_summary = jnp.concatenate(
        [conv_res.mean(axis=2), conv_res.max(axis=2), conv_res.min(axis=2)], axis=1)
    h = jnp.concatenate([_selu(stock_summary), chars], axis=-1)

    for (w, b, lnw, lnb) in params["hidden"]:
        hm = jnp.dot(h.astype(matmul_dtype), w.astype(matmul_dtype),
                     preferred_element_type=jnp.float32) + b
        h = _layer_norm(_selu(hm), lnw, lnb)

    wf, bf = params["head"]
    return jnp.dot(h.astype(matmul_dtype), wf.astype(matmul_dtype),
                   preferred_element_type=jnp.float32) + bf


if __name__ == "__main__":
    # Small shapes consistent with the module (output_size keeps the 251 default).
    B = 512                 # 2 grid steps at tile=256 (keeps both v7x TCs busy)
    input_size = 32
    conv_size = 16
    n_kernels = 8
    hidden_sizes = [32, 32]
    output_size = 251       # padded to 256 lanes inside the kernel

    key = jax.random.PRNGKey(0)
    k_x, k_p = jax.random.split(key)
    o = jax.random.normal(k_x, (B, input_size), dtype=jnp.float32)
    params = init_params(k_p, input_size, conv_size, hidden_sizes,
                         n_kernels, output_size)

    # --- f32 path: exact semantics of the torch module ---
    outs = parameter_dqn_forward(o, params, conv_size=conv_size,
                                 n_kernels=n_kernels, output_size=output_size,
                                 batch_tile=256, matmul_dtype=jnp.float32)
    outs = jax.block_until_ready(outs)
    ref = parameter_dqn_reference(o, params, conv_size=conv_size,
                                  matmul_dtype=jnp.float32)
    for lam in outs:
        assert lam.shape == (B, output_size)
        np.testing.assert_allclose(np.asarray(lam), np.asarray(ref),
                                   rtol=5e-4, atol=5e-4)

    # --- bf16-streaming path (v6e/v7x): bf16 matmul operands + bf16 `o`,
    #     f32 accumulation, f32 elementwise (v5e-friendly) ---
    outs_bf16 = parameter_dqn_forward(o, params, conv_size=conv_size,
                                      n_kernels=n_kernels, output_size=output_size,
                                      batch_tile=256, matmul_dtype=jnp.bfloat16)
    outs_bf16 = jax.block_until_ready(outs_bf16)
    ref_bf16 = parameter_dqn_reference(o, params, conv_size=conv_size,
                                       matmul_dtype=jnp.bfloat16)
    np.testing.assert_allclose(np.asarray(outs_bf16[0]), np.asarray(ref_bf16),
                               rtol=2e-2, atol=2e-2)

    print("KERNEL_OK")
</pallas_src>

<mosaic_0001>
module attributes {stable_mosaic.version = 11 : i64} {
  func.func @kernel(%arg0: i32, %arg1: memref<256x32xf32, #tpu.memory_space<vmem>>, %arg2: memref<1x8xf32, #tpu.memory_space<vmem>>, %arg3: memref<1x8xf32, #tpu.memory_space<vmem>>, %arg4: memref<8x32xf32, #tpu.memory_space<vmem>>, %arg5: memref<8x32xf32, #tpu.memory_space<vmem>>, %arg6: memref<8x32xf32, #tpu.memory_space<vmem>>, %arg7: memref<32x32xf32, #tpu.memory_space<vmem>>, %arg8: memref<1x32xf32, #tpu.memory_space<vmem>>, %arg9: memref<1x32xf32, #tpu.memory_space<vmem>>, %arg10: memref<1x32xf32, #tpu.memory_space<vmem>>, %arg11: memref<32x32xf32, #tpu.memory_space<vmem>>, %arg12: memref<1x32xf32, #tpu.memory_space<vmem>>, %arg13: memref<1x32xf32, #tpu.memory_space<vmem>>, %arg14: memref<1x32xf32, #tpu.memory_space<vmem>>, %arg15: memref<32x256xf32, #tpu.memory_space<vmem>>, %arg16: memref<1x256xf32, #tpu.memory_space<vmem>>, %arg17: memref<256x256xf32, #tpu.memory_space<vmem>>) attributes {dimension_semantics = [#tpu.dimension_semantics<parallel>], iteration_bounds = array<i64: 2>, scalar_prefetch = 0 : i64, scratch_operands = 0 : i64, tpu.core_type = #tpu.core_type<tc>, window_params = [{transform_indices = @transform_0, window_bounds = array<i64: 256, 32>}, {pipeline_mode = #tpu.pipeline_mode<synchronous>, transform_indices = @transform_1, window_bounds = array<i64: 1, 8>}, {pipeline_mode = #tpu.pipeline_mode<synchronous>, transform_indices = @transform_2, window_bounds = array<i64: 1, 8>}, {pipeline_mode = #tpu.pipeline_mode<synchronous>, transform_indices = @transform_3, window_bounds = array<i64: 8, 32>}, {pipeline_mode = #tpu.pipeline_mode<synchronous>, transform_indices = @transform_4, window_bounds = array<i64: 8, 32>}, {pipeline_mode = #tpu.pipeline_mode<synchronous>, transform_indices = @transform_5, window_bounds = array<i64: 8, 32>}, {pipeline_mode = #tpu.pipeline_mode<synchronous>, transform_indices = @transform_6, window_bounds = array<i64: 32, 32>}, {pipeline_mode = #tpu.pipeline_mode<synchronous>, transform_indices = @transform_7, window_bounds = array<i64: 1, 32>}, {pipeline_mode = #tpu.pipeline_mode<synchronous>, transform_indices = @transform_8, window_bounds = array<i64: 1, 32>}, {pipeline_mode = #tpu.pipeline_mode<synchronous>, transform_indices = @transform_9, window_bounds = array<i64: 1, 32>}, {pipeline_mode = #tpu.pipeline_mode<synchronous>, transform_indices = @transform_10, window_bounds = array<i64: 32, 32>}, {pipeline_mode = #tpu.pipeline_mode<synchronous>, transform_indices = @transform_11, window_bounds = array<i64: 1, 32>}, {pipeline_mode = #tpu.pipeline_mode<synchronous>, transform_indices = @transform_12, window_bounds = array<i64: 1, 32>}, {pipeline_mode = #tpu.pipeline_mode<synchronous>, transform_indices = @transform_13, window_bounds = array<i64: 1, 32>}, {pipeline_mode = #tpu.pipeline_mode<synchronous>, transform_indices = @transform_14, window_bounds = array<i64: 32, 256>}, {pipeline_mode = #tpu.pipeline_mode<synchronous>, transform_indices = @transform_15, window_bounds = array<i64: 1, 256>}, {transform_indices = @transform_16, window_bounds = array<i64: 256, 256>}]} {
    %c0 = arith.constant 0 : index
    %c0_0 = arith.constant 0 : index
    %0 = vector.load %arg2[%c0, %c0_0] : memref<1x8xf32, #tpu.memory_space<vmem>>, vector<1x8xf32>
    %c0_1 = arith.constant 0 : index
    %c0_2 = arith.constant 0 : index
    %1 = vector.load %arg3[%c0_1, %c0_2] : memref<1x8xf32, #tpu.memory_space<vmem>>, vector<1x8xf32>
    %c0_3 = arith.constant 0 : index
    %c0_4 = arith.constant 0 : index
    %2 = vector.load %arg4[%c0_3, %c0_4] : memref<8x32xf32, #tpu.memory_space<vmem>>, vector<8x32xf32>
    %c0_5 = arith.constant 0 : index
    %c0_6 = arith.constant 0 : index
    %3 = vector.load %arg5[%c0_5, %c0_6] : memref<8x32xf32, #tpu.memory_space<vmem>>, vector<8x32xf32>
    %c0_7 = arith.constant 0 : index
    %c0_8 = arith.constant 0 : index
    %4 = vector.load %arg6[%c0_7, %c0_8] : memref<8x32xf32, #tpu.memory_space<vmem>>, vector<8x32xf32>
    %c0_9 = arith.constant 0 : index
    %c0_10 = arith.constant 0 : index
    %5 = vector.load %arg7[%c0_9, %c0_10] : memref<32x32xf32, #tpu.memory_space<vmem>>, vector<32x32xf32>
    %c0_11 = arith.constant 0 : index
    %c0_12 = arith.constant 0 : index
    %6 = vector.load %arg8[%c0_11, %c0_12] : memref<1x32xf32, #tpu.memory_space<vmem>>, vector<1x32xf32>
    %c0_13 = arith.constant 0 : index
    %c0_14 = arith.constant 0 : index
    %7 = vector.load %arg9[%c0_13, %c0_14] : memref<1x32xf32, #tpu.memory_space<vmem>>, vector<1x32xf32>
    %c0_15 = arith.constant 0 : index
    %c0_16 = arith.constant 0 : index
    %8 = vector.load %arg10[%c0_15, %c0_16] : memref<1x32xf32, #tpu.memory_space<vmem>>, vector<1x32xf32>
    %c0_17 = arith.constant 0 : index
    %c0_18 = arith.constant 0 : index
    %9 = vector.load %arg1[%c0_17, %c0_18] : memref<256x32xf32, #tpu.memory_space<vmem>>, vector<256x32xf32>
    %10 = tpu.iota {dimensions = array<i32: 1>} : vector<256x32xi32>
    %c16_i32 = arith.constant 16 : i32
    %11 = vector.broadcast %c16_i32 : i32 to vector<256x32xi32>
    %12 = arith.cmpi slt, %10, %11 : vector<256x32xi32>
    %cst = arith.constant 0.000000e+00 : f32
    %13 = vector.broadcast %cst : f32 to vector<256x32xf32>
    %14 = arith.select %12, %9, %13 : vector<256x32xi1>, vector<256x32xf32>
    %cst_19 = arith.constant dense<0.000000e+00> : vector<256xf32>
    %15 = vector.multi_reduction <add>, %14, %cst_19 [1] : vector<256x32xf32> to vector<256xf32>
    %16 = vector.shape_cast %15 : vector<256xf32> to vector<256x1xf32>
    %cst_20 = arith.constant 6.250000e-02 : f32
    %17 = vector.broadcast %cst_20 : f32 to vector<256x1xf32>
    %18 = arith.mulf %16, %17 : vector<256x1xf32>
    %cst_21 = arith.constant -3.40282347E+38 : f32
    %19 = vector.broadcast %cst_21 : f32 to vector<256x32xf32>
    %20 = arith.select %12, %9, %19 : vector<256x32xi1>, vector<256x32xf32>
    %cst_22 = arith.constant dense<0xFF800000> : vector<256xf32>
    %21 = vector.multi_reduction <maximumf>, %20, %cst_22 [1] : vector<256x32xf32> to vector<256xf32>
    %22 = vector.shape_cast %21 : vector<256xf32> to vector<256x1xf32>
    %cst_23 = arith.constant 3.40282347E+38 : f32
    %23 = vector.broadcast %cst_23 : f32 to vector<256x32xf32>
    %24 = arith.select %12, %9, %23 : vector<256x32xi1>, vector<256x32xf32>
    %cst_24 = arith.constant dense<0x7F800000> : vector<256xf32>
    %25 = vector.multi_reduction <minimumf>, %24, %cst_24 [1] : vector<256x32xf32> to vector<256xf32>
    %26 = vector.shape_cast %25 : vector<256xf32> to vector<256x1xf32>
    %27 = vector.broadcast %18 : vector<256x1xf32> to vector<256x8xf32>
    %28 = vector.broadcast %0 : vector<1x8xf32> to vector<256x8xf32>
    %29 = arith.mulf %27, %28 : vector<256x8xf32>
    %30 = vector.broadcast %1 : vector<1x8xf32> to vector<256x8xf32>
    %31 = arith.addf %29, %30 : vector<256x8xf32>
    %32 = vector.broadcast %22 : vector<256x1xf32> to vector<256x8xf32>
    %33 = vector.broadcast %0 : vector<1x8xf32> to vector<256x8xf32>
    %34 = arith.mulf %32, %33 : vector<256x8xf32>
    %35 = vector.broadcast %26 : vector<256x1xf32> to vector<256x8xf32>
    %36 = vector.broadcast %0 : vector<1x8xf32> to vector<256x8xf32>
    %37 = arith.mulf %35, %36 : vector<256x8xf32>
    %38 = arith.maximumf %34, %37 : vector<256x8xf32>
    %39 = vector.broadcast %1 : vector<1x8xf32> to vector<256x8xf32>
    %40 = arith.addf %38, %39 : vector<256x8xf32>
    %41 = arith.minimumf %34, %37 : vector<256x8xf32>
    %42 = vector.broadcast %1 : vector<1x8xf32> to vector<256x8xf32>
    %43 = arith.addf %41, %42 : vector<256x8xf32>
    %cst_25 = arith.constant 0.000000e+00 : f32
    %44 = vector.broadcast %cst_25 : f32 to vector<256x8xf32>
    %45 = arith.cmpf ogt, %31, %44 : vector<256x8xf32>
    %cst_26 = arith.constant 0.000000e+00 : f32
    %46 = vector.broadcast %cst_26 : f32 to vector<256x8xf32>
    %47 = arith.minimumf %31, %46 : vector<256x8xf32>
    %48 = math.exp %47 : vector<256x8xf32>
    %cst_27 = arith.constant 1.000000e+00 : f32
    %49 = vector.broadcast %cst_27 : f32 to vector<256x8xf32>
    %50 = arith.subf %48, %49 : vector<256x8xf32>
    %cst_28 = arith.constant 1.67326319 : f32
    %51 = vector.broadcast %cst_28 : f32 to vector<256x8xf32>
    %52 = arith.mulf %51, %50 : vector<256x8xf32>
    %53 = arith.select %45, %31, %52 : vector<256x8xi1>, vector<256x8xf32>
    %cst_29 = arith.constant 1.05070102 : f32
    %54 = vector.broadcast %cst_29 : f32 to vector<256x8xf32>
    %55 = arith.mulf %54, %53 : vector<256x8xf32>
    %cst_30 = arith.constant dense<0.000000e+00> : vector<256x32xf32>
    %56 = tpu.matmul %55, %2, %cst_30 {dimension_numbers = #tpu.dot_dimension_numbers<[1], [0], [0], [1], [0, 0, 1, 1], [], []>} : vector<256x8xf32>, vector<8x32xf32>, vector<256x32xf32> -> vector<256x32xf32>
    %cst_31 = arith.constant 0.000000e+00 : f32
    %57 = vector.broadcast %cst_31 : f32 to vector<256x8xf32>
    %58 = arith.cmpf ogt, %40, %57 : vector<256x8xf32>
    %cst_32 = arith.constant 0.000000e+00 : f32
    %59 = vector.broadcast %cst_32 : f32 to vector<256x8xf32>
    %60 = arith.minimumf %40, %59 : vector<256x8xf32>
    %61 = math.exp %60 : vector<256x8xf32>
    %cst_33 = arith.constant 1.000000e+00 : f32
    %62 = vector.broadcast %cst_33 : f32 to vector<256x8xf32>
    %63 = arith.subf %61, %62 : vector<256x8xf32>
    %cst_34 = arith.constant 1.67326319 : f32
    %64 = vector.broadcast %cst_34 : f32 to vector<256x8xf32>
    %65 = arith.mulf %64, %63 : vector<256x8xf32>
    %66 = arith.select %58, %40, %65 : vector<256x8xi1>, vector<256x8xf32>
    %cst_35 = arith.constant 1.05070102 : f32
    %67 = vector.broadcast %cst_35 : f32 to vector<256x8xf32>
    %68 = arith.mulf %67, %66 : vector<256x8xf32>
    %cst_36 = arith.constant dense<0.000000e+00> : vector<256x32xf32>
    %69 = tpu.matmul %68, %3, %cst_36 {dimension_numbers = #tpu.dot_dimension_numbers<[1], [0], [0], [1], [0, 0, 1, 1], [], []>} : vector<256x8xf32>, vector<8x32xf32>, vector<256x32xf32> -> vector<256x32xf32>
    %70 = arith.addf %56, %69 : vector<256x32xf32>
    %cst_37 = arith.constant 0.000000e+00 : f32
    %71 = vector.broadcast %cst_37 : f32 to vector<256x8xf32>
    %72 = arith.cmpf ogt, %43, %71 : vector<256x8xf32>
    %cst_38 = arith.constant 0.000000e+00 : f32
    %73 = vector.broadcast %cst_38 : f32 to vector<256x8xf32>
    %74 = arith.minimumf %43, %73 : vector<256x8xf32>
    %75 = math.exp %74 : vector<256x8xf32>
    %cst_39 = arith.constant 1.000000e+00 : f32
    %76 = vector.broadcast %cst_39 : f32 to vector<256x8xf32>
    %77 = arith.subf %75, %76 : vector<256x8xf32>
    %cst_40 = arith.constant 1.67326319 : f32
    %78 = vector.broadcast %cst_40 : f32 to vector<256x8xf32>
    %79 = arith.mulf %78, %77 : vector<256x8xf32>
    %80 = arith.select %72, %43, %79 : vector<256x8xi1>, vector<256x8xf32>
    %cst_41 = arith.constant 1.05070102 : f32
    %81 = vector.broadcast %cst_41 : f32 to vector<256x8xf32>
    %82 = arith.mulf %81, %80 : vector<256x8xf32>
    %cst_42 = arith.constant dense<0.000000e+00> : vector<256x32xf32>
    %83 = tpu.matmul %82, %4, %cst_42 {dimension_numbers = #tpu.dot_dimension_numbers<[1], [0], [0], [1], [0, 0, 1, 1], [], []>} : vector<256x8xf32>, vector<8x32xf32>, vector<256x32xf32> -> vector<256x32xf32>
    %84 = arith.addf %70, %83 : vector<256x32xf32>
    %cst_43 = arith.constant dense<0.000000e+00> : vector<256x32xf32>
    %85 = tpu.matmul %9, %5, %cst_43 {dimension_numbers = #tpu.dot_dimension_numbers<[1], [0], [0], [1], [0, 0, 1, 1], [], []>} : vector<256x32xf32>, vector<32x32xf32>, vector<256x32xf32> -> vector<256x32xf32>
    %86 = arith.addf %84, %85 : vector<256x32xf32>
    %87 = vector.broadcast %6 : vector<1x32xf32> to vector<256x32xf32>
    %88 = arith.addf %86, %87 : vector<256x32xf32>
    %cst_44 = arith.constant 0.000000e+00 : f32
    %89 = vector.broadcast %cst_44 : f32 to vector<256x32xf32>
    %90 = arith.cmpf ogt, %88, %89 : vector<256x32xf32>
    %cst_45 = arith.constant 0.000000e+00 : f32
    %91 = vector.broadcast %cst_45 : f32 to vector<256x32xf32>
    %92 = arith.minimumf %88, %91 : vector<256x32xf32>
    %93 = math.exp %92 : vector<256x32xf32>
    %cst_46 = arith.constant 1.000000e+00 : f32
    %94 = vector.broadcast %cst_46 : f32 to vector<256x32xf32>
    %95 = arith.subf %93, %94 : vector<256x32xf32>
    %cst_47 = arith.constant 1.67326319 : f32
    %96 = vector.broadcast %cst_47 : f32 to vector<256x32xf32>
    %97 = arith.mulf %96, %95 : vector<256x32xf32>
    %98 = arith.select %90, %88, %97 : vector<256x32xi1>, vector<256x32xf32>
    %cst_48 = arith.constant 1.05070102 : f32
    %99 = vector.broadcast %cst_48 : f32 to vector<256x32xf32>
    %100 = arith.mulf %99, %98 : vector<256x32xf32>
    %cst_49 = arith.constant dense<0.000000e+00> : vector<256xf32>
    %101 = vector.multi_reduction <add>, %100, %cst_49 [1] : vector<256x32xf32> to vector<256xf32>
    %102 = vector.shape_cast %101 : vector<256xf32> to vector<256x1xf32>
    %cst_50 = arith.constant 3.200000e+01 : f32
    %103 = vector.broadcast %cst_50 : f32 to vector<256x1xf32>
    %104 = arith.divf %102, %103 : vector<256x1xf32>
    %105 = vector.broadcast %104 : vector<256x1xf32> to vector<256x32xf32>
    %106 = arith.subf %100, %105 : vector<256x32xf32>
    %107 = arith.mulf %106, %106 : vector<256x32xf32>
    %cst_51 = arith.constant dense<0.000000e+00> : vector<256xf32>
    %108 = vector.multi_reduction <add>, %107, %cst_51 [1] : vector<256x32xf32> to vector<256xf32>
    %109 = vector.shape_cast %108 : vector<256xf32> to vector<256x1xf32>
    %cst_52 = arith.constant 3.200000e+01 : f32
    %110 = vector.broadcast %cst_52 : f32 to vector<256x1xf32>
    %111 = arith.divf %109, %110 : vector<256x1xf32>
    %112 = vector.broadcast %104 : vector<256x1xf32> to vector<256x32xf32>
    %113 = arith.subf %100, %112 : vector<256x32xf32>
    %cst_53 = arith.constant 9.99999974E-6 : f32
    %114 = vector.broadcast %cst_53 : f32 to vector<256x1xf32>
    %115 = arith.addf %111, %114 : vector<256x1xf32>
    %116 = math.rsqrt %115 : vector<256x1xf32>
    %117 = vector.broadcast %116 : vector<256x1xf32> to vector<256x32xf32>
    %118 = arith.mulf %113, %117 : vector<256x32xf32>
    %119 = vector.broadcast %7 : vector<1x32xf32> to vector<256x32xf32>
    %120 = arith.mulf %118, %119 : vector<256x32xf32>
    %121 = vector.broadcast %8 : vector<1x32xf32> to vector<256x32xf32>
    %122 = arith.addf %120, %121 : vector<256x32xf32>
    %c0_54 = arith.constant 0 : index
    %c0_55 = arith.constant 0 : index
    %123 = vector.load %arg11[%c0_54, %c0_55] : memref<32x32xf32, #tpu.memory_space<vmem>>, vector<32x32xf32>
    %c0_56 = arith.constant 0 : index
    %c0_57 = arith.constant 0 : index
    %124 = vector.load %arg12[%c0_56, %c0_57] : memref<1x32xf32, #tpu.memory_space<vmem>>, vector<1x32xf32>
    %c0_58 = arith.constant 0 : index
    %c0_59 = arith.constant 0 : index
    %125 = vector.load %arg13[%c0_58, %c0_59] : memref<1x32xf32, #tpu.memory_space<vmem>>, vector<1x32xf32>
    %c0_60 = arith.constant 0 : index
    %c0_61 = arith.constant 0 : index
    %126 = vector.load %arg14[%c0_60, %c0_61] : memref<1x32xf32, #tpu.memory_space<vmem>>, vector<1x32xf32>
    %cst_62 = arith.constant dense<0.000000e+00> : vector<256x32xf32>
    %127 = tpu.matmul %122, %123, %cst_62 {dimension_numbers = #tpu.dot_dimension_numbers<[1], [0], [0], [1], [0, 0, 1, 1], [], []>} : vector<256x32xf32>, vector<32x32xf32>, vector<256x32xf32> -> vector<256x32xf32>
    %128 = vector.broadcast %124 : vector<1x32xf32> to vector<256x32xf32>
    %129 = arith.addf %127, %128 : vector<256x32xf32>
    %cst_63 = arith.constant 0.000000e+00 : f32
    %130 = vector.broadcast %cst_63 : f32 to vector<256x32xf32>
    %131 = arith.cmpf ogt, %129, %130 : vector<256x32xf32>
    %cst_64 = arith.constant 0.000000e+00 : f32
    %132 = vector.broadcast %cst_64 : f32 to vector<256x32xf32>
    %133 = arith.minimumf %129, %132 : vector<256x32xf32>
    %134 = math.exp %133 : vector<256x32xf32>
    %cst_65 = arith.constant 1.000000e+00 : f32
    %135 = vector.broadcast %cst_65 : f32 to vector<256x32xf32>
    %136 = arith.subf %134, %135 : vector<256x32xf32>
    %cst_66 = arith.constant 1.67326319 : f32
    %137 = vector.broadcast %cst_66 : f32 to vector<256x32xf32>
    %138 = arith.mulf %137, %136 : vector<256x32xf32>
    %139 = arith.select %131, %129, %138 : vector<256x32xi1>, vector<256x32xf32>
    %cst_67 = arith.constant 1.05070102 : f32
    %140 = vector.broadcast %cst_67 : f32 to vector<256x32xf32>
    %141 = arith.mulf %140, %139 : vector<256x32xf32>
    %cst_68 = arith.constant dense<0.000000e+00> : vector<256xf32>
    %142 = vector.multi_reduction <add>, %141, %cst_68 [1] : vector<256x32xf32> to vector<256xf32>
    %143 = vector.shape_cast %142 : vector<256xf32> to vector<256x1xf32>
    %cst_69 = arith.constant 3.200000e+01 : f32
    %144 = vector.broadcast %cst_69 : f32 to vector<256x1xf32>
    %145 = arith.divf %143, %144 : vector<256x1xf32>
    %146 = vector.broadcast %145 : vector<256x1xf32> to vector<256x32xf32>
    %147 = arith.subf %141, %146 : vector<256x32xf32>
    %148 = arith.mulf %147, %147 : vector<256x32xf32>
    %cst_70 = arith.constant dense<0.000000e+00> : vector<256xf32>
    %149 = vector.multi_reduction <add>, %148, %cst_70 [1] : vector<256x32xf32> to vector<256xf32>
    %150 = vector.shape_cast %149 : vector<256xf32> to vector<256x1xf32>
    %cst_71 = arith.constant 3.200000e+01 : f32
    %151 = vector.broadcast %cst_71 : f32 to vector<256x1xf32>
    %152 = arith.divf %150, %151 : vector<256x1xf32>
    %153 = vector.broadcast %145 : vector<256x1xf32> to vector<256x32xf32>
    %154 = arith.subf %141, %153 : vector<256x32xf32>
    %cst_72 = arith.constant 9.99999974E-6 : f32
    %155 = vector.broadcast %cst_72 : f32 to vector<256x1xf32>
    %156 = arith.addf %152, %155 : vector<256x1xf32>
    %157 = math.rsqrt %156 : vector<256x1xf32>
    %158 = vector.broadcast %157 : vector<256x1xf32> to vector<256x32xf32>
    %159 = arith.mulf %154, %158 : vector<256x32xf32>
    %160 = vector.broadcast %125 : vector<1x32xf32> to vector<256x32xf32>
    %161 = arith.mulf %159, %160 : vector<256x32xf32>
    %162 = vector.broadcast %126 : vector<1x32xf32> to vector<256x32xf32>
    %163 = arith.addf %161, %162 : vector<256x32xf32>
    %c0_73 = arith.constant 0 : index
    %c0_74 = arith.constant 0 : index
    %164 = vector.load %arg15[%c0_73, %c0_74] : memref<32x256xf32, #tpu.memory_space<vmem>>, vector<32x256xf32>
    %c0_75 = arith.constant 0 : index
    %c0_76 = arith.constant 0 : index
    %165 = vector.load %arg16[%c0_75, %c0_76] : memref<1x256xf32, #tpu.memory_space<vmem>>, vector<1x256xf32>
    %cst_77 = arith.constant dense<0.000000e+00> : vector<256x256xf32>
    %166 = tpu.matmul %163, %164, %cst_77 {dimension_numbers = #tpu.dot_dimension_numbers<[1], [0], [0], [1], [0, 0, 1, 1], [], []>} : vector<256x32xf32>, vector<32x256xf32>, vector<256x256xf32> -> vector<256x256xf32>
    %167 = vector.broadcast %165 : vector<1x256xf32> to vector<256x256xf32>
    %168 = arith.addf %166, %167 : vector<256x256xf32>
    %c0_78 = arith.constant 0 : index
    %c0_79 = arith.constant 0 : index
    %169 = vector.load %arg17[%c0_78, %c0_79] : memref<256x256xf32, #tpu.memory_space<vmem>>, vector<256x256xf32>
    tpu.vector_store %arg17[%c0_78, %c0_79], %168 {strides = array<i32>} : memref<256x256xf32, #tpu.memory_space<vmem>>, vector<256x256xf32>,
    return
  }
  func.func @transform_0(%arg0: i32) -> (i32, i32) {
    %c0_i32 = arith.constant 0 : i32
    %c0_i32_0 = arith.constant 0 : i32
    return %arg0, %c0_i32 : i32, i32
  }
  func.func @transform_1(%arg0: i32) -> (i32, i32) {
    %c0_i32 = arith.constant 0 : i32
    %c0_i32_0 = arith.constant 0 : i32
    %c0_i32_1 = arith.constant 0 : i32
    return %c0_i32, %c0_i32_0 : i32, i32
  }
  func.func @transform_2(%arg0: i32) -> (i32, i32) {
    %c0_i32 = arith.constant 0 : i32
    %c0_i32_0 = arith.constant 0 : i32
    %c0_i32_1 = arith.constant 0 : i32
    return %c0_i32, %c0_i32_0 : i32, i32
  }
  func.func @transform_3(%arg0: i32) -> (i32, i32) {
    %c0_i32 = arith.constant 0 : i32
    %c0_i32_0 = arith.constant 0 : i32
    %c0_i32_1 = arith.constant 0 : i32
    return %c0_i32, %c0_i32_0 : i32, i32
  }
  func.func @transform_4(%arg0: i32) -> (i32, i32) {
    %c0_i32 = arith.constant 0 : i32
    %c0_i32_0 = arith.constant 0 : i32
    %c0_i32_1 = arith.constant 0 : i32
    return %c0_i32, %c0_i32_0 : i32, i32
  }
  func.func @transform_5(%arg0: i32) -> (i32, i32) {
    %c0_i32 = arith.constant 0 : i32
    %c0_i32_0 = arith.constant 0 : i32
    %c0_i32_1 = arith.constant 0 : i32
    return %c0_i32, %c0_i32_0 : i32, i32
  }
  func.func @transform_6(%arg0: i32) -> (i32, i32) {
    %c0_i32 = arith.constant 0 : i32
    %c0_i32_0 = arith.constant 0 : i32
    %c0_i32_1 = arith.constant 0 : i32
    return %c0_i32, %c0_i32_0 : i32, i32
  }
  func.func @transform_7(%arg0: i32) -> (i32, i32) {
    %c0_i32 = arith.constant 0 : i32
    %c0_i32_0 = arith.constant 0 : i32
    %c0_i32_1 = arith.constant 0 : i32
    return %c0_i32, %c0_i32_0 : i32, i32
  }
  func.func @transform_8(%arg0: i32) -> (i32, i32) {
    %c0_i32 = arith.constant 0 : i32
    %c0_i32_0 = arith.constant 0 : i32
    %c0_i32_1 = arith.constant 0 : i32
    return %c0_i32, %c0_i32_0 : i32, i32
  }
  func.func @transform_9(%arg0: i32) -> (i32, i32) {
    %c0_i32 = arith.constant 0 : i32
    %c0_i32_0 = arith.constant 0 : i32
    %c0_i32_1 = arith.constant 0 : i32
    return %c0_i32, %c0_i32_0 : i32, i32
  }
  func.func @transform_10(%arg0: i32) -> (i32, i32) {
    %c0_i32 = arith.constant 0 : i32
    %c0_i32_0 = arith.constant 0 : i32
    %c0_i32_1 = arith.constant 0 : i32
    return %c0_i32, %c0_i32_0 : i32, i32
  }
  func.func @transform_11(%arg0: i32) -> (i32, i32) {
    %c0_i32 = arith.constant 0 : i32
    %c0_i32_0 = arith.constant 0 : i32
    %c0_i32_1 = arith.constant 0 : i32
    return %c0_i32, %c0_i32_0 : i32, i32
  }
  func.func @transform_12(%arg0: i32) -> (i32, i32) {
    %c0_i32 = arith.constant 0 : i32
    %c0_i32_0 = arith.constant 0 : i32
    %c0_i32_1 = arith.constant 0 : i32
    return %c0_i32, %c0_i32_0 : i32, i32
  }
  func.func @transform_13(%arg0: i32) -> (i32, i32) {
    %c0_i32 = arith.constant 0 : i32
    %c0_i32_0 = arith.constant 0 : i32
    %c0_i32_1 = arith.constant 0 : i32
    return %c0_i32, %c0_i32_0 : i32, i32
  }
  func.func @transform_14(%arg0: i32) -> (i32, i32) {
    %c0_i32 = arith.constant 0 : i32
    %c0_i32_0 = arith.constant 0 : i32
    %c0_i32_1 = arith.constant 0 : i32
    return %c0_i32, %c0_i32_0 : i32, i32
  }
  func.func @transform_15(%arg0: i32) -> (i32, i32) {
    %c0_i32 = arith.constant 0 : i32
    %c0_i32_0 = arith.constant 0 : i32
    %c0_i32_1 = arith.constant 0 : i32
    return %c0_i32, %c0_i32_0 : i32, i32
  }
  func.func @transform_16(%arg0: i32) -> (i32, i32) {
    %c0_i32 = arith.constant 0 : i32
    %c0_i32_0 = arith.constant 0 : i32
    return %arg0, %c0_i32 : i32, i32
  }
}

</mosaic_0001>

<llo_original>
// kernel: tpu_custom_call.1
$region0: #{tpu_custom_call.1}
  #allocation0 [shape = 'u32[]', space=smem, size = 0x4, offset = 0x4, fixed_abs, tag = 'smem constant byte address 0x4 - core index']
  #allocation1 [shape = 'u32[144,128]{1,0:T(1,128)}', space=vmem, size = 0x12000, scoped, tag = 'internal scratch']
  %s0 = inlined_call_operand.vmem [shape: f32[512,32], index: 0, kind: input, shape index: {}]
  %s1 = inlined_call_operand.vmem [shape: f32[1,8], index: 1, kind: input, shape index: {}]
  %s2 = inlined_call_operand.vmem [shape: f32[1,8], index: 2, kind: input, shape index: {}]
  %s3 = inlined_call_operand.vmem [shape: f32[8,32], index: 3, kind: input, shape index: {}]
  %s4 = inlined_call_operand.vmem [shape: f32[8,32], index: 4, kind: input, shape index: {}]
  %s5 = inlined_call_operand.vmem [shape: f32[8,32], index: 5, kind: input, shape index: {}]
  %s6 = inlined_call_operand.vmem [shape: f32[32,32], index: 6, kind: input, shape index: {}]
  %s7 = inlined_call_operand.vmem [shape: f32[1,32], index: 7, kind: input, shape index: {}]
  %s8 = inlined_call_operand.vmem [shape: f32[1,32], index: 8, kind: input, shape index: {}]
  %s9 = inlined_call_operand.vmem [shape: f32[1,32], index: 9, kind: input, shape index: {}]
  %s10 = inlined_call_operand.vmem [shape: f32[32,32], index: 10, kind: input, shape index: {}]
  %s11 = inlined_call_operand.vmem [shape: f32[1,32], index: 11, kind: input, shape index: {}]
  %s12 = inlined_call_operand.vmem [shape: f32[1,32], index: 12, kind: input, shape index: {}]
  %s13 = inlined_call_operand.vmem [shape: f32[1,32], index: 13, kind: input, shape index: {}]
  %s14 = inlined_call_operand.vmem [shape: f32[32,256], index: 14, kind: input, shape index: {}]
  %s15 = inlined_call_operand.vmem [shape: f32[1,256], index: 15, kind: input, shape index: {}]
  %s16 = inlined_call_operand.hbm [shape: f32[512,256], index: 16, kind: output, shape index: {}]
  %s17 = sld [smem:[#allocation0]]
  $region97: #{tpu_custom_call.1} parent=0
    _
  %s19 = ssub.s32 1, %s17
  %s20 = scalar_select 0, %s19, %s17
  $region1: #{tpu_custom_call.1} parent=0
    #allocation2 [shape = 'u8[524288]{0}', space=vmem, size = 0x80000, scoped, tag = 'output window, operand 0']
    #allocation3 [shape = 's32[2]{0}', space=sflag, size = 0x8, scoped, tag = 'scoped memory for tpu_custom_call.1']
    %21 = vsyncpa [#allocation3], 0
    %s22 = scalar_lea.sflag [#allocation3], 1
    %23 = vsyncpa %s22, 0
    loop: start=0, step=1, limit=4
    $region2: #{tpu_custom_call.1} parent=1 // loop_pre_header
      _
    $region3: #{tpu_custom_call.1} parent=1 // loop_header
      %s25 = sphi 0, %s29
      %p26 = scmp.ge.s32.totalorder %s25, 4
      %s35 = sphi 0, %s37
      %s38 = sphi 0, %s35
      %s39 = sphi 0, %s38
      %s55 = sphi 0, %s39
      %s59 = sphi 0, %s59
      %s61 = sphi 0, %s59
      %s62 = sphi 0, %s61
      %s76 = sphi 0, %s62
      %s80 = sphi 0, %s80
      %s82 = sphi 0, %s80
      %s83 = sphi 0, %s82
      %s97 = sphi 0, %s83
      %s101 = sphi 0, %s101
      %s103 = sphi 0, %s101
      %s104 = sphi 0, %s103
      %s118 = sphi 0, %s104
      %s122 = sphi 0, %s122
      %s124 = sphi 0, %s122
      %s125 = sphi 0, %s124
      %s139 = sphi 0, %s125
      %s143 = sphi 0, %s143
      %s145 = sphi 0, %s143
      %s146 = sphi 0, %s145
      %s160 = sphi 0, %s146
      %s164 = sphi 0, %s164
      %s166 = sphi 0, %s164
      %s167 = sphi 0, %s166
      %s181 = sphi 0, %s167
      %s185 = sphi 0, %s185
      %s187 = sphi 0, %s185
      %s188 = sphi 0, %s187
      %s202 = sphi 0, %s188
      %s206 = sphi 0, %s206
      %s208 = sphi 0, %s206
      %s209 = sphi 0, %s208
      %s223 = sphi 0, %s209
      %s227 = sphi 0, %s227
      %s229 = sphi 0, %s227
      %s230 = sphi 0, %s229
      %s244 = sphi 0, %s230
      %s248 = sphi 0, %s248
      %s250 = sphi 0, %s248
      %s251 = sphi 0, %s250
      %s265 = sphi 0, %s251
      %s269 = sphi 0, %s269
      %s271 = sphi 0, %s269
      %s272 = sphi 0, %s271
      %s286 = sphi 0, %s272
      %s290 = sphi 0, %s290
      %s292 = sphi 0, %s290
      %s293 = sphi 0, %s292
      %s307 = sphi 0, %s293
      %s311 = sphi 0, %s311
      %s313 = sphi 0, %s311
      %s314 = sphi 0, %s313
      %s328 = sphi 0, %s314
      %s332 = sphi 0, %s332
      %s334 = sphi 0, %s332
      %s335 = sphi 0, %s334
      %s349 = sphi 0, %s335
      %s353 = sphi 0, %s353
      %s355 = sphi 0, %s353
      %s356 = sphi 0, %s355
      %s370 = sphi 0, %s356
      %s376 = sphi 0, %s378
      %s379 = sphi 0, %s376
      %s380 = sphi 0, %s379
      %s396 = sphi 0, %s380
    $region4: #{tpu_custom_call.1} parent=1 // loop_header_branch
      %28 = sbr.rel (%p26) target = $region8
    $region5: #{tpu_custom_call.1} parent=1 // loop_body
      %s30 = ssub.s32 %s25, 1
      %s31 = ssub.s32 %s25, 2
      %s32 = sadd.s32 %s25, 1
      %s33 = ssub.s32 %s25, %s32
      %p34 = scmp.eq.s32.totalorder %s33, 0
      %s36 = sadd.s32 %s35, 1
      %s37 = scalar_select %p34, %s35, %s36
      %p40 = pneg %p34
      %p41 = scmp.eq.s32.totalorder %s25, 1
      %p42 = por %p40, %p41
      %p43 = scmp.ne.s32.totalorder %s35, %s38
      %p44 = scmp.eq.s32.totalorder %s25, 0
      %p45 = por %p43, %p44
      %p46 = scmp.ne.s32.totalorder %s35, %s38
      %p47 = scmp.eq.s32.totalorder %s30, 1
      %p48 = por %p46, %p47
      %p49 = scmp.ne.s32.totalorder %s38, %s39
      %p50 = scmp.eq.s32.totalorder %s30, 0
      %p51 = por %p49, %p50
      %p52 = scmp.ne.s32.totalorder %s38, %s39
      %p53 = scmp.eq.s32.totalorder %s31, 1
      %p54 = por %p52, %p53
      %p56 = scmp.ne.s32.totalorder %s39, %s55
      %p57 = scmp.eq.s32.totalorder %s31, 0
      %p58 = por %p56, %p57
      %s60 = sadd.s32 %s59, 1
      %p63 = scmp.eq.s32.totalorder %s25, 1
      %p64 = scmp.ne.s32.totalorder %s59, %s61
      %p65 = scmp.eq.s32.totalorder %s25, 0
      %p66 = por %p64, %p65
      %p67 = scmp.ne.s32.totalorder %s59, %s61
      %p68 = scmp.eq.s32.totalorder %s30, 1
      %p69 = por %p67, %p68
      %p70 = scmp.ne.s32.totalorder %s61, %s62
      %p71 = scmp.eq.s32.totalorder %s30, 0
      %p72 = por %p70, %p71
      %p73 = scmp.ne.s32.totalorder %s61, %s62
      %p74 = scmp.eq.s32.totalorder %s31, 1
      %p75 = por %p73, %p74
      %p77 = scmp.ne.s32.totalorder %s62, %s76
      %p78 = scmp.eq.s32.totalorder %s31, 0
      %p79 = por %p77, %p78
      %s81 = sadd.s32 %s80, 1
      %p84 = scmp.eq.s32.totalorder %s25, 1
      %p85 = scmp.ne.s32.totalorder %s80, %s82
      %p86 = scmp.eq.s32.totalorder %s25, 0
      %p87 = por %p85, %p86
      %p88 = scmp.ne.s32.totalorder %s80, %s82
      %p89 = scmp.eq.s32.totalorder %s30, 1
      %p90 = por %p88, %p89
      %p91 = scmp.ne.s32.totalorder %s82, %s83
      %p92 = scmp.eq.s32.totalorder %s30, 0
      %p93 = por %p91, %p92
      %p94 = scmp.ne.s32.totalorder %s82, %s83
      %p95 = scmp.eq.s32.totalorder %s31, 1
      %p96 = por %p94, %p95
      %p98 = scmp.ne.s32.totalorder %s83, %s97
      %p99 = scmp.eq.s32.totalorder %s31, 0
      %p100 = por %p98, %p99
      %s102 = sadd.s32 %s101, 1
      %p105 = scmp.eq.s32.totalorder %s25, 1
      %p106 = scmp.ne.s32.totalorder %s101, %s103
      %p107 = scmp.eq.s32.totalorder %s25, 0
      %p108 = por %p106, %p107
      %p109 = scmp.ne.s32.totalorder %s101, %s103
      %p110 = scmp.eq.s32.totalorder %s30, 1
      %p111 = por %p109, %p110
      %p112 = scmp.ne.s32.totalorder %s103, %s104
      %p113 = scmp.eq.s32.totalorder %s30, 0
      %p114 = por %p112, %p113
      %p115 = scmp.ne.s32.totalorder %s103, %s104
      %p116 = scmp.eq.s32.totalorder %s31, 1
      %p117 = por %p115, %p116
      %p119 = scmp.ne.s32.totalorder %s104, %s118
      %p120 = scmp.eq.s32.totalorder %s31, 0
      %p121 = por %p119, %p120
      %s123 = sadd.s32 %s122, 1
      %p126 = scmp.eq.s32.totalorder %s25, 1
      %p127 = scmp.ne.s32.totalorder %s122, %s124
      %p128 = scmp.eq.s32.totalorder %s25, 0
      %p129 = por %p127, %p128
      %p130 = scmp.ne.s32.totalorder %s122, %s124
      %p131 = scmp.eq.s32.totalorder %s30, 1
      %p132 = por %p130, %p131
      %p133 = scmp.ne.s32.totalorder %s124, %s125
      %p134 = scmp.eq.s32.totalorder %s30, 0
      %p135 = por %p133, %p134
      %p136 = scmp.ne.s32.totalorder %s124, %s125
      %p137 = scmp.eq.s32.totalorder %s31, 1
      %p138 = por %p136, %p137
      %p140 = scmp.ne.s32.totalorder %s125, %s139
      %p141 = scmp.eq.s32.totalorder %s31, 0
      %p142 = por %p140, %p141
      %s144 = sadd.s32 %s143, 1
      %p147 = scmp.eq.s32.totalorder %s25, 1
      %p148 = scmp.ne.s32.totalorder %s143, %s145
      %p149 = scmp.eq.s32.totalorder %s25, 0
      %p150 = por %p148, %p149
      %p151 = scmp.ne.s32.totalorder %s143, %s145
      %p152 = scmp.eq.s32.totalorder %s30, 1
      %p153 = por %p151, %p152
      %p154 = scmp.ne.s32.totalorder %s145, %s146
      %p155 = scmp.eq.s32.totalorder %s30, 0
      %p156 = por %p154, %p155
      %p157 = scmp.ne.s32.totalorder %s145, %s146
      %p158 = scmp.eq.s32.totalorder %s31, 1
      %p159 = por %p157, %p158
      %p161 = scmp.ne.s32.totalorder %s146, %s160
      %p162 = scmp.eq.s32.totalorder %s31, 0
      %p163 = por %p161, %p162
      %s165 = sadd.s32 %s164, 1
      %p168 = scmp.eq.s32.totalorder %s25, 1
      %p169 = scmp.ne.s32.totalorder %s164, %s166
      %p170 = scmp.eq.s32.totalorder %s25, 0
      %p171 = por %p169, %p170
      %p172 = scmp.ne.s32.totalorder %s164, %s166
      %p173 = scmp.eq.s32.totalorder %s30, 1
      %p174 = por %p172, %p173
      %p175 = scmp.ne.s32.totalorder %s166, %s167
      %p176 = scmp.eq.s32.totalorder %s30, 0
      %p177 = por %p175, %p176
      %p178 = scmp.ne.s32.totalorder %s166, %s167
      %p179 = scmp.eq.s32.totalorder %s31, 1
      %p180 = por %p178, %p179
      %p182 = scmp.ne.s32.totalorder %s167, %s181
      %p183 = scmp.eq.s32.totalorder %s31, 0
      %p184 = por %p182, %p183
      %s186 = sadd.s32 %s185, 1
      %p189 = scmp.eq.s32.totalorder %s25, 1
      %p190 = scmp.ne.s32.totalorder %s185, %s187
      %p191 = scmp.eq.s32.totalorder %s25, 0
      %p192 = por %p190, %p191
      %p193 = scmp.ne.s32.totalorder %s185, %s187
      %p194 = scmp.eq.s32.totalorder %s30, 1
      %p195 = por %p193, %p194
      %p196 = scmp.ne.s32.totalorder %s187, %s188
      %p197 = scmp.eq.s32.totalorder %s30, 0
      %p198 = por %p196, %p197
      %p199 = scmp.ne.s32.totalorder %s187, %s188
      %p200 = scmp.eq.s32.totalorder %s31, 1
      %p201 = por %p199, %p200
      %p203 = scmp.ne.s32.totalorder %s188, %s202
      %p204 = scmp.eq.s32.totalorder %s31, 0
      %p205 = por %p203, %p204
      %s207 = sadd.s32 %s206, 1
      %p210 = scmp.eq.s32.totalorder %s25, 1
      %p211 = scmp.ne.s32.totalorder %s206, %s208
      %p212 = scmp.eq.s32.totalorder %s25, 0
      %p213 = por %p211, %p212
      %p214 = scmp.ne.s32.totalorder %s206, %s208
      %p215 = scmp.eq.s32.totalorder %s30, 1
      %p216 = por %p214, %p215
      %p217 = scmp.ne.s32.totalorder %s208, %s209
      %p218 = scmp.eq.s32.totalorder %s30, 0
      %p219 = por %p217, %p218
      %p220 = scmp.ne.s32.totalorder %s208, %s209
      %p221 = scmp.eq.s32.totalorder %s31, 1
      %p222 = por %p220, %p221
      %p224 = scmp.ne.s32.totalorder %s209, %s223
      %p225 = scmp.eq.s32.totalorder %s31, 0
      %p226 = por %p224, %p225
      %s228 = sadd.s32 %s227, 1
      %p231 = scmp.eq.s32.totalorder %s25, 1
      %p232 = scmp.ne.s32.totalorder %s227, %s229
      %p233 = scmp.eq.s32.totalorder %s25, 0
      %p234 = por %p232, %p233
      %p235 = scmp.ne.s32.totalorder %s227, %s229
      %p236 = scmp.eq.s32.totalorder %s30, 1
      %p237 = por %p235, %p236
      %p238 = scmp.ne.s32.totalorder %s229, %s230
      %p239 = scmp.eq.s32.totalorder %s30, 0
      %p240 = por %p238, %p239
      %p241 = scmp.ne.s32.totalorder %s229, %s230
      %p242 = scmp.eq.s32.totalorder %s31, 1
      %p243 = por %p241, %p242
      %p245 = scmp.ne.s32.totalorder %s230, %s244
      %p246 = scmp.eq.s32.totalorder %s31, 0
      %p247 = por %p245, %p246
      %s249 = sadd.s32 %s248, 1
      %p252 = scmp.eq.s32.totalorder %s25, 1
      %p253 = scmp.ne.s32.totalorder %s248, %s250
      %p254 = scmp.eq.s32.totalorder %s25, 0
      %p255 = por %p253, %p254
      %p256 = scmp.ne.s32.totalorder %s248, %s250
      %p257 = scmp.eq.s32.totalorder %s30, 1
      %p258 = por %p256, %p257
      %p259 = scmp.ne.s32.totalorder %s250, %s251
      %p260 = scmp.eq.s32.totalorder %s30, 0
      %p261 = por %p259, %p260
      %p262 = scmp.ne.s32.totalorder %s250, %s251
      %p263 = scmp.eq.s32.totalorder %s31, 1
      %p264 = por %p262, %p263
      %p266 = scmp.ne.s32.totalorder %s251, %s265
      %p267 = scmp.eq.s32.totalorder %s31, 0
      %p268 = por %p266, %p267
      %s270 = sadd.s32 %s269, 1
      %p273 = scmp.eq.s32.totalorder %s25, 1
      %p274 = scmp.ne.s32.totalorder %s269, %s271
      %p275 = scmp.eq.s32.totalorder %s25, 0
      %p276 = por %p274, %p275
      %p277 = scmp.ne.s32.totalorder %s269, %s271
      %p278 = scmp.eq.s32.totalorder %s30, 1
      %p279 = por %p277, %p278
      %p280 = scmp.ne.s32.totalorder %s271, %s272
      %p281 = scmp.eq.s32.totalorder %s30, 0
      %p282 = por %p280, %p281
      %p283 = scmp.ne.s32.totalorder %s271, %s272
      %p284 = scmp.eq.s32.totalorder %s31, 1
      %p285 = por %p283, %p284
      %p287 = scmp.ne.s32.totalorder %s272, %s286
      %p288 = scmp.eq.s32.totalorder %s31, 0
      %p289 = por %p287, %p288
      %s291 = sadd.s32 %s290, 1
      %p294 = scmp.eq.s32.totalorder %s25, 1
      %p295 = scmp.ne.s32.totalorder %s290, %s292
      %p296 = scmp.eq.s32.totalorder %s25, 0
      %p297 = por %p295, %p296
      %p298 = scmp.ne.s32.totalorder %s290, %s292
      %p299 = scmp.eq.s32.totalorder %s30, 1
      %p300 = por %p298, %p299
      %p301 = scmp.ne.s32.totalorder %s292, %s293
      %p302 = scmp.eq.s32.totalorder %s30, 0
      %p303 = por %p301, %p302
      %p304 = scmp.ne.s32.totalorder %s292, %s293
      %p305 = scmp.eq.s32.totalorder %s31, 1
      %p306 = por %p304, %p305
      %p308 = scmp.ne.s32.totalorder %s293, %s307
      %p309 = scmp.eq.s32.totalorder %s31, 0
      %p310 = por %p308, %p309
      %s312 = sadd.s32 %s311, 1
      %p315 = scmp.eq.s32.totalorder %s25, 1
      %p316 = scmp.ne.s32.totalorder %s311, %s313
      %p317 = scmp.eq.s32.totalorder %s25, 0
      %p318 = por %p316, %p317
      %p319 = scmp.ne.s32.totalorder %s311, %s313
      %p320 = scmp.eq.s32.totalorder %s30, 1
      %p321 = por %p319, %p320
      %p322 = scmp.ne.s32.totalorder %s313, %s314
      %p323 = scmp.eq.s32.totalorder %s30, 0
      %p324 = por %p322, %p323
      %p325 = scmp.ne.s32.totalorder %s313, %s314
      %p326 = scmp.eq.s32.totalorder %s31, 1
      %p327 = por %p325, %p326
      %p329 = scmp.ne.s32.totalorder %s314, %s328
      %p330 = scmp.eq.s32.totalorder %s31, 0
      %p331 = por %p329, %p330
      %s333 = sadd.s32 %s332, 1
      %p336 = scmp.eq.s32.totalorder %s25, 1
      %p337 = scmp.ne.s32.totalorder %s332, %s334
      %p338 = scmp.eq.s32.totalorder %s25, 0
      %p339 = por %p337, %p338
      %p340 = scmp.ne.s32.totalorder %s332, %s334
      %p341 = scmp.eq.s32.totalorder %s30, 1
      %p342 = por %p340, %p341
      %p343 = scmp.ne.s32.totalorder %s334, %s335
      %p344 = scmp.eq.s32.totalorder %s30, 0
      %p345 = por %p343, %p344
      %p346 = scmp.ne.s32.totalorder %s334, %s335
      %p347 = scmp.eq.s32.totalorder %s31, 1
      %p348 = por %p346, %p347
      %p350 = scmp.ne.s32.totalorder %s335, %s349
      %p351 = scmp.eq.s32.totalorder %s31, 0
      %p352 = por %p350, %p351
      %s354 = sadd.s32 %s353, 1
      %p357 = scmp.eq.s32.totalorder %s25, 1
      %p358 = scmp.ne.s32.totalorder %s353, %s355
      %p359 = scmp.eq.s32.totalorder %s25, 0
      %p360 = por %p358, %p359
      %p361 = scmp.ne.s32.totalorder %s353, %s355
      %p362 = scmp.eq.s32.totalorder %s30, 1
      %p363 = por %p361, %p362
      %p364 = scmp.ne.s32.totalorder %s355, %s356
      %p365 = scmp.eq.s32.totalorder %s30, 0
      %p366 = por %p364, %p365
      %p367 = scmp.ne.s32.totalorder %s355, %s356
      %p368 = scmp.eq.s32.totalorder %s31, 1
      %p369 = por %p367, %p368
      %p371 = scmp.ne.s32.totalorder %s356, %s370
      %p372 = scmp.eq.s32.totalorder %s31, 0
      %p373 = por %p371, %p372
      %s374 = ssub.s32 %s25, %s32
      %p375 = scmp.eq.s32.totalorder %s374, 0
      %s377 = sadd.s32 %s376, 1
      %s378 = scalar_select %p375, %s376, %s377
      %p381 = pneg %p375
      %p382 = scmp.eq.s32.totalorder %s25, 1
      %p383 = por %p381, %p382
      %p384 = scmp.ne.s32.totalorder %s376, %s379
      %p385 = scmp.eq.s32.totalorder %s25, 0
      %p386 = por %p384, %p385
      %p387 = scmp.ne.s32.totalorder %s376, %s379
      %p388 = scmp.eq.s32.totalorder %s30, 1
      %p389 = por %p387, %p388
      %p390 = scmp.ne.s32.totalorder %s379, %s380
      %p391 = scmp.eq.s32.totalorder %s30, 0
      %p392 = por %p390, %p391
      %p393 = scmp.ne.s32.totalorder %s379, %s380
      %p394 = scmp.eq.s32.totalorder %s31, 1
      %p395 = por %p393, %p394
      %p397 = scmp.ne.s32.totalorder %s380, %s396
      %p398 = scmp.eq.s32.totalorder %s31, 0
      %p399 = por %p397, %p398
      %p400 = scmp.le.s32.totalorder 1, %s25
      %p401 = scmp.lt.s32.totalorder %s25, 3
      %p402 = pnand %p400, %p401
      %p403 = pneg %p402
      // Predicated region
      $region9: #{tpu_custom_call.1} parent=5 // pred_check
        _
      $region10: #{tpu_custom_call.1} parent=5 // pred_check_branch
        %405 = sbr.rel (%p402) target = $region12
      $region11: #{tpu_custom_call.1} parent=5 // pred_region
        %s406 = ssub.s32 %s25, 1
        // Predicated region
        $region13: #{tpu_custom_call.1} parent=11 // pred_check
          %p407 = pneg %p72
        $region14: #{tpu_custom_call.1} parent=11 // pred_check_branch
          %409 = sbr.rel (%p407) target = $region16
        $region15: #{tpu_custom_call.1} parent=11 // pred_region
          _
        $region16: #{tpu_custom_call.1} parent=11 // pred_fallthru
          _
        // Predicated region
        $region17: #{tpu_custom_call.1} parent=11 // pred_check
          %p410 = pneg %p93
        $region18: #{tpu_custom_call.1} parent=11 // pred_check_branch
          %412 = sbr.rel (%p410) target = $region20
        $region19: #{tpu_custom_call.1} parent=11 // pred_region
          _
        $region20: #{tpu_custom_call.1} parent=11 // pred_fallthru
          _
        // Predicated region
        $region21: #{tpu_custom_call.1} parent=11 // pred_check
          %p413 = pneg %p114
        $region22: #{tpu_custom_call.1} parent=11 // pred_check_branch
          %415 = sbr.rel (%p413) target = $region24
        $region23: #{tpu_custom_call.1} parent=11 // pred_region
          _
        $region24: #{tpu_custom_call.1} parent=11 // pred_fallthru
          _
        // Predicated region
        $region25: #{tpu_custom_call.1} parent=11 // pred_check
          %p416 = pneg %p135
        $region26: #{tpu_custom_call.1} parent=11 // pred_check_branch
          %418 = sbr.rel (%p416) target = $region28
        $region27: #{tpu_custom_call.1} parent=11 // pred_region
          _
        $region28: #{tpu_custom_call.1} parent=11 // pred_fallthru
          _
        // Predicated region
        $region29: #{tpu_custom_call.1} parent=11 // pred_check
          %p419 = pneg %p156
        $region30: #{tpu_custom_call.1} parent=11 // pred_check_branch
          %421 = sbr.rel (%p419) target = $region32
        $region31: #{tpu_custom_call.1} parent=11 // pred_region
          _
        $region32: #{tpu_custom_call.1} parent=11 // pred_fallthru
          _
        // Predicated region
        $region33: #{tpu_custom_call.1} parent=11 // pred_check
          %p422 = pneg %p177
        $region34: #{tpu_custom_call.1} parent=11 // pred_check_branch
          %424 = sbr.rel (%p422) target = $region36
        $region35: #{tpu_custom_call.1} parent=11 // pred_region
          _
        $region36: #{tpu_custom_call.1} parent=11 // pred_fallthru
          _
        // Predicated region
        $region37: #{tpu_custom_call.1} parent=11 // pred_check
          %p425 = pneg %p198
        $region38: #{tpu_custom_call.1} parent=11 // pred_check_branch
          %427 = sbr.rel (%p425) target = $region40
        $region39: #{tpu_custom_call.1} parent=11 // pred_region
          _
        $region40: #{tpu_custom_call.1} parent=11 // pred_fallthru
          _
        // Predicated region
        $region41: #{tpu_custom_call.1} parent=11 // pred_check
          %p428 = pneg %p219
        $region42: #{tpu_custom_call.1} parent=11 // pred_check_branch
          %430 = sbr.rel (%p428) target = $region44
        $region43: #{tpu_custom_call.1} parent=11 // pred_region
          _
        $region44: #{tpu_custom_call.1} parent=11 // pred_fallthru
          _
        // Predicated region
        $region45: #{tpu_custom_call.1} parent=11 // pred_check
          %p431 = pneg %p240
        $region46: #{tpu_custom_call.1} parent=11 // pred_check_branch
          %433 = sbr.rel (%p431) target = $region48
        $region47: #{tpu_custom_call.1} parent=11 // pred_region
          _
        $region48: #{tpu_custom_call.1} parent=11 // pred_fallthru
          _
        // Predicated region
        $region49: #{tpu_custom_call.1} parent=11 // pred_check
          %p434 = pneg %p261
        $region50: #{tpu_custom_call.1} parent=11 // pred_check_branch
          %436 = sbr.rel (%p434) target = $region52
        $region51: #{tpu_custom_call.1} parent=11 // pred_region
          _
        $region52: #{tpu_custom_call.1} parent=11 // pred_fallthru
          _
        // Predicated region
        $region53: #{tpu_custom_call.1} parent=11 // pred_check
          %p437 = pneg %p282
        $region54: #{tpu_custom_call.1} parent=11 // pred_check_branch
          %439 = sbr.rel (%p437) target = $region56
        $region55: #{tpu_custom_call.1} parent=11 // pred_region
          _
        $region56: #{tpu_custom_call.1} parent=11 // pred_fallthru
          _
        // Predicated region
        $region57: #{tpu_custom_call.1} parent=11 // pred_check
          %p440 = pneg %p303
        $region58: #{tpu_custom_call.1} parent=11 // pred_check_branch
          %442 = sbr.rel (%p440) target = $region60
        $region59: #{tpu_custom_call.1} parent=11 // pred_region
          _
        $region60: #{tpu_custom_call.1} parent=11 // pred_fallthru
          _
        // Predicated region
        $region61: #{tpu_custom_call.1} parent=11 // pred_check
          %p443 = pneg %p324
        $region62: #{tpu_custom_call.1} parent=11 // pred_check_branch
          %445 = sbr.rel (%p443) target = $region64
        $region63: #{tpu_custom_call.1} parent=11 // pred_region
          _
        $region64: #{tpu_custom_call.1} parent=11 // pred_fallthru
          _
        // Predicated region
        $region65: #{tpu_custom_call.1} parent=11 // pred_check
          %p446 = pneg %p345
        $region66: #{tpu_custom_call.1} parent=11 // pred_check_branch
          %448 = sbr.rel (%p446) target = $region68
        $region67: #{tpu_custom_call.1} parent=11 // pred_region
          _
        $region68: #{tpu_custom_call.1} parent=11 // pred_fallthru
          _
        // Predicated region
        $region69: #{tpu_custom_call.1} parent=11 // pred_check
          %p449 = pneg %p366
        $region70: #{tpu_custom_call.1} parent=11 // pred_check_branch
          %451 = sbr.rel (%p449) target = $region72
        $region71: #{tpu_custom_call.1} parent=11 // pred_region
          _
        $region72: #{tpu_custom_call.1} parent=11 // pred_fallthru
          _
      $region12: #{tpu_custom_call.1} parent=5 // pred_fallthru
        _
      %p452 = scmp.lt.s32.totalorder %s25, 2
      // Predicated region
      $region73: #{tpu_custom_call.1} parent=5 // pred_check
        %p453 = pneg %p452
      $region74: #{tpu_custom_call.1} parent=5 // pred_check_branch
        %455 = sbr.rel (%p453) target = $region76
      $region75: #{tpu_custom_call.1} parent=5 // pred_region
        // Predicated region
        $region77: #{tpu_custom_call.1} parent=75 // pred_check
          %p456 = pneg %p45
        $region78: #{tpu_custom_call.1} parent=75 // pred_check_branch
          %458 = sbr.rel (%p456) target = $region80
        $region79: #{tpu_custom_call.1} parent=75 // pred_region
          %s459 = smul.u32 32, %s25
          %p460 = scmp.lt.s32.totalorder %s459, 63
          %s461 = scalar_select %p460, %s459, 63
          %s462 = smul.addr %s461, 8
          %s463 = scalar_lea.vmem %s0, %s462
          %s464 = smul.u32 32, %s25
        $region80: #{tpu_custom_call.1} parent=75 // pred_fallthru
          _
      $region76: #{tpu_custom_call.1} parent=5 // pred_fallthru
        _
      %p465 = scmp.le.s32.totalorder 1, %s25
      %p466 = scmp.lt.s32.totalorder %s25, 3
      %p467 = pnand %p465, %p466
      %p468 = pneg %p467
      // Predicated region
      $region81: #{tpu_custom_call.1} parent=5 // pred_check
        _
      $region82: #{tpu_custom_call.1} parent=5 // pred_check_branch
        %470 = sbr.rel (%p467) target = $region84
      $region83: #{tpu_custom_call.1} parent=5 // pred_region
        %s471 = ssub.s32 %s25, 1
        %s472 = smul.u32 32, %s30
        %p473 = scmp.lt.s32.totalorder %s472, 63
        %s474 = scalar_select %p473, %s472, 63
        %s475 = smul.addr %s474, 8
        %s476 = scalar_lea.vmem %s0, %s475
        %p477 = pneg %p51
        %p478 = pneg %p48
        %p479 = pneg %p72
        %p480 = pneg %p69
        %p481 = pneg %p93
        %p482 = pneg %p90
        %p483 = pneg %p114
        %p484 = pneg %p111
        %p485 = pneg %p135
        %p486 = pneg %p132
        %p487 = pneg %p156
        %p488 = pneg %p153
        %p489 = pneg %p177
        %p490 = pneg %p174
        %p491 = pneg %p198
        %p492 = pneg %p195
        %p493 = pneg %p219
        %p494 = pneg %p216
        %p495 = pneg %p240
        %p496 = pneg %p237
        %p497 = pneg %p261
        %p498 = pneg %p258
        %p499 = pneg %p282
        %p500 = pneg %p279
        %p501 = pneg %p303
        %p502 = pneg %p300
        %p503 = pneg %p324
        %p504 = pneg %p321
        %p505 = pneg %p345
        %p506 = pneg %p342
        %p507 = pneg %p366
        %p508 = pneg %p363
        %p509 = pneg %p392
        %p510 = pneg %p389
        %s511 = sand.u32 %s379, 1
        %s512 = scalar_lea.sflag [#allocation3], %s511
        %s513 = sand.u32 %s379, 1
        %s514 = smul.addr %s513, 512
        %s515 = scalar_lea.vmem [#allocation2], %s514
        %s516 = smul.u32 32, %s30
        %p517 = scmp.lt.s32.totalorder %s516, 63
        %s518 = scalar_select %p517, %s516, 63
        %s519 = smul.addr %s518, 8
        %s520 = scalar_lea.vmem %s0, %s519
        %s521 = smul.u32 32, %s30
        %s522 = smul.u32 32, %s30
        %v523 = vld [vmem:[%s1] sm:$0x1]
        %v524 = vld [vmem:[%s2] sm:$0x1]
        %v525 = vld [vmem:[%s3] sm:$0xff]
        %v526 = vld [vmem:[%s4] sm:$0xff]
        %v527 = vld [vmem:[%s5] sm:$0xff]
        %v528 = vld [vmem:[%s6] sm:$0xff]
        %v529 = vld [vmem:[%s6 + $0x8] sm:$0xff]
        %v530 = vld [vmem:[%s6 + $0x10] sm:$0xff]
        %v531 = vld [vmem:[%s6 + $0x18] sm:$0xff]
        %v532 = vld [vmem:[%s7] sm:$0x1]
        %v533 = vld [vmem:[%s8] sm:$0x1]
        %v534 = vld [vmem:[%s9] sm:$0x1]
        %v535 = vld [vmem:[%s520] sm:$0xff]
        %v536 = vld [vmem:[%s520 + $0x8] sm:$0xff]
        %v537 = vld [vmem:[%s520 + $0x10] sm:$0xff]
        %v538 = vld [vmem:[%s520 + $0x18] sm:$0xff]
        %v539 = vld [vmem:[%s520 + $0x20] sm:$0xff]
        %v540 = vld [vmem:[%s520 + $0x28] sm:$0xff]
        %v541 = vld [vmem:[%s520 + $0x30] sm:$0xff]
        %v542 = vld [vmem:[%s520 + $0x38] sm:$0xff]
        %v543 = vld [vmem:[%s520 + $0x40] sm:$0xff]
        %v544 = vld [vmem:[%s520 + $0x48] sm:$0xff]
        %v545 = vld [vmem:[%s520 + $0x50] sm:$0xff]
        %v546 = vld [vmem:[%s520 + $0x58] sm:$0xff]
        %v547 = vld [vmem:[%s520 + $0x60] sm:$0xff]
        %v548 = vld [vmem:[%s520 + $0x68] sm:$0xff]
        %v549 = vld [vmem:[%s520 + $0x70] sm:$0xff]
        %v550 = vld [vmem:[%s520 + $0x78] sm:$0xff]
        %v551 = vld [vmem:[%s520 + $0x80] sm:$0xff]
        %v552 = vld [vmem:[%s520 + $0x88] sm:$0xff]
        %v553 = vld [vmem:[%s520 + $0x90] sm:$0xff]
        %v554 = vld [vmem:[%s520 + $0x98] sm:$0xff]
        %v555 = vld [vmem:[%s520 + $0xa0] sm:$0xff]
        %v556 = vld [vmem:[%s520 + $0xa8] sm:$0xff]
        %v557 = vld [vmem:[%s520 + $0xb0] sm:$0xff]
        %v558 = vld [vmem:[%s520 + $0xb8] sm:$0xff]
        %v559 = vld [vmem:[%s520 + $0xc0] sm:$0xff]
        %v560 = vld [vmem:[%s520 + $0xc8] sm:$0xff]
        %v561 = vld [vmem:[%s520 + $0xd0] sm:$0xff]
        %v562 = vld [vmem:[%s520 + $0xd8] sm:$0xff]
        %v563 = vld [vmem:[%s520 + $0xe0] sm:$0xff]
        %v564 = vld [vmem:[%s520 + $0xe8] sm:$0xff]
        %v565 = vld [vmem:[%s520 + $0xf0] sm:$0xff]
        %v566 = vld [vmem:[%s520 + $0xf8] sm:$0xff]
        %v567 = vlaneseq
        %v568 = vand.u32 %v567, 127
        %vm569 = vcmp.lt.s32.totalorder %v568, 16
        %v570 = vsel %vm569, %v535, 0.0
        %v571 = vsel %vm569, %v536, 0.0
        %v572 = vsel %vm569, %v537, 0.0
        %v573 = vsel %vm569, %v538, 0.0
        %v574 = vsel %vm569, %v539, 0.0
        %v575 = vsel %vm569, %v540, 0.0
        %v576 = vsel %vm569, %v541, 0.0
        %v577 = vsel %vm569, %v542, 0.0
        %v578 = vsel %vm569, %v543, 0.0
        %v579 = vsel %vm569, %v544, 0.0
        %v580 = vsel %vm569, %v545, 0.0
        %v581 = vsel %vm569, %v546, 0.0
        %v582 = vsel %vm569, %v547, 0.0
        %v583 = vsel %vm569, %v548, 0.0
        %v584 = vsel %vm569, %v549, 0.0
        %v585 = vsel %vm569, %v550, 0.0
        %v586 = vsel %vm569, %v551, 0.0
        %v587 = vsel %vm569, %v552, 0.0
        %v588 = vsel %vm569, %v553, 0.0
        %v589 = vsel %vm569, %v554, 0.0
        %v590 = vsel %vm569, %v555, 0.0
        %v591 = vsel %vm569, %v556, 0.0
        %v592 = vsel %vm569, %v557, 0.0
        %v593 = vsel %vm569, %v558, 0.0
        %v594 = vsel %vm569, %v559, 0.0
        %v595 = vsel %vm569, %v560, 0.0
        %v596 = vsel %vm569, %v561, 0.0
        %v597 = vsel %vm569, %v562, 0.0
        %v598 = vsel %vm569, %v563, 0.0
        %v599 = vsel %vm569, %v564, 0.0
        %v600 = vsel %vm569, %v565, 0.0
        %v601 = vsel %vm569, %v566, 0.0
        %vm602 = vcmask 261120
        %v603 = vsel %vm602, %v570, 0.0
        %604 = vadd.xlane.f32.xlu0 %v603
        %v605 = vpop.xlane.xlu0 %604
        %v606 = vsel %vm602, %v571, 0.0
        %607 = vadd.xlane.f32.xlu0 %v606
        %v608 = vpop.xlane.xlu0 %607
        %v609 = vsel %vm602, %v572, 0.0
        %610 = vadd.xlane.f32.xlu0 %v609
        %v611 = vpop.xlane.xlu0 %610
        %v612 = vsel %vm602, %v573, 0.0
        %613 = vadd.xlane.f32.xlu0 %v612
        %v614 = vpop.xlane.xlu0 %613
        %v615 = vsel %vm602, %v574, 0.0
        %616 = vadd.xlane.f32.xlu0 %v615
        %v617 = vpop.xlane.xlu0 %616
        %v618 = vsel %vm602, %v575, 0.0
        %619 = vadd.xlane.f32.xlu0 %v618
        %v620 = vpop.xlane.xlu0 %619
        %v621 = vsel %vm602, %v576, 0.0
        %622 = vadd.xlane.f32.xlu0 %v621
        %v623 = vpop.xlane.xlu0 %622
        %v624 = vsel %vm602, %v577, 0.0
        %625 = vadd.xlane.f32.xlu0 %v624
        %v626 = vpop.xlane.xlu0 %625
        %v627 = vsel %vm602, %v578, 0.0
        %628 = vadd.xlane.f32.xlu0 %v627
        %v629 = vpop.xlane.xlu0 %628
        %v630 = vsel %vm602, %v579, 0.0
        %631 = vadd.xlane.f32.xlu0 %v630
        %v632 = vpop.xlane.xlu0 %631
        %v633 = vsel %vm602, %v580, 0.0
        %634 = vadd.xlane.f32.xlu0 %v633
        %v635 = vpop.xlane.xlu0 %634
        %v636 = vsel %vm602, %v581, 0.0
        %637 = vadd.xlane.f32.xlu0 %v636
        %v638 = vpop.xlane.xlu0 %637
        %v639 = vsel %vm602, %v582, 0.0
        %640 = vadd.xlane.f32.xlu0 %v639
        %v641 = vpop.xlane.xlu0 %640
        %v642 = vsel %vm602, %v583, 0.0
        %643 = vadd.xlane.f32.xlu0 %v642
        %v644 = vpop.xlane.xlu0 %643
        %v645 = vsel %vm602, %v584, 0.0
        %646 = vadd.xlane.f32.xlu0 %v645
        %v647 = vpop.xlane.xlu0 %646
        %v648 = vsel %vm602, %v585, 0.0
        %649 = vadd.xlane.f32.xlu0 %v648
        %v650 = vpop.xlane.xlu0 %649
        %v651 = vsel %vm602, %v586, 0.0
        %652 = vadd.xlane.f32.xlu0 %v651
        %v653 = vpop.xlane.xlu0 %652
        %v654 = vsel %vm602, %v587, 0.0
        %655 = vadd.xlane.f32.xlu0 %v654
        %v656 = vpop.xlane.xlu0 %655
        %v657 = vsel %vm602, %v588, 0.0
        %658 = vadd.xlane.f32.xlu0 %v657
        %v659 = vpop.xlane.xlu0 %658
        %v660 = vsel %vm602, %v589, 0.0
        %661 = vadd.xlane.f32.xlu0 %v660
        %v662 = vpop.xlane.xlu0 %661
        %v663 = vsel %vm602, %v590, 0.0
        %664 = vadd.xlane.f32.xlu0 %v663
        %v665 = vpop.xlane.xlu0 %664
        %v666 = vsel %vm602, %v591, 0.0
        %667 = vadd.xlane.f32.xlu0 %v666
        %v668 = vpop.xlane.xlu0 %667
        %v669 = vsel %vm602, %v592, 0.0
        %670 = vadd.xlane.f32.xlu0 %v669
        %v671 = vpop.xlane.xlu0 %670
        %v672 = vsel %vm602, %v593, 0.0
        %673 = vadd.xlane.f32.xlu0 %v672
        %v674 = vpop.xlane.xlu0 %673
        %v675 = vsel %vm602, %v594, 0.0
        %676 = vadd.xlane.f32.xlu0 %v675
        %v677 = vpop.xlane.xlu0 %676
        %v678 = vsel %vm602, %v595, 0.0
        %679 = vadd.xlane.f32.xlu0 %v678
        %v680 = vpop.xlane.xlu0 %679
        %v681 = vsel %vm602, %v596, 0.0
        %682 = vadd.xlane.f32.xlu0 %v681
        %v683 = vpop.xlane.xlu0 %682
        %v684 = vsel %vm602, %v597, 0.0
        %685 = vadd.xlane.f32.xlu0 %v684
        %v686 = vpop.xlane.xlu0 %685
        %v687 = vsel %vm602, %v598, 0.0
        %688 = vadd.xlane.f32.xlu0 %v687
        %v689 = vpop.xlane.xlu0 %688
        %v690 = vsel %vm602, %v599, 0.0
        %691 = vadd.xlane.f32.xlu0 %v690
        %v692 = vpop.xlane.xlu0 %691
        %v693 = vsel %vm602, %v600, 0.0
        %694 = vadd.xlane.f32.xlu0 %v693
        %v695 = vpop.xlane.xlu0 %694
        %v696 = vsel %vm602, %v601, 0.0
        %697 = vadd.xlane.f32.xlu0 %v696
        %v698 = vpop.xlane.xlu0 %697
        %v699 = vmul.f32 %v605, 0.0625
        %v700 = vmul.f32 %v608, 0.0625
        %v701 = vmul.f32 %v611, 0.0625
        %v702 = vmul.f32 %v614, 0.0625
        %v703 = vmul.f32 %v617, 0.0625
        %v704 = vmul.f32 %v620, 0.0625
        %v705 = vmul.f32 %v623, 0.0625
        %v706 = vmul.f32 %v626, 0.0625
        %v707 = vmul.f32 %v629, 0.0625
        %v708 = vmul.f32 %v632, 0.0625
        %v709 = vmul.f32 %v635, 0.0625
        %v710 = vmul.f32 %v638, 0.0625
        %v711 = vmul.f32 %v641, 0.0625
        %v712 = vmul.f32 %v644, 0.0625
        %v713 = vmul.f32 %v647, 0.0625
        %v714 = vmul.f32 %v650, 0.0625
        %v715 = vmul.f32 %v653, 0.0625
        %v716 = vmul.f32 %v656, 0.0625
        %v717 = vmul.f32 %v659, 0.0625
        %v718 = vmul.f32 %v662, 0.0625
        %v719 = vmul.f32 %v665, 0.0625
        %v720 = vmul.f32 %v668, 0.0625
        %v721 = vmul.f32 %v671, 0.0625
        %v722 = vmul.f32 %v674, 0.0625
        %v723 = vmul.f32 %v677, 0.0625
        %v724 = vmul.f32 %v680, 0.0625
        %v725 = vmul.f32 %v683, 0.0625
        %v726 = vmul.f32 %v686, 0.0625
        %v727 = vmul.f32 %v689, 0.0625
        %v728 = vmul.f32 %v692, 0.0625
        %v729 = vmul.f32 %v695, 0.0625
        %v730 = vmul.f32 %v698, 0.0625
        %v731 = vsel %vm569, %v535, -3.4028235e+38
        %v732 = vsel %vm569, %v536, -3.4028235e+38
        %v733 = vsel %vm569, %v537, -3.4028235e+38
        %v734 = vsel %vm569, %v538, -3.4028235e+38
        %v735 = vsel %vm569, %v539, -3.4028235e+38
        %v736 = vsel %vm569, %v540, -3.4028235e+38
        %v737 = vsel %vm569, %v541, -3.4028235e+38
        %v738 = vsel %vm569, %v542, -3.4028235e+38
        %v739 = vsel %vm569, %v543, -3.4028235e+38
        %v740 = vsel %vm569, %v544, -3.4028235e+38
        %v741 = vsel %vm569, %v545, -3.4028235e+38
        %v742 = vsel %vm569, %v546, -3.4028235e+38
        %v743 = vsel %vm569, %v547, -3.4028235e+38
        %v744 = vsel %vm569, %v548, -3.4028235e+38
        %v745 = vsel %vm569, %v549, -3.4028235e+38
        %v746 = vsel %vm569, %v550, -3.4028235e+38
        %v747 = vsel %vm569, %v551, -3.4028235e+38
        %v748 = vsel %vm569, %v552, -3.4028235e+38
        %v749 = vsel %vm569, %v553, -3.4028235e+38
        %v750 = vsel %vm569, %v554, -3.4028235e+38
        %v751 = vsel %vm569, %v555, -3.4028235e+38
        %v752 = vsel %vm569, %v556, -3.4028235e+38
        %v753 = vsel %vm569, %v557, -3.4028235e+38
        %v754 = vsel %vm569, %v558, -3.4028235e+38
        %v755 = vsel %vm569, %v559, -3.4028235e+38
        %v756 = vsel %vm569, %v560, -3.4028235e+38
        %v757 = vsel %vm569, %v561, -3.4028235e+38
        %v758 = vsel %vm569, %v562, -3.4028235e+38
        %v759 = vsel %vm569, %v563, -3.4028235e+38
        %v760 = vsel %vm569, %v564, -3.4028235e+38
        %v761 = vsel %vm569, %v565, -3.4028235e+38
        %v762 = vsel %vm569, %v566, -3.4028235e+38
        %v763 = vsel %vm602, %v731, -inf
        %764 = vmax.xlane.f32.xlu0 %v763
        %v765 = vpop.xlane.xlu0 %764
        %v766 = vsel %vm602, %v732, -inf
        %767 = vmax.xlane.f32.xlu0 %v766
        %v768 = vpop.xlane.xlu0 %767
        %v769 = vsel %vm602, %v733, -inf
        %770 = vmax.xlane.f32.xlu0 %v769
        %v771 = vpop.xlane.xlu0 %770
        %v772 = vsel %vm602, %v734, -inf
        %773 = vmax.xlane.f32.xlu0 %v772
        %v774 = vpop.xlane.xlu0 %773
        %v775 = vsel %vm602, %v735, -inf
        %776 = vmax.xlane.f32.xlu0 %v775
        %v777 = vpop.xlane.xlu0 %776
        %v778 = vsel %vm602, %v736, -inf
        %779 = vmax.xlane.f32.xlu0 %v778
        %v780 = vpop.xlane.xlu0 %779
        %v781 = vsel %vm602, %v737, -inf
        %782 = vmax.xlane.f32.xlu0 %v781
        %v783 = vpop.xlane.xlu0 %782
        %v784 = vsel %vm602, %v738, -inf
        %785 = vmax.xlane.f32.xlu0 %v784
        %v786 = vpop.xlane.xlu0 %785
        %v787 = vsel %vm602, %v739, -inf
        %788 = vmax.xlane.f32.xlu0 %v787
        %v789 = vpop.xlane.xlu0 %788
        %v790 = vsel %vm602, %v740, -inf
        %791 = vmax.xlane.f32.xlu0 %v790
        %v792 = vpop.xlane.xlu0 %791
        %v793 = vsel %vm602, %v741, -inf
        %794 = vmax.xlane.f32.xlu0 %v793
        %v795 = vpop.xlane.xlu0 %794
        %v796 = vsel %vm602, %v742, -inf
        %797 = vmax.xlane.f32.xlu0 %v796
        %v798 = vpop.xlane.xlu0 %797
        %v799 = vsel %vm602, %v743, -inf
        %800 = vmax.xlane.f32.xlu0 %v799
        %v801 = vpop.xlane.xlu0 %800
        %v802 = vsel %vm602, %v744, -inf
        %803 = vmax.xlane.f32.xlu0 %v802
        %v804 = vpop.xlane.xlu0 %803
        %v805 = vsel %vm602, %v745, -inf
        %806 = vmax.xlane.f32.xlu0 %v805
        %v807 = vpop.xlane.xlu0 %806
        %v808 = vsel %vm602, %v746, -inf
        %809 = vmax.xlane.f32.xlu0 %v808
        %v810 = vpop.xlane.xlu0 %809
        %v811 = vsel %vm602, %v747, -inf
        %812 = vmax.xlane.f32.xlu0 %v811
        %v813 = vpop.xlane.xlu0 %812
        %v814 = vsel %vm602, %v748, -inf
        %815 = vmax.xlane.f32.xlu0 %v814
        %v816 = vpop.xlane.xlu0 %815
        %v817 = vsel %vm602, %v749, -inf
        %818 = vmax.xlane.f32.xlu0 %v817
        %v819 = vpop.xlane.xlu0 %818
        %v820 = vsel %vm602, %v750, -inf
        %821 = vmax.xlane.f32.xlu0 %v820
        %v822 = vpop.xlane.xlu0 %821
        %v823 = vsel %vm602, %v751, -inf
        %824 = vmax.xlane.f32.xlu0 %v823
        %v825 = vpop.xlane.xlu0 %824
        %v826 = vsel %vm602, %v752, -inf
        %827 = vmax.xlane.f32.xlu0 %v826
        %v828 = vpop.xlane.xlu0 %827
        %v829 = vsel %vm602, %v753, -inf
        %830 = vmax.xlane.f32.xlu0 %v829
        %v831 = vpop.xlane.xlu0 %830
        %v832 = vsel %vm602, %v754, -inf
        %833 = vmax.xlane.f32.xlu0 %v832
        %v834 = vpop.xlane.xlu0 %833
        %v835 = vsel %vm602, %v755, -inf
        %836 = vmax.xlane.f32.xlu0 %v835
        %v837 = vpop.xlane.xlu0 %836
        %v838 = vsel %vm602, %v756, -inf
        %839 = vmax.xlane.f32.xlu0 %v838
        %v840 = vpop.xlane.xlu0 %839
        %v841 = vsel %vm602, %v757, -inf
        %842 = vmax.xlane.f32.xlu0 %v841
        %v843 = vpop.xlane.xlu0 %842
        %v844 = vsel %vm602, %v758, -inf
        %845 = vmax.xlane.f32.xlu0 %v844
        %v846 = vpop.xlane.xlu0 %845
        %v847 = vsel %vm602, %v759, -inf
        %848 = vmax.xlane.f32.xlu0 %v847
        %v849 = vpop.xlane.xlu0 %848
        %v850 = vsel %vm602, %v760, -inf
        %851 = vmax.xlane.f32.xlu0 %v850
        %v852 = vpop.xlane.xlu0 %851
        %v853 = vsel %vm602, %v761, -inf
        %854 = vmax.xlane.f32.xlu0 %v853
        %v855 = vpop.xlane.xlu0 %854
        %v856 = vsel %vm602, %v762, -inf
        %857 = vmax.xlane.f32.xlu0 %v856
        %v858 = vpop.xlane.xlu0 %857
        %v859 = vsel %vm569, %v535, 3.4028235e+38
        %v860 = vsel %vm569, %v536, 3.4028235e+38
        %v861 = vsel %vm569, %v537, 3.4028235e+38
        %v862 = vsel %vm569, %v538, 3.4028235e+38
        %v863 = vsel %vm569, %v539, 3.4028235e+38
        %v864 = vsel %vm569, %v540, 3.4028235e+38
        %v865 = vsel %vm569, %v541, 3.4028235e+38
        %v866 = vsel %vm569, %v542, 3.4028235e+38
        %v867 = vsel %vm569, %v543, 3.4028235e+38
        %v868 = vsel %vm569, %v544, 3.4028235e+38
        %v869 = vsel %vm569, %v545, 3.4028235e+38
        %v870 = vsel %vm569, %v546, 3.4028235e+38
        %v871 = vsel %vm569, %v547, 3.4028235e+38
        %v872 = vsel %vm569, %v548, 3.4028235e+38
        %v873 = vsel %vm569, %v549, 3.4028235e+38
        %v874 = vsel %vm569, %v550, 3.4028235e+38
        %v875 = vsel %vm569, %v551, 3.4028235e+38
        %v876 = vsel %vm569, %v552, 3.4028235e+38
        %v877 = vsel %vm569, %v553, 3.4028235e+38
        %v878 = vsel %vm569, %v554, 3.4028235e+38
        %v879 = vsel %vm569, %v555, 3.4028235e+38
        %v880 = vsel %vm569, %v556, 3.4028235e+38
        %v881 = vsel %vm569, %v557, 3.4028235e+38
        %v882 = vsel %vm569, %v558, 3.4028235e+38
        %v883 = vsel %vm569, %v559, 3.4028235e+38
        %v884 = vsel %vm569, %v560, 3.4028235e+38
        %v885 = vsel %vm569, %v561, 3.4028235e+38
        %v886 = vsel %vm569, %v562, 3.4028235e+38
        %v887 = vsel %vm569, %v563, 3.4028235e+38
        %v888 = vsel %vm569, %v564, 3.4028235e+38
        %v889 = vsel %vm569, %v565, 3.4028235e+38
        %v890 = vsel %vm569, %v566, 3.4028235e+38
        %v891 = vsel %vm602, %v859, inf
        %892 = vmin.xlane.f32.xlu0 %v891
        %v893 = vpop.xlane.xlu0 %892
        %v894 = vsel %vm602, %v860, inf
        %895 = vmin.xlane.f32.xlu0 %v894
        %v896 = vpop.xlane.xlu0 %895
        %v897 = vsel %vm602, %v861, inf
        %898 = vmin.xlane.f32.xlu0 %v897
        %v899 = vpop.xlane.xlu0 %898
        %v900 = vsel %vm602, %v862, inf
        %901 = vmin.xlane.f32.xlu0 %v900
        %v902 = vpop.xlane.xlu0 %901
        %v903 = vsel %vm602, %v863, inf
        %904 = vmin.xlane.f32.xlu0 %v903
        %v905 = vpop.xlane.xlu0 %904
        %v906 = vsel %vm602, %v864, inf
        %907 = vmin.xlane.f32.xlu0 %v906
        %v908 = vpop.xlane.xlu0 %907
        %v909 = vsel %vm602, %v865, inf
        %910 = vmin.xlane.f32.xlu0 %v909
        %v911 = vpop.xlane.xlu0 %910
        %v912 = vsel %vm602, %v866, inf
        %913 = vmin.xlane.f32.xlu0 %v912
        %v914 = vpop.xlane.xlu0 %913
        %v915 = vsel %vm602, %v867, inf
        %916 = vmin.xlane.f32.xlu0 %v915
        %v917 = vpop.xlane.xlu0 %916
        %v918 = vsel %vm602, %v868, inf
        %919 = vmin.xlane.f32.xlu0 %v918
        %v920 = vpop.xlane.xlu0 %919
        %v921 = vsel %vm602, %v869, inf
        %922 = vmin.xlane.f32.xlu0 %v921
        %v923 = vpop.xlane.xlu0 %922
        %v924 = vsel %vm602, %v870, inf
        %925 = vmin.xlane.f32.xlu0 %v924
        %v926 = vpop.xlane.xlu0 %925
        %v927 = vsel %vm602, %v871, inf
        %928 = vmin.xlane.f32.xlu0 %v927
        %v929 = vpop.xlane.xlu0 %928
        %v930 = vsel %vm602, %v872, inf
        %931 = vmin.xlane.f32.xlu0 %v930
        %v932 = vpop.xlane.xlu0 %931
        %v933 = vsel %vm602, %v873, inf
        %934 = vmin.xlane.f32.xlu0 %v933
        %v935 = vpop.xlane.xlu0 %934
        %v936 = vsel %vm602, %v874, inf
        %937 = vmin.xlane.f32.xlu0 %v936
        %v938 = vpop.xlane.xlu0 %937
        %v939 = vsel %vm602, %v875, inf
        %940 = vmin.xlane.f32.xlu0 %v939
        %v941 = vpop.xlane.xlu0 %940
        %v942 = vsel %vm602, %v876, inf
        %943 = vmin.xlane.f32.xlu0 %v942
        %v944 = vpop.xlane.xlu0 %943
        %v945 = vsel %vm602, %v877, inf
        %946 = vmin.xlane.f32.xlu0 %v945
        %v947 = vpop.xlane.xlu0 %946
        %v948 = vsel %vm602, %v878, inf
        %949 = vmin.xlane.f32.xlu0 %v948
        %v950 = vpop.xlane.xlu0 %949
        %v951 = vsel %vm602, %v879, inf
        %952 = vmin.xlane.f32.xlu0 %v951
        %v953 = vpop.xlane.xlu0 %952
        %v954 = vsel %vm602, %v880, inf
        %955 = vmin.xlane.f32.xlu0 %v954
        %v956 = vpop.xlane.xlu0 %955
        %v957 = vsel %vm602, %v881, inf
        %958 = vmin.xlane.f32.xlu0 %v957
        %v959 = vpop.xlane.xlu0 %958
        %v960 = vsel %vm602, %v882, inf
        %961 = vmin.xlane.f32.xlu0 %v960
        %v962 = vpop.xlane.xlu0 %961
        %v963 = vsel %vm602, %v883, inf
        %964 = vmin.xlane.f32.xlu0 %v963
        %v965 = vpop.xlane.xlu0 %964
        %v966 = vsel %vm602, %v884, inf
        %967 = vmin.xlane.f32.xlu0 %v966
        %v968 = vpop.xlane.xlu0 %967
        %v969 = vsel %vm602, %v885, inf
        %970 = vmin.xlane.f32.xlu0 %v969
        %v971 = vpop.xlane.xlu0 %970
        %v972 = vsel %vm602, %v886, inf
        %973 = vmin.xlane.f32.xlu0 %v972
        %v974 = vpop.xlane.xlu0 %973
        %v975 = vsel %vm602, %v887, inf
        %976 = vmin.xlane.f32.xlu0 %v975
        %v977 = vpop.xlane.xlu0 %976
        %v978 = vsel %vm602, %v888, inf
        %979 = vmin.xlane.f32.xlu0 %v978
        %v980 = vpop.xlane.xlu0 %979
        %v981 = vsel %vm602, %v889, inf
        %982 = vmin.xlane.f32.xlu0 %v981
        %v983 = vpop.xlane.xlu0 %982
        %v984 = vsel %vm602, %v890, inf
        %985 = vmin.xlane.f32.xlu0 %v984
        %v986 = vpop.xlane.xlu0 %985
        %v988 = vlaneseq
        %v989 = vshrl.u32 %v988, 7
        %v990 = vsub.s32 0, %v989
        %v991 = vrot.slane %v523, %v990
        %v993 = vmul.f32 %v699, %v991
        %v994 = vmul.f32 %v700, %v991
        %v995 = vmul.f32 %v701, %v991
        %v996 = vmul.f32 %v702, %v991
        %v997 = vmul.f32 %v703, %v991
        %v998 = vmul.f32 %v704, %v991
        %v999 = vmul.f32 %v705, %v991
        %v1000 = vmul.f32 %v706, %v991
        %v1001 = vmul.f32 %v707, %v991
        %v1002 = vmul.f32 %v708, %v991
        %v1003 = vmul.f32 %v709, %v991
        %v1004 = vmul.f32 %v710, %v991
        %v1005 = vmul.f32 %v711, %v991
        %v1006 = vmul.f32 %v712, %v991
        %v1007 = vmul.f32 %v713, %v991
        %v1008 = vmul.f32 %v714, %v991
        %v1009 = vmul.f32 %v715, %v991
        %v1010 = vmul.f32 %v716, %v991
        %v1011 = vmul.f32 %v717, %v991
        %v1012 = vmul.f32 %v718, %v991
        %v1013 = vmul.f32 %v719, %v991
        %v1014 = vmul.f32 %v720, %v991
        %v1015 = vmul.f32 %v721, %v991
        %v1016 = vmul.f32 %v722, %v991
        %v1017 = vmul.f32 %v723, %v991
        %v1018 = vmul.f32 %v724, %v991
        %v1019 = vmul.f32 %v725, %v991
        %v1020 = vmul.f32 %v726, %v991
        %v1021 = vmul.f32 %v727, %v991
        %v1022 = vmul.f32 %v728, %v991
        %v1023 = vmul.f32 %v729, %v991
        %v1024 = vmul.f32 %v730, %v991
        %v1026 = vlaneseq
        %v1027 = vshrl.u32 %v1026, 7
        %v1028 = vsub.s32 0, %v1027
        %v1029 = vrot.slane %v524, %v1028
        %v1031 = vadd.f32 %v993, %v1029
        %v1032 = vadd.f32 %v994, %v1029
        %v1033 = vadd.f32 %v995, %v1029
        %v1034 = vadd.f32 %v996, %v1029
        %v1035 = vadd.f32 %v997, %v1029
        %v1036 = vadd.f32 %v998, %v1029
        %v1037 = vadd.f32 %v999, %v1029
        %v1038 = vadd.f32 %v1000, %v1029
        %v1039 = vadd.f32 %v1001, %v1029
        %v1040 = vadd.f32 %v1002, %v1029
        %v1041 = vadd.f32 %v1003, %v1029
        %v1042 = vadd.f32 %v1004, %v1029
        %v1043 = vadd.f32 %v1005, %v1029
        %v1044 = vadd.f32 %v1006, %v1029
        %v1045 = vadd.f32 %v1007, %v1029
        %v1046 = vadd.f32 %v1008, %v1029
        %v1047 = vadd.f32 %v1009, %v1029
        %v1048 = vadd.f32 %v1010, %v1029
        %v1049 = vadd.f32 %v1011, %v1029
        %v1050 = vadd.f32 %v1012, %v1029
        %v1051 = vadd.f32 %v1013, %v1029
        %v1052 = vadd.f32 %v1014, %v1029
        %v1053 = vadd.f32 %v1015, %v1029
        %v1054 = vadd.f32 %v1016, %v1029
        %v1055 = vadd.f32 %v1017, %v1029
        %v1056 = vadd.f32 %v1018, %v1029
        %v1057 = vadd.f32 %v1019, %v1029
        %v1058 = vadd.f32 %v1020, %v1029
        %v1059 = vadd.f32 %v1021, %v1029
        %v1060 = vadd.f32 %v1022, %v1029
        %v1061 = vadd.f32 %v1023, %v1029
        %v1062 = vadd.f32 %v1024, %v1029
        %v1063 = vmul.f32 %v765, %v991
        %v1064 = vmul.f32 %v768, %v991
        %v1065 = vmul.f32 %v771, %v991
        %v1066 = vmul.f32 %v774, %v991
        %v1067 = vmul.f32 %v777, %v991
        %v1068 = vmul.f32 %v780, %v991
        %v1069 = vmul.f32 %v783, %v991
        %v1070 = vmul.f32 %v786, %v991
        %v1071 = vmul.f32 %v789, %v991
        %v1072 = vmul.f32 %v792, %v991
        %v1073 = vmul.f32 %v795, %v991
        %v1074 = vmul.f32 %v798, %v991
        %v1075 = vmul.f32 %v801, %v991
        %v1076 = vmul.f32 %v804, %v991
        %v1077 = vmul.f32 %v807, %v991
        %v1078 = vmul.f32 %v810, %v991
        %v1079 = vmul.f32 %v813, %v991
        %v1080 = vmul.f32 %v816, %v991
        %v1081 = vmul.f32 %v819, %v991
        %v1082 = vmul.f32 %v822, %v991
        %v1083 = vmul.f32 %v825, %v991
        %v1084 = vmul.f32 %v828, %v991
        %v1085 = vmul.f32 %v831, %v991
        %v1086 = vmul.f32 %v834, %v991
        %v1087 = vmul.f32 %v837, %v991
        %v1088 = vmul.f32 %v840, %v991
        %v1089 = vmul.f32 %v843, %v991
        %v1090 = vmul.f32 %v846, %v991
        %v1091 = vmul.f32 %v849, %v991
        %v1092 = vmul.f32 %v852, %v991
        %v1093 = vmul.f32 %v855, %v991
        %v1094 = vmul.f32 %v858, %v991
        %v1095 = vmul.f32 %v893, %v991
        %v1096 = vmul.f32 %v896, %v991
        %v1097 = vmul.f32 %v899, %v991
        %v1098 = vmul.f32 %v902, %v991
        %v1099 = vmul.f32 %v905, %v991
        %v1100 = vmul.f32 %v908, %v991
        %v1101 = vmul.f32 %v911, %v991
        %v1102 = vmul.f32 %v914, %v991
        %v1103 = vmul.f32 %v917, %v991
        %v1104 = vmul.f32 %v920, %v991
        %v1105 = vmul.f32 %v923, %v991
        %v1106 = vmul.f32 %v926, %v991
        %v1107 = vmul.f32 %v929, %v991
        %v1108 = vmul.f32 %v932, %v991
        %v1109 = vmul.f32 %v935, %v991
        %v1110 = vmul.f32 %v938, %v991
        %v1111 = vmul.f32 %v941, %v991
        %v1112 = vmul.f32 %v944, %v991
        %v1113 = vmul.f32 %v947, %v991
        %v1114 = vmul.f32 %v950, %v991
        %v1115 = vmul.f32 %v953, %v991
        %v1116 = vmul.f32 %v956, %v991
        %v1117 = vmul.f32 %v959, %v991
        %v1118 = vmul.f32 %v962, %v991
        %v1119 = vmul.f32 %v965, %v991
        %v1120 = vmul.f32 %v968, %v991
        %v1121 = vmul.f32 %v971, %v991
        %v1122 = vmul.f32 %v974, %v991
        %v1123 = vmul.f32 %v977, %v991
        %v1124 = vmul.f32 %v980, %v991
        %v1125 = vmul.f32 %v983, %v991
        %v1126 = vmul.f32 %v986, %v991
        %v1127 = vmax.f32 %v1063, %v1095
        %v1128 = vmax.f32 %v1064, %v1096
        %v1129 = vmax.f32 %v1065, %v1097
        %v1130 = vmax.f32 %v1066, %v1098
        %v1131 = vmax.f32 %v1067, %v1099
        %v1132 = vmax.f32 %v1068, %v1100
        %v1133 = vmax.f32 %v1069, %v1101
        %v1134 = vmax.f32 %v1070, %v1102
        %v1135 = vmax.f32 %v1071, %v1103
        %v1136 = vmax.f32 %v1072, %v1104
        %v1137 = vmax.f32 %v1073, %v1105
        %v1138 = vmax.f32 %v1074, %v1106
        %v1139 = vmax.f32 %v1075, %v1107
        %v1140 = vmax.f32 %v1076, %v1108
        %v1141 = vmax.f32 %v1077, %v1109
        %v1142 = vmax.f32 %v1078, %v1110
        %v1143 = vmax.f32 %v1079, %v1111
        %v1144 = vmax.f32 %v1080, %v1112
        %v1145 = vmax.f32 %v1081, %v1113
        %v1146 = vmax.f32 %v1082, %v1114
        %v1147 = vmax.f32 %v1083, %v1115
        %v1148 = vmax.f32 %v1084, %v1116
        %v1149 = vmax.f32 %v1085, %v1117
        %v1150 = vmax.f32 %v1086, %v1118
        %v1151 = vmax.f32 %v1087, %v1119
        %v1152 = vmax.f32 %v1088, %v1120
        %v1153 = vmax.f32 %v1089, %v1121
        %v1154 = vmax.f32 %v1090, %v1122
        %v1155 = vmax.f32 %v1091, %v1123
        %v1156 = vmax.f32 %v1092, %v1124
        %v1157 = vmax.f32 %v1093, %v1125
        %v1158 = vmax.f32 %v1094, %v1126
        %v1159 = vadd.f32 %v1127, %v1029
        %v1160 = vadd.f32 %v1128, %v1029
        %v1161 = vadd.f32 %v1129, %v1029
        %v1162 = vadd.f32 %v1130, %v1029
        %v1163 = vadd.f32 %v1131, %v1029
        %v1164 = vadd.f32 %v1132, %v1029
        %v1165 = vadd.f32 %v1133, %v1029
        %v1166 = vadd.f32 %v1134, %v1029
        %v1167 = vadd.f32 %v1135, %v1029
        %v1168 = vadd.f32 %v1136, %v1029
        %v1169 = vadd.f32 %v1137, %v1029
        %v1170 = vadd.f32 %v1138, %v1029
        %v1171 = vadd.f32 %v1139, %v1029
        %v1172 = vadd.f32 %v1140, %v1029
        %v1173 = vadd.f32 %v1141, %v1029
        %v1174 = vadd.f32 %v1142, %v1029
        %v1175 = vadd.f32 %v1143, %v1029
        %v1176 = vadd.f32 %v1144, %v1029
        %v1177 = vadd.f32 %v1145, %v1029
        %v1178 = vadd.f32 %v1146, %v1029
        %v1179 = vadd.f32 %v1147, %v1029
        %v1180 = vadd.f32 %v1148, %v1029
        %v1181 = vadd.f32 %v1149, %v1029
        %v1182 = vadd.f32 %v1150, %v1029
        %v1183 = vadd.f32 %v1151, %v1029
        %v1184 = vadd.f32 %v1152, %v1029
        %v1185 = vadd.f32 %v1153, %v1029
        %v1186 = vadd.f32 %v1154, %v1029
        %v1187 = vadd.f32 %v1155, %v1029
        %v1188 = vadd.f32 %v1156, %v1029
        %v1189 = vadd.f32 %v1157, %v1029
        %v1190 = vadd.f32 %v1158, %v1029
        %v1191 = vmin.f32 %v1063, %v1095
        %v1192 = vmin.f32 %v1064, %v1096
        %v1193 = vmin.f32 %v1065, %v1097
        %v1194 = vmin.f32 %v1066, %v1098
        %v1195 = vmin.f32 %v1067, %v1099
        %v1196 = vmin.f32 %v1068, %v1100
        %v1197 = vmin.f32 %v1069, %v1101
        %v1198 = vmin.f32 %v1070, %v1102
        %v1199 = vmin.f32 %v1071, %v1103
        %v1200 = vmin.f32 %v1072, %v1104
        %v1201 = vmin.f32 %v1073, %v1105
        %v1202 = vmin.f32 %v1074, %v1106
        %v1203 = vmin.f32 %v1075, %v1107
        %v1204 = vmin.f32 %v1076, %v1108
        %v1205 = vmin.f32 %v1077, %v1109
        %v1206 = vmin.f32 %v1078, %v1110
        %v1207 = vmin.f32 %v1079, %v1111
        %v1208 = vmin.f32 %v1080, %v1112
        %v1209 = vmin.f32 %v1081, %v1113
        %v1210 = vmin.f32 %v1082, %v1114
        %v1211 = vmin.f32 %v1083, %v1115
        %v1212 = vmin.f32 %v1084, %v1116
        %v1213 = vmin.f32 %v1085, %v1117
        %v1214 = vmin.f32 %v1086, %v1118
        %v1215 = vmin.f32 %v1087, %v1119
        %v1216 = vmin.f32 %v1088, %v1120
        %v1217 = vmin.f32 %v1089, %v1121
        %v1218 = vmin.f32 %v1090, %v1122
        %v1219 = vmin.f32 %v1091, %v1123
        %v1220 = vmin.f32 %v1092, %v1124
        %v1221 = vmin.f32 %v1093, %v1125
        %v1222 = vmin.f32 %v1094, %v1126
        %v1223 = vadd.f32 %v1191, %v1029
        %v1224 = vadd.f32 %v1192, %v1029
        %v1225 = vadd.f32 %v1193, %v1029
        %v1226 = vadd.f32 %v1194, %v1029
        %v1227 = vadd.f32 %v1195, %v1029
        %v1228 = vadd.f32 %v1196, %v1029
        %v1229 = vadd.f32 %v1197, %v1029
        %v1230 = vadd.f32 %v1198, %v1029
        %v1231 = vadd.f32 %v1199, %v1029
        %v1232 = vadd.f32 %v1200, %v1029
        %v1233 = vadd.f32 %v1201, %v1029
        %v1234 = vadd.f32 %v1202, %v1029
        %v1235 = vadd.f32 %v1203, %v1029
        %v1236 = vadd.f32 %v1204, %v1029
        %v1237 = vadd.f32 %v1205, %v1029
        %v1238 = vadd.f32 %v1206, %v1029
        %v1239 = vadd.f32 %v1207, %v1029
        %v1240 = vadd.f32 %v1208, %v1029
        %v1241 = vadd.f32 %v1209, %v1029
        %v1242 = vadd.f32 %v1210, %v1029
        %v1243 = vadd.f32 %v1211, %v1029
        %v1244 = vadd.f32 %v1212, %v1029
        %v1245 = vadd.f32 %v1213, %v1029
        %v1246 = vadd.f32 %v1214, %v1029
        %v1247 = vadd.f32 %v1215, %v1029
        %v1248 = vadd.f32 %v1216, %v1029
        %v1249 = vadd.f32 %v1217, %v1029
        %v1250 = vadd.f32 %v1218, %v1029
        %v1251 = vadd.f32 %v1219, %v1029
        %v1252 = vadd.f32 %v1220, %v1029
        %v1253 = vadd.f32 %v1221, %v1029
        %v1254 = vadd.f32 %v1222, %v1029
        %vm1255 = vcmp.gt.f32.partialorder %v1031, 0.0
        %vm1256 = vcmp.gt.f32.partialorder %v1032, 0.0
        %vm1257 = vcmp.gt.f32.partialorder %v1033, 0.0
        %vm1258 = vcmp.gt.f32.partialorder %v1034, 0.0
        %vm1259 = vcmp.gt.f32.partialorder %v1035, 0.0
        %vm1260 = vcmp.gt.f32.partialorder %v1036, 0.0
        %vm1261 = vcmp.gt.f32.partialorder %v1037, 0.0
        %vm1262 = vcmp.gt.f32.partialorder %v1038, 0.0
        %vm1263 = vcmp.gt.f32.partialorder %v1039, 0.0
        %vm1264 = vcmp.gt.f32.partialorder %v1040, 0.0
        %vm1265 = vcmp.gt.f32.partialorder %v1041, 0.0
        %vm1266 = vcmp.gt.f32.partialorder %v1042, 0.0
        %vm1267 = vcmp.gt.f32.partialorder %v1043, 0.0
        %vm1268 = vcmp.gt.f32.partialorder %v1044, 0.0
        %vm1269 = vcmp.gt.f32.partialorder %v1045, 0.0
        %vm1270 = vcmp.gt.f32.partialorder %v1046, 0.0
        %vm1271 = vcmp.gt.f32.partialorder %v1047, 0.0
        %vm1272 = vcmp.gt.f32.partialorder %v1048, 0.0
        %vm1273 = vcmp.gt.f32.partialorder %v1049, 0.0
        %vm1274 = vcmp.gt.f32.partialorder %v1050, 0.0
        %vm1275 = vcmp.gt.f32.partialorder %v1051, 0.0
        %vm1276 = vcmp.gt.f32.partialorder %v1052, 0.0
        %vm1277 = vcmp.gt.f32.partialorder %v1053, 0.0
        %vm1278 = vcmp.gt.f32.partialorder %v1054, 0.0
        %vm1279 = vcmp.gt.f32.partialorder %v1055, 0.0
        %vm1280 = vcmp.gt.f32.partialorder %v1056, 0.0
        %vm1281 = vcmp.gt.f32.partialorder %v1057, 0.0
        %vm1282 = vcmp.gt.f32.partialorder %v1058, 0.0
        %vm1283 = vcmp.gt.f32.partialorder %v1059, 0.0
        %vm1284 = vcmp.gt.f32.partialorder %v1060, 0.0
        %vm1285 = vcmp.gt.f32.partialorder %v1061, 0.0
        %vm1286 = vcmp.gt.f32.partialorder %v1062, 0.0
        %v1287 = vmin.f32 %v1031, 0.0
        %v1288 = vmin.f32 %v1032, 0.0
        %v1289 = vmin.f32 %v1033, 0.0
        %v1290 = vmin.f32 %v1034, 0.0
        %v1291 = vmin.f32 %v1035, 0.0
        %v1292 = vmin.f32 %v1036, 0.0
        %v1293 = vmin.f32 %v1037, 0.0
        %v1294 = vmin.f32 %v1038, 0.0
        %v1295 = vmin.f32 %v1039, 0.0
        %v1296 = vmin.f32 %v1040, 0.0
        %v1297 = vmin.f32 %v1041, 0.0
        %v1298 = vmin.f32 %v1042, 0.0
        %v1299 = vmin.f32 %v1043, 0.0
        %v1300 = vmin.f32 %v1044, 0.0
        %v1301 = vmin.f32 %v1045, 0.0
        %v1302 = vmin.f32 %v1046, 0.0
        %v1303 = vmin.f32 %v1047, 0.0
        %v1304 = vmin.f32 %v1048, 0.0
        %v1305 = vmin.f32 %v1049, 0.0
        %v1306 = vmin.f32 %v1050, 0.0
        %v1307 = vmin.f32 %v1051, 0.0
        %v1308 = vmin.f32 %v1052, 0.0
        %v1309 = vmin.f32 %v1053, 0.0
        %v1310 = vmin.f32 %v1054, 0.0
        %v1311 = vmin.f32 %v1055, 0.0
        %v1312 = vmin.f32 %v1056, 0.0
        %v1313 = vmin.f32 %v1057, 0.0
        %v1314 = vmin.f32 %v1058, 0.0
        %v1315 = vmin.f32 %v1059, 0.0
        %v1316 = vmin.f32 %v1060, 0.0
        %v1317 = vmin.f32 %v1061, 0.0
        %v1318 = vmin.f32 %v1062, 0.0
        %v1319 = vmul.f32 %v1287, 1.442695
        %v1320 = vpow.pop %v1319
        %v1321 = vmul.f32 %v1288, 1.442695
        %v1322 = vpow.pop %v1321
        %v1323 = vmul.f32 %v1289, 1.442695
        %v1324 = vpow.pop %v1323
        %v1325 = vmul.f32 %v1290, 1.442695
        %v1326 = vpow.pop %v1325
        %v1327 = vmul.f32 %v1291, 1.442695
        %v1328 = vpow.pop %v1327
        %v1329 = vmul.f32 %v1292, 1.442695
        %v1330 = vpow.pop %v1329
        %v1331 = vmul.f32 %v1293, 1.442695
        %v1332 = vpow.pop %v1331
        %v1333 = vmul.f32 %v1294, 1.442695
        %v1334 = vpow.pop %v1333
        %v1335 = vmul.f32 %v1295, 1.442695
        %v1336 = vpow.pop %v1335
        %v1337 = vmul.f32 %v1296, 1.442695
        %v1338 = vpow.pop %v1337
        %v1339 = vmul.f32 %v1297, 1.442695
        %v1340 = vpow.pop %v1339
        %v1341 = vmul.f32 %v1298, 1.442695
        %v1342 = vpow.pop %v1341
        %v1343 = vmul.f32 %v1299, 1.442695
        %v1344 = vpow.pop %v1343
        %v1345 = vmul.f32 %v1300, 1.442695
        %v1346 = vpow.pop %v1345
        %v1347 = vmul.f32 %v1301, 1.442695
        %v1348 = vpow.pop %v1347
        %v1349 = vmul.f32 %v1302, 1.442695
        %v1350 = vpow.pop %v1349
        %v1351 = vmul.f32 %v1303, 1.442695
        %v1352 = vpow.pop %v1351
        %v1353 = vmul.f32 %v1304, 1.442695
        %v1354 = vpow.pop %v1353
        %v1355 = vmul.f32 %v1305, 1.442695
        %v1356 = vpow.pop %v1355
        %v1357 = vmul.f32 %v1306, 1.442695
        %v1358 = vpow.pop %v1357
        %v1359 = vmul.f32 %v1307, 1.442695
        %v1360 = vpow.pop %v1359
        %v1361 = vmul.f32 %v1308, 1.442695
        %v1362 = vpow.pop %v1361
        %v1363 = vmul.f32 %v1309, 1.442695
        %v1364 = vpow.pop %v1363
        %v1365 = vmul.f32 %v1310, 1.442695
        %v1366 = vpow.pop %v1365
        %v1367 = vmul.f32 %v1311, 1.442695
        %v1368 = vpow.pop %v1367
        %v1369 = vmul.f32 %v1312, 1.442695
        %v1370 = vpow.pop %v1369
        %v1371 = vmul.f32 %v1313, 1.442695
        %v1372 = vpow.pop %v1371
        %v1373 = vmul.f32 %v1314, 1.442695
        %v1374 = vpow.pop %v1373
        %v1375 = vmul.f32 %v1315, 1.442695
        %v1376 = vpow.pop %v1375
        %v1377 = vmul.f32 %v1316, 1.442695
        %v1378 = vpow.pop %v1377
        %v1379 = vmul.f32 %v1317, 1.442695
        %v1380 = vpow.pop %v1379
        %v1381 = vmul.f32 %v1318, 1.442695
        %v1382 = vpow.pop %v1381
        %v1383 = vsub.f32 %v1320, 1.0
        %v1384 = vsub.f32 %v1322, 1.0
        %v1385 = vsub.f32 %v1324, 1.0
        %v1386 = vsub.f32 %v1326, 1.0
        %v1387 = vsub.f32 %v1328, 1.0
        %v1388 = vsub.f32 %v1330, 1.0
        %v1389 = vsub.f32 %v1332, 1.0
        %v1390 = vsub.f32 %v1334, 1.0
        %v1391 = vsub.f32 %v1336, 1.0
        %v1392 = vsub.f32 %v1338, 1.0
        %v1393 = vsub.f32 %v1340, 1.0
        %v1394 = vsub.f32 %v1342, 1.0
        %v1395 = vsub.f32 %v1344, 1.0
        %v1396 = vsub.f32 %v1346, 1.0
        %v1397 = vsub.f32 %v1348, 1.0
        %v1398 = vsub.f32 %v1350, 1.0
        %v1399 = vsub.f32 %v1352, 1.0
        %v1400 = vsub.f32 %v1354, 1.0
        %v1401 = vsub.f32 %v1356, 1.0
        %v1402 = vsub.f32 %v1358, 1.0
        %v1403 = vsub.f32 %v1360, 1.0
        %v1404 = vsub.f32 %v1362, 1.0
        %v1405 = vsub.f32 %v1364, 1.0
        %v1406 = vsub.f32 %v1366, 1.0
        %v1407 = vsub.f32 %v1368, 1.0
        %v1408 = vsub.f32 %v1370, 1.0
        %v1409 = vsub.f32 %v1372, 1.0
        %v1410 = vsub.f32 %v1374, 1.0
        %v1411 = vsub.f32 %v1376, 1.0
        %v1412 = vsub.f32 %v1378, 1.0
        %v1413 = vsub.f32 %v1380, 1.0
        %v1414 = vsub.f32 %v1382, 1.0
        %v1415 = vmul.f32 %v1383, 1.6732632
        %v1416 = vmul.f32 %v1384, 1.6732632
        %v1417 = vmul.f32 %v1385, 1.6732632
        %v1418 = vmul.f32 %v1386, 1.6732632
        %v1419 = vmul.f32 %v1387, 1.6732632
        %v1420 = vmul.f32 %v1388, 1.6732632
        %v1421 = vmul.f32 %v1389, 1.6732632
        %v1422 = vmul.f32 %v1390, 1.6732632
        %v1423 = vmul.f32 %v1391, 1.6732632
        %v1424 = vmul.f32 %v1392, 1.6732632
        %v1425 = vmul.f32 %v1393, 1.6732632
        %v1426 = vmul.f32 %v1394, 1.6732632
        %v1427 = vmul.f32 %v1395, 1.6732632
        %v1428 = vmul.f32 %v1396, 1.6732632
        %v1429 = vmul.f32 %v1397, 1.6732632
        %v1430 = vmul.f32 %v1398, 1.6732632
        %v1431 = vmul.f32 %v1399, 1.6732632
        %v1432 = vmul.f32 %v1400, 1.6732632
        %v1433 = vmul.f32 %v1401, 1.6732632
        %v1434 = vmul.f32 %v1402, 1.6732632
        %v1435 = vmul.f32 %v1403, 1.6732632
        %v1436 = vmul.f32 %v1404, 1.6732632
        %v1437 = vmul.f32 %v1405, 1.6732632
        %v1438 = vmul.f32 %v1406, 1.6732632
        %v1439 = vmul.f32 %v1407, 1.6732632
        %v1440 = vmul.f32 %v1408, 1.6732632
        %v1441 = vmul.f32 %v1409, 1.6732632
        %v1442 = vmul.f32 %v1410, 1.6732632
        %v1443 = vmul.f32 %v1411, 1.6732632
        %v1444 = vmul.f32 %v1412, 1.6732632
        %v1445 = vmul.f32 %v1413, 1.6732632
        %v1446 = vmul.f32 %v1414, 1.6732632
        %v1447 = vsel %vm1255, %v1031, %v1415
        %v1448 = vsel %vm1256, %v1032, %v1416
        %v1449 = vsel %vm1257, %v1033, %v1417
        %v1450 = vsel %vm1258, %v1034, %v1418
        %v1451 = vsel %vm1259, %v1035, %v1419
        %v1452 = vsel %vm1260, %v1036, %v1420
        %v1453 = vsel %vm1261, %v1037, %v1421
        %v1454 = vsel %vm1262, %v1038, %v1422
        %v1455 = vsel %vm1263, %v1039, %v1423
        %v1456 = vsel %vm1264, %v1040, %v1424
        %v1457 = vsel %vm1265, %v1041, %v1425
        %v1458 = vsel %vm1266, %v1042, %v1426
        %v1459 = vsel %vm1267, %v1043, %v1427
        %v1460 = vsel %vm1268, %v1044, %v1428
        %v1461 = vsel %vm1269, %v1045, %v1429
        %v1462 = vsel %vm1270, %v1046, %v1430
        %v1463 = vsel %vm1271, %v1047, %v1431
        %v1464 = vsel %vm1272, %v1048, %v1432
        %v1465 = vsel %vm1273, %v1049, %v1433
        %v1466 = vsel %vm1274, %v1050, %v1434
        %v1467 = vsel %vm1275, %v1051, %v1435
        %v1468 = vsel %vm1276, %v1052, %v1436
        %v1469 = vsel %vm1277, %v1053, %v1437
        %v1470 = vsel %vm1278, %v1054, %v1438
        %v1471 = vsel %vm1279, %v1055, %v1439
        %v1472 = vsel %vm1280, %v1056, %v1440
        %v1473 = vsel %vm1281, %v1057, %v1441
        %v1474 = vsel %vm1282, %v1058, %v1442
        %v1475 = vsel %vm1283, %v1059, %v1443
        %v1476 = vsel %vm1284, %v1060, %v1444
        %v1477 = vsel %vm1285, %v1061, %v1445
        %v1478 = vsel %vm1286, %v1062, %v1446
        %v1479 = vmul.f32 %v1447, 1.050701
        %v1480 = vmul.f32 %v1448, 1.050701
        %v1481 = vmul.f32 %v1449, 1.050701
        %v1482 = vmul.f32 %v1450, 1.050701
        %v1483 = vmul.f32 %v1451, 1.050701
        %v1484 = vmul.f32 %v1452, 1.050701
        %v1485 = vmul.f32 %v1453, 1.050701
        %v1486 = vmul.f32 %v1454, 1.050701
        %v1487 = vmul.f32 %v1455, 1.050701
        %v1488 = vmul.f32 %v1456, 1.050701
        %v1489 = vmul.f32 %v1457, 1.050701
        %v1490 = vmul.f32 %v1458, 1.050701
        %v1491 = vmul.f32 %v1459, 1.050701
        %v1492 = vmul.f32 %v1460, 1.050701
        %v1493 = vmul.f32 %v1461, 1.050701
        %v1494 = vmul.f32 %v1462, 1.050701
        %v1495 = vmul.f32 %v1463, 1.050701
        %v1496 = vmul.f32 %v1464, 1.050701
        %v1497 = vmul.f32 %v1465, 1.050701
        %v1498 = vmul.f32 %v1466, 1.050701
        %v1499 = vmul.f32 %v1467, 1.050701
        %v1500 = vmul.f32 %v1468, 1.050701
        %v1501 = vmul.f32 %v1469, 1.050701
        %v1502 = vmul.f32 %v1470, 1.050701
        %v1503 = vmul.f32 %v1471, 1.050701
        %v1504 = vmul.f32 %v1472, 1.050701
        %v1505 = vmul.f32 %v1473, 1.050701
        %v1506 = vmul.f32 %v1474, 1.050701
        %v1507 = vmul.f32 %v1475, 1.050701
        %v1508 = vmul.f32 %v1476, 1.050701
        %v1509 = vmul.f32 %v1477, 1.050701
        %v1510 = vmul.f32 %v1478, 1.050701
        %vm1511 = vcmp.gt.f32.partialorder %v1159, 0.0
        %vm1512 = vcmp.gt.f32.partialorder %v1160, 0.0
        %vm1513 = vcmp.gt.f32.partialorder %v1161, 0.0
        %vm1514 = vcmp.gt.f32.partialorder %v1162, 0.0
        %vm1515 = vcmp.gt.f32.partialorder %v1163, 0.0
        %vm1516 = vcmp.gt.f32.partialorder %v1164, 0.0
        %vm1517 = vcmp.gt.f32.partialorder %v1165, 0.0
        %vm1518 = vcmp.gt.f32.partialorder %v1166, 0.0
        %vm1519 = vcmp.gt.f32.partialorder %v1167, 0.0
        %vm1520 = vcmp.gt.f32.partialorder %v1168, 0.0
        %vm1521 = vcmp.gt.f32.partialorder %v1169, 0.0
        %vm1522 = vcmp.gt.f32.partialorder %v1170, 0.0
        %vm1523 = vcmp.gt.f32.partialorder %v1171, 0.0
        %vm1524 = vcmp.gt.f32.partialorder %v1172, 0.0
        %vm1525 = vcmp.gt.f32.partialorder %v1173, 0.0
        %vm1526 = vcmp.gt.f32.partialorder %v1174, 0.0
        %vm1527 = vcmp.gt.f32.partialorder %v1175, 0.0
        %vm1528 = vcmp.gt.f32.partialorder %v1176, 0.0
        %vm1529 = vcmp.gt.f32.partialorder %v1177, 0.0
        %vm1530 = vcmp.gt.f32.partialorder %v1178, 0.0
        %vm1531 = vcmp.gt.f32.partialorder %v1179, 0.0
        %vm1532 = vcmp.gt.f32.partialorder %v1180, 0.0
        %vm1533 = vcmp.gt.f32.partialorder %v1181, 0.0
        %vm1534 = vcmp.gt.f32.partialorder %v1182, 0.0
        %vm1535 = vcmp.gt.f32.partialorder %v1183, 0.0
        %vm1536 = vcmp.gt.f32.partialorder %v1184, 0.0
        %vm1537 = vcmp.gt.f32.partialorder %v1185, 0.0
        %vm1538 = vcmp.gt.f32.partialorder %v1186, 0.0
        %vm1539 = vcmp.gt.f32.partialorder %v1187, 0.0
        %vm1540 = vcmp.gt.f32.partialorder %v1188, 0.0
        %vm1541 = vcmp.gt.f32.partialorder %v1189, 0.0
        %vm1542 = vcmp.gt.f32.partialorder %v1190, 0.0
        %v1543 = vmin.f32 %v1159, 0.0
        %v1544 = vmin.f32 %v1160, 0.0
        %v1545 = vmin.f32 %v1161, 0.0
        %v1546 = vmin.f32 %v1162, 0.0
        %v1547 = vmin.f32 %v1163, 0.0
        %v1548 = vmin.f32 %v1164, 0.0
        %v1549 = vmin.f32 %v1165, 0.0
        %v1550 = vmin.f32 %v1166, 0.0
        %v1551 = vmin.f32 %v1167, 0.0
        %v1552 = vmin.f32 %v1168, 0.0
        %v1553 = vmin.f32 %v1169, 0.0
        %v1554 = vmin.f32 %v1170, 0.0
        %v1555 = vmin.f32 %v1171, 0.0
        %v1556 = vmin.f32 %v1172, 0.0
        %v1557 = vmin.f32 %v1173, 0.0
        %v1558 = vmin.f32 %v1174, 0.0
        %v1559 = vmin.f32 %v1175, 0.0
        %v1560 = vmin.f32 %v1176, 0.0
        %v1561 = vmin.f32 %v1177, 0.0
        %v1562 = vmin.f32 %v1178, 0.0
        %v1563 = vmin.f32 %v1179, 0.0
        %v1564 = vmin.f32 %v1180, 0.0
        %v1565 = vmin.f32 %v1181, 0.0
        %v1566 = vmin.f32 %v1182, 0.0
        %v1567 = vmin.f32 %v1183, 0.0
        %v1568 = vmin.f32 %v1184, 0.0
        %v1569 = vmin.f32 %v1185, 0.0
        %v1570 = vmin.f32 %v1186, 0.0
        %v1571 = vmin.f32 %v1187, 0.0
        %v1572 = vmin.f32 %v1188, 0.0
        %v1573 = vmin.f32 %v1189, 0.0
        %v1574 = vmin.f32 %v1190, 0.0
        %v1575 = vmul.f32 %v1543, 1.442695
        %v1576 = vpow.pop %v1575
        %v1577 = vmul.f32 %v1544, 1.442695
        %v1578 = vpow.pop %v1577
        %v1579 = vmul.f32 %v1545, 1.442695
        %v1580 = vpow.pop %v1579
        %v1581 = vmul.f32 %v1546, 1.442695
        %v1582 = vpow.pop %v1581
        %v1583 = vmul.f32 %v1547, 1.442695
        %v1584 = vpow.pop %v1583
        %v1585 = vmul.f32 %v1548, 1.442695
        %v1586 = vpow.pop %v1585
        %v1587 = vmul.f32 %v1549, 1.442695
        %v1588 = vpow.pop %v1587
        %v1589 = vmul.f32 %v1550, 1.442695
        %v1590 = vpow.pop %v1589
        %v1591 = vmul.f32 %v1551, 1.442695
        %v1592 = vpow.pop %v1591
        %v1593 = vmul.f32 %v1552, 1.442695
        %v1594 = vpow.pop %v1593
        %v1595 = vmul.f32 %v1553, 1.442695
        %v1596 = vpow.pop %v1595
        %v1597 = vmul.f32 %v1554, 1.442695
        %v1598 = vpow.pop %v1597
        %v1599 = vmul.f32 %v1555, 1.442695
        %v1600 = vpow.pop %v1599
        %v1601 = vmul.f32 %v1556, 1.442695
        %v1602 = vpow.pop %v1601
        %v1603 = vmul.f32 %v1557, 1.442695
        %v1604 = vpow.pop %v1603
        %v1605 = vmul.f32 %v1558, 1.442695
        %v1606 = vpow.pop %v1605
        %v1607 = vmul.f32 %v1559, 1.442695
        %v1608 = vpow.pop %v1607
        %v1609 = vmul.f32 %v1560, 1.442695
        %v1610 = vpow.pop %v1609
        %v1611 = vmul.f32 %v1561, 1.442695
        %v1612 = vpow.pop %v1611
        %v1613 = vmul.f32 %v1562, 1.442695
        %v1614 = vpow.pop %v1613
        %v1615 = vmul.f32 %v1563, 1.442695
        %v1616 = vpow.pop %v1615
        %v1617 = vmul.f32 %v1564, 1.442695
        %v1618 = vpow.pop %v1617
        %v1619 = vmul.f32 %v1565, 1.442695
        %v1620 = vpow.pop %v1619
        %v1621 = vmul.f32 %v1566, 1.442695
        %v1622 = vpow.pop %v1621
        %v1623 = vmul.f32 %v1567, 1.442695
        %v1624 = vpow.pop %v1623
        %v1625 = vmul.f32 %v1568, 1.442695
        %v1626 = vpow.pop %v1625
        %v1627 = vmul.f32 %v1569, 1.442695
        %v1628 = vpow.pop %v1627
        %v1629 = vmul.f32 %v1570, 1.442695
        %v1630 = vpow.pop %v1629
        %v1631 = vmul.f32 %v1571, 1.442695
        %v1632 = vpow.pop %v1631
        %v1633 = vmul.f32 %v1572, 1.442695
        %v1634 = vpow.pop %v1633
        %v1635 = vmul.f32 %v1573, 1.442695
        %v1636 = vpow.pop %v1635
        %v1637 = vmul.f32 %v1574, 1.442695
        %v1638 = vpow.pop %v1637
        %v1639 = vsub.f32 %v1576, 1.0
        %v1640 = vsub.f32 %v1578, 1.0
        %v1641 = vsub.f32 %v1580, 1.0
        %v1642 = vsub.f32 %v1582, 1.0
        %v1643 = vsub.f32 %v1584, 1.0
        %v1644 = vsub.f32 %v1586, 1.0
        %v1645 = vsub.f32 %v1588, 1.0
        %v1646 = vsub.f32 %v1590, 1.0
        %v1647 = vsub.f32 %v1592, 1.0
        %v1648 = vsub.f32 %v1594, 1.0
        %v1649 = vsub.f32 %v1596, 1.0
        %v1650 = vsub.f32 %v1598, 1.0
        %v1651 = vsub.f32 %v1600, 1.0
        %v1652 = vsub.f32 %v1602, 1.0
        %v1653 = vsub.f32 %v1604, 1.0
        %v1654 = vsub.f32 %v1606, 1.0
        %v1655 = vsub.f32 %v1608, 1.0
        %v1656 = vsub.f32 %v1610, 1.0
        %v1657 = vsub.f32 %v1612, 1.0
        %v1658 = vsub.f32 %v1614, 1.0
        %v1659 = vsub.f32 %v1616, 1.0
        %v1660 = vsub.f32 %v1618, 1.0
        %v1661 = vsub.f32 %v1620, 1.0
        %v1662 = vsub.f32 %v1622, 1.0
        %v1663 = vsub.f32 %v1624, 1.0
        %v1664 = vsub.f32 %v1626, 1.0
        %v1665 = vsub.f32 %v1628, 1.0
        %v1666 = vsub.f32 %v1630, 1.0
        %v1667 = vsub.f32 %v1632, 1.0
        %v1668 = vsub.f32 %v1634, 1.0
        %v1669 = vsub.f32 %v1636, 1.0
        %v1670 = vsub.f32 %v1638, 1.0
        %v1671 = vmul.f32 %v1639, 1.6732632
        %v1672 = vmul.f32 %v1640, 1.6732632
        %v1673 = vmul.f32 %v1641, 1.6732632
        %v1674 = vmul.f32 %v1642, 1.6732632
        %v1675 = vmul.f32 %v1643, 1.6732632
        %v1676 = vmul.f32 %v1644, 1.6732632
        %v1677 = vmul.f32 %v1645, 1.6732632
        %v1678 = vmul.f32 %v1646, 1.6732632
        %v1679 = vmul.f32 %v1647, 1.6732632
        %v1680 = vmul.f32 %v1648, 1.6732632
        %v1681 = vmul.f32 %v1649, 1.6732632
        %v1682 = vmul.f32 %v1650, 1.6732632
        %v1683 = vmul.f32 %v1651, 1.6732632
        %v1684 = vmul.f32 %v1652, 1.6732632
        %v1685 = vmul.f32 %v1653, 1.6732632
        %v1686 = vmul.f32 %v1654, 1.6732632
        %v1687 = vmul.f32 %v1655, 1.6732632
        %v1688 = vmul.f32 %v1656, 1.6732632
        %v1689 = vmul.f32 %v1657, 1.6732632
        %v1690 = vmul.f32 %v1658, 1.6732632
        %v1691 = vmul.f32 %v1659, 1.6732632
        %v1692 = vmul.f32 %v1660, 1.6732632
        %v1693 = vmul.f32 %v1661, 1.6732632
        %v1694 = vmul.f32 %v1662, 1.6732632
        %v1695 = vmul.f32 %v1663, 1.6732632
        %v1696 = vmul.f32 %v1664, 1.6732632
        %v1697 = vmul.f32 %v1665, 1.6732632
        %v1698 = vmul.f32 %v1666, 1.6732632
        %v1699 = vmul.f32 %v1667, 1.6732632
        %v1700 = vmul.f32 %v1668, 1.6732632
        %v1701 = vmul.f32 %v1669, 1.6732632
        %v1702 = vmul.f32 %v1670, 1.6732632
        %v1703 = vsel %vm1511, %v1159, %v1671
        %v1704 = vsel %vm1512, %v1160, %v1672
        %v1705 = vsel %vm1513, %v1161, %v1673
        %v1706 = vsel %vm1514, %v1162, %v1674
        %v1707 = vsel %vm1515, %v1163, %v1675
        %v1708 = vsel %vm1516, %v1164, %v1676
        %v1709 = vsel %vm1517, %v1165, %v1677
        %v1710 = vsel %vm1518, %v1166, %v1678
        %v1711 = vsel %vm1519, %v1167, %v1679
        %v1712 = vsel %vm1520, %v1168, %v1680
        %v1713 = vsel %vm1521, %v1169, %v1681
        %v1714 = vsel %vm1522, %v1170, %v1682
        %v1715 = vsel %vm1523, %v1171, %v1683
        %v1716 = vsel %vm1524, %v1172, %v1684
        %v1717 = vsel %vm1525, %v1173, %v1685
        %v1718 = vsel %vm1526, %v1174, %v1686
        %v1719 = vsel %vm1527, %v1175, %v1687
        %v1720 = vsel %vm1528, %v1176, %v1688
        %v1721 = vsel %vm1529, %v1177, %v1689
        %v1722 = vsel %vm1530, %v1178, %v1690
        %v1723 = vsel %vm1531, %v1179, %v1691
        %v1724 = vsel %vm1532, %v1180, %v1692
        %v1725 = vsel %vm1533, %v1181, %v1693
        %v1726 = vsel %vm1534, %v1182, %v1694
        %v1727 = vsel %vm1535, %v1183, %v1695
        %v1728 = vsel %vm1536, %v1184, %v1696
        %v1729 = vsel %vm1537, %v1185, %v1697
        %v1730 = vsel %vm1538, %v1186, %v1698
        %v1731 = vsel %vm1539, %v1187, %v1699
        %v1732 = vsel %vm1540, %v1188, %v1700
        %v1733 = vsel %vm1541, %v1189, %v1701
        %v1734 = vsel %vm1542, %v1190, %v1702
        %v1735 = vmul.f32 %v1703, 1.050701
        %v1736 = vmul.f32 %v1704, 1.050701
        %v1737 = vmul.f32 %v1705, 1.050701
        %v1738 = vmul.f32 %v1706, 1.050701
        %v1739 = vmul.f32 %v1707, 1.050701
        %v1740 = vmul.f32 %v1708, 1.050701
        %v1741 = vmul.f32 %v1709, 1.050701
        %v1742 = vmul.f32 %v1710, 1.050701
        %v1743 = vmul.f32 %v1711, 1.050701
        %v1744 = vmul.f32 %v1712, 1.050701
        %v1745 = vmul.f32 %v1713, 1.050701
        %v1746 = vmul.f32 %v1714, 1.050701
        %v1747 = vmul.f32 %v1715, 1.050701
        %v1748 = vmul.f32 %v1716, 1.050701
        %v1749 = vmul.f32 %v1717, 1.050701
        %v1750 = vmul.f32 %v1718, 1.050701
        %v1751 = vmul.f32 %v1719, 1.050701
        %v1752 = vmul.f32 %v1720, 1.050701
        %v1753 = vmul.f32 %v1721, 1.050701
        %v1754 = vmul.f32 %v1722, 1.050701
        %v1755 = vmul.f32 %v1723, 1.050701
        %v1756 = vmul.f32 %v1724, 1.050701
        %v1757 = vmul.f32 %v1725, 1.050701
        %v1758 = vmul.f32 %v1726, 1.050701
        %v1759 = vmul.f32 %v1727, 1.050701
        %v1760 = vmul.f32 %v1728, 1.050701
        %v1761 = vmul.f32 %v1729, 1.050701
        %v1762 = vmul.f32 %v1730, 1.050701
        %v1763 = vmul.f32 %v1731, 1.050701
        %v1764 = vmul.f32 %v1732, 1.050701
        %v1765 = vmul.f32 %v1733, 1.050701
        %v1766 = vmul.f32 %v1734, 1.050701
        %vm1767 = vcmask 64512
        %v1769 = vsel %vm1767, %v1735, 0
        %v1772 = vsel %vm1767, %v1736, 0
        %v1775 = vsel %vm1767, %v1737, 0
        %v1778 = vsel %vm1767, %v1738, 0
        %v1781 = vsel %vm1767, %v1739, 0
        %v1784 = vsel %vm1767, %v1740, 0
        %v1787 = vsel %vm1767, %v1741, 0
        %v1790 = vsel %vm1767, %v1742, 0
        %v1793 = vsel %vm1767, %v1743, 0
        %v1796 = vsel %vm1767, %v1744, 0
        %v1799 = vsel %vm1767, %v1745, 0
        %v1802 = vsel %vm1767, %v1746, 0
        %v1805 = vsel %vm1767, %v1747, 0
        %v1808 = vsel %vm1767, %v1748, 0
        %v1811 = vsel %vm1767, %v1749, 0
        %v1814 = vsel %vm1767, %v1750, 0
        %v1817 = vsel %vm1767, %v1751, 0
        %v1820 = vsel %vm1767, %v1752, 0
        %v1823 = vsel %vm1767, %v1753, 0
        %v1826 = vsel %vm1767, %v1754, 0
        %v1829 = vsel %vm1767, %v1755, 0
        %v1832 = vsel %vm1767, %v1756, 0
        %v1835 = vsel %vm1767, %v1757, 0
        %v1838 = vsel %vm1767, %v1758, 0
        %v1841 = vsel %vm1767, %v1759, 0
        %v1844 = vsel %vm1767, %v1760, 0
        %v1847 = vsel %vm1767, %v1761, 0
        %v1850 = vsel %vm1767, %v1762, 0
        %v1853 = vsel %vm1767, %v1763, 0
        %v1856 = vsel %vm1767, %v1764, 0
        %v1859 = vsel %vm1767, %v1765, 0
        %v1862 = vsel %vm1767, %v1766, 0
        %1864 = vmatprep.subr.mxu0 0.0
        %1865 = vmatpush1.msra.mxu0 0.0
        %1866 = vmatprep.subr.mxu0 0.0
        %1867 = vmatpush1.msra.mxu0 0.0
        %1868 = vmatprep.subr.mxu0 0.0
        %1869 = vmatpush1.msra.mxu0 0.0
        %1870 = vmatprep.subr.mxu0 0.0
        %1871 = vmatpush1.msra.mxu0 0.0
        %1872 = vmatprep.subr.mxu0 0.0
        %1873 = vmatpush1.msra.mxu0 0.0
        %1874 = vmatprep.subr.mxu0 0.0
        %1875 = vmatpush1.msra.mxu0 0.0
        %1876 = vmatprep.subr.mxu0 0.0
        %1877 = vmatpush1.msra.mxu0 0.0
        %1878 = vmatprep.subr.mxu0 0.0
        %1879 = vmatpush1.msra.mxu0 0.0
        %1880 = vmatprep.subr.mxu0 0.0
        %1881 = vmatpush1.msra.mxu0 0.0
        %1882 = vmatprep.subr.mxu0 0.0
        %1883 = vmatpush1.msra.mxu0 0.0
        %1884 = vmatprep.subr.mxu0 0.0
        %1885 = vmatpush1.msra.mxu0 0.0
        %1886 = vmatprep.subr.mxu0 0.0
        %1887 = vmatpush1.msra.mxu0 0.0
        %1888 = vmatprep.subr.mxu0 0.0
        %1889 = vmatpush1.msra.mxu0 0.0
        %1890 = vmatprep.subr.mxu0 0.0
        %1891 = vmatpush1.msra.mxu0 0.0
        %1892 = vmatprep.subr.mxu0 0.0
        %1893 = vmatpush1.msra.mxu0 0.0
        %1894 = vmatprep.subr.mxu0 0.0
        %1895 = vmatpush1.msra.mxu0 %v526
        %1896 = vmatprep.subr.mxu0 0.0
        %1897 = vmatpush2.msra.mxu0 0.0
        %1898 = vmatprep.subr.mxu0 0.0
        %1899 = vmatpush2.msra.mxu0 0.0
        %1900 = vmatprep.subr.mxu0 0.0
        %1901 = vmatpush2.msra.mxu0 0.0
        %1902 = vmatprep.subr.mxu0 0.0
        %1903 = vmatpush2.msra.mxu0 0.0
        %1904 = vmatprep.subr.mxu0 0.0
        %1905 = vmatpush2.msra.mxu0 0.0
        %1906 = vmatprep.subr.mxu0 0.0
        %1907 = vmatpush2.msra.mxu0 0.0
        %1908 = vmatprep.subr.mxu0 0.0
        %1909 = vmatpush2.msra.mxu0 0.0
        %1910 = vmatprep.subr.mxu0 0.0
        %1911 = vmatpush2.msra.mxu0 0.0
        %1912 = vmatprep.subr.mxu0 0.0
        %1913 = vmatpush2.msra.mxu0 0.0
        %1914 = vmatprep.subr.mxu0 0.0
        %1915 = vmatpush2.msra.mxu0 0.0
        %1916 = vmatprep.subr.mxu0 0.0
        %1917 = vmatpush2.msra.mxu0 0.0
        %1918 = vmatprep.subr.mxu0 0.0
        %1919 = vmatpush2.msra.mxu0 0.0
        %1920 = vmatprep.subr.mxu0 0.0
        %1921 = vmatpush2.msra.mxu0 0.0
        %1922 = vmatprep.subr.mxu0 0.0
        %1923 = vmatpush2.msra.mxu0 0.0
        %1924 = vmatprep.subr.mxu0 0.0
        %1925 = vmatpush2.msra.mxu0 0.0
        %1926 = vmatprep.subr.mxu0 0.0
        %1927 = vmatpush2.msra.mxu0 0.0
        %1928 = vmatprep.mubr.f32.mxu0 0.0
        %1929 = vmatmul.mubr.f32.gmra.mxu0 %v1769
        %v1930 = vpop.f32.mrf.mxu0
        %v1931 = vadd.f32 0.0, %v1930
        %v1932 = vpop.f32.mrf.mxu0
        %1933 = vmatprep.mubr.f32.mxu0 0.0
        %1934 = vmatmul.mubr.f32.gmra.mxu0 %v1772
        %v1935 = vpop.f32.mrf.mxu0
        %v1936 = vadd.f32 0.0, %v1935
        %v1937 = vpop.f32.mrf.mxu0
        %1938 = vmatprep.mubr.f32.mxu0 0.0
        %1939 = vmatmul.mubr.f32.gmra.mxu0 %v1775
        %v1940 = vpop.f32.mrf.mxu0
        %v1941 = vadd.f32 0.0, %v1940
        %v1942 = vpop.f32.mrf.mxu0
        %1943 = vmatprep.mubr.f32.mxu0 0.0
        %1944 = vmatmul.mubr.f32.gmra.mxu0 %v1778
        %v1945 = vpop.f32.mrf.mxu0
        %v1946 = vadd.f32 0.0, %v1945
        %v1947 = vpop.f32.mrf.mxu0
        %1948 = vmatprep.mubr.f32.mxu0 0.0
        %1949 = vmatmul.mubr.f32.gmra.mxu0 %v1781
        %v1950 = vpop.f32.mrf.mxu0
        %v1951 = vadd.f32 0.0, %v1950
        %v1952 = vpop.f32.mrf.mxu0
        %1953 = vmatprep.mubr.f32.mxu0 0.0
        %1954 = vmatmul.mubr.f32.gmra.mxu0 %v1784
        %v1955 = vpop.f32.mrf.mxu0
        %v1956 = vadd.f32 0.0, %v1955
        %v1957 = vpop.f32.mrf.mxu0
        %1958 = vmatprep.mubr.f32.mxu0 0.0
        %1959 = vmatmul.mubr.f32.gmra.mxu0 %v1787
        %v1960 = vpop.f32.mrf.mxu0
        %v1961 = vadd.f32 0.0, %v1960
        %v1962 = vpop.f32.mrf.mxu0
        %1963 = vmatprep.mubr.f32.mxu0 0.0
        %1964 = vmatmul.mubr.f32.gmra.mxu0 %v1790
        %v1965 = vpop.f32.mrf.mxu0
        %v1966 = vadd.f32 0.0, %v1965
        %v1967 = vpop.f32.mrf.mxu0
        %1968 = vmatprep.mubr.f32.mxu0 0.0
        %1969 = vmatmul.mubr.f32.gmra.mxu0 %v1793
        %v1970 = vpop.f32.mrf.mxu0
        %v1971 = vadd.f32 0.0, %v1970
        %v1972 = vpop.f32.mrf.mxu0
        %1973 = vmatprep.mubr.f32.mxu0 0.0
        %1974 = vmatmul.mubr.f32.gmra.mxu0 %v1796
        %v1975 = vpop.f32.mrf.mxu0
        %v1976 = vadd.f32 0.0, %v1975
        %v1977 = vpop.f32.mrf.mxu0
        %1978 = vmatprep.mubr.f32.mxu0 0.0
        %1979 = vmatmul.mubr.f32.gmra.mxu0 %v1799
        %v1980 = vpop.f32.mrf.mxu0
        %v1981 = vadd.f32 0.0, %v1980
        %v1982 = vpop.f32.mrf.mxu0
        %1983 = vmatprep.mubr.f32.mxu0 0.0
        %1984 = vmatmul.mubr.f32.gmra.mxu0 %v1802
        %v1985 = vpop.f32.mrf.mxu0
        %v1986 = vadd.f32 0.0, %v1985
        %v1987 = vpop.f32.mrf.mxu0
        %1988 = vmatprep.mubr.f32.mxu0 0.0
        %1989 = vmatmul.mubr.f32.gmra.mxu0 %v1805
        %v1990 = vpop.f32.mrf.mxu0
        %v1991 = vadd.f32 0.0, %v1990
        %v1992 = vpop.f32.mrf.mxu0
        %1993 = vmatprep.mubr.f32.mxu0 0.0
        %1994 = vmatmul.mubr.f32.gmra.mxu0 %v1808
        %v1995 = vpop.f32.mrf.mxu0
        %v1996 = vadd.f32 0.0, %v1995
        %v1997 = vpop.f32.mrf.mxu0
        %1998 = vmatprep.mubr.f32.mxu0 0.0
        %1999 = vmatmul.mubr.f32.gmra.mxu0 %v1811
        %v2000 = vpop.f32.mrf.mxu0
        %v2001 = vadd.f32 0.0, %v2000
        %v2002 = vpop.f32.mrf.mxu0
        %2003 = vmatprep.mubr.f32.mxu0 0.0
        %2004 = vmatmul.mubr.f32.gmra.mxu0 %v1814
        %v2005 = vpop.f32.mrf.mxu0
        %v2006 = vadd.f32 0.0, %v2005
        %v2007 = vpop.f32.mrf.mxu0
        %2008 = vmatprep.mubr.f32.mxu0 0.0
        %2009 = vmatmul.mubr.f32.gmra.mxu0 %v1817
        %v2010 = vpop.f32.mrf.mxu0
        %v2011 = vadd.f32 0.0, %v2010
        %v2012 = vpop.f32.mrf.mxu0
        %2013 = vmatprep.mubr.f32.mxu0 0.0
        %2014 = vmatmul.mubr.f32.gmra.mxu0 %v1820
        %v2015 = vpop.f32.mrf.mxu0
        %v2016 = vadd.f32 0.0, %v2015
        %v2017 = vpop.f32.mrf.mxu0
        %2018 = vmatprep.mubr.f32.mxu0 0.0
        %2019 = vmatmul.mubr.f32.gmra.mxu0 %v1823
        %v2020 = vpop.f32.mrf.mxu0
        %v2021 = vadd.f32 0.0, %v2020
        %v2022 = vpop.f32.mrf.mxu0
        %2023 = vmatprep.mubr.f32.mxu0 0.0
        %2024 = vmatmul.mubr.f32.gmra.mxu0 %v1826
        %v2025 = vpop.f32.mrf.mxu0
        %v2026 = vadd.f32 0.0, %v2025
        %v2027 = vpop.f32.mrf.mxu0
        %2028 = vmatprep.mubr.f32.mxu0 0.0
        %2029 = vmatmul.mubr.f32.gmra.mxu0 %v1829
        %v2030 = vpop.f32.mrf.mxu0
        %v2031 = vadd.f32 0.0, %v2030
        %v2032 = vpop.f32.mrf.mxu0
        %2033 = vmatprep.mubr.f32.mxu0 0.0
        %2034 = vmatmul.mubr.f32.gmra.mxu0 %v1832
        %v2035 = vpop.f32.mrf.mxu0
        %v2036 = vadd.f32 0.0, %v2035
        %v2037 = vpop.f32.mrf.mxu0
        %2038 = vmatprep.mubr.f32.mxu0 0.0
        %2039 = vmatmul.mubr.f32.gmra.mxu0 %v1835
        %v2040 = vpop.f32.mrf.mxu0
        %v2041 = vadd.f32 0.0, %v2040
        %v2042 = vpop.f32.mrf.mxu0
        %2043 = vmatprep.mubr.f32.mxu0 0.0
        %2044 = vmatmul.mubr.f32.gmra.mxu0 %v1838
        %v2045 = vpop.f32.mrf.mxu0
        %v2046 = vadd.f32 0.0, %v2045
        %v2047 = vpop.f32.mrf.mxu0
        %2048 = vmatprep.mubr.f32.mxu0 0.0
        %2049 = vmatmul.mubr.f32.gmra.mxu0 %v1841
        %v2050 = vpop.f32.mrf.mxu0
        %v2051 = vadd.f32 0.0, %v2050
        %v2052 = vpop.f32.mrf.mxu0
        %2053 = vmatprep.mubr.f32.mxu0 0.0
        %2054 = vmatmul.mubr.f32.gmra.mxu0 %v1844
        %v2055 = vpop.f32.mrf.mxu0
        %v2056 = vadd.f32 0.0, %v2055
        %v2057 = vpop.f32.mrf.mxu0
        %2058 = vmatprep.mubr.f32.mxu0 0.0
        %2059 = vmatmul.mubr.f32.gmra.mxu0 %v1847
        %v2060 = vpop.f32.mrf.mxu0
        %v2061 = vadd.f32 0.0, %v2060
        %v2062 = vpop.f32.mrf.mxu0
        %2063 = vmatprep.mubr.f32.mxu0 0.0
        %2064 = vmatmul.mubr.f32.gmra.mxu0 %v1850
        %v2065 = vpop.f32.mrf.mxu0
        %v2066 = vadd.f32 0.0, %v2065
        %v2067 = vpop.f32.mrf.mxu0
        %2068 = vmatprep.mubr.f32.mxu0 0.0
        %2069 = vmatmul.mubr.f32.gmra.mxu0 %v1853
        %v2070 = vpop.f32.mrf.mxu0
        %v2071 = vadd.f32 0.0, %v2070
        %v2072 = vpop.f32.mrf.mxu0
        %2073 = vmatprep.mubr.f32.mxu0 0.0
        %2074 = vmatmul.mubr.f32.gmra.mxu0 %v1856
        %v2075 = vpop.f32.mrf.mxu0
        %v2076 = vadd.f32 0.0, %v2075
        %v2077 = vpop.f32.mrf.mxu0
        %2078 = vmatprep.mubr.f32.mxu0 0.0
        %2079 = vmatmul.mubr.f32.gmra.mxu0 %v1859
        %v2080 = vpop.f32.mrf.mxu0
        %v2081 = vadd.f32 0.0, %v2080
        %v2082 = vpop.f32.mrf.mxu0
        %2083 = vmatprep.mubr.f32.mxu0 0.0
        %2084 = vmatmul.mubr.f32.gmra.mxu0 %v1862
        %v2085 = vpop.f32.mrf.mxu0
        %v2086 = vadd.f32 0.0, %v2085
        %v2087 = vpop.f32.mrf.mxu0
        %2088 = vdwg.mxu0
        %v2090 = vsel %vm1767, %v1479, 0
        %v2093 = vsel %vm1767, %v1480, 0
        %v2096 = vsel %vm1767, %v1481, 0
        %v2099 = vsel %vm1767, %v1482, 0
        %v2102 = vsel %vm1767, %v1483, 0
        %v2105 = vsel %vm1767, %v1484, 0
        %v2108 = vsel %vm1767, %v1485, 0
        %v2111 = vsel %vm1767, %v1486, 0
        %v2114 = vsel %vm1767, %v1487, 0
        %v2117 = vsel %vm1767, %v1488, 0
        %v2120 = vsel %vm1767, %v1489, 0
        %v2123 = vsel %vm1767, %v1490, 0
        %v2126 = vsel %vm1767, %v1491, 0
        %v2129 = vsel %vm1767, %v1492, 0
        %v2132 = vsel %vm1767, %v1493, 0
        %v2135 = vsel %vm1767, %v1494, 0
        %v2138 = vsel %vm1767, %v1495, 0
        %v2141 = vsel %vm1767, %v1496, 0
        %v2144 = vsel %vm1767, %v1497, 0
        %v2147 = vsel %vm1767, %v1498, 0
        %v2150 = vsel %vm1767, %v1499, 0
        %v2153 = vsel %vm1767, %v1500, 0
        %v2156 = vsel %vm1767, %v1501, 0
        %v2159 = vsel %vm1767, %v1502, 0
        %v2162 = vsel %vm1767, %v1503, 0
        %v2165 = vsel %vm1767, %v1504, 0
        %v2168 = vsel %vm1767, %v1505, 0
        %v2171 = vsel %vm1767, %v1506, 0
        %v2174 = vsel %vm1767, %v1507, 0
        %v2177 = vsel %vm1767, %v1508, 0
        %v2180 = vsel %vm1767, %v1509, 0
        %v2183 = vsel %vm1767, %v1510, 0
        %2185 = vmatprep.subr.mxu0 0.0
        %2186 = vmatpush1.msra.mxu0 0.0
        %2187 = vmatprep.subr.mxu0 0.0
        %2188 = vmatpush1.msra.mxu0 0.0
        %2189 = vmatprep.subr.mxu0 0.0
        %2190 = vmatpush1.msra.mxu0 0.0
        %2191 = vmatprep.subr.mxu0 0.0
        %2192 = vmatpush1.msra.mxu0 0.0
        %2193 = vmatprep.subr.mxu0 0.0
        %2194 = vmatpush1.msra.mxu0 0.0
        %2195 = vmatprep.subr.mxu0 0.0
        %2196 = vmatpush1.msra.mxu0 0.0
        %2197 = vmatprep.subr.mxu0 0.0
        %2198 = vmatpush1.msra.mxu0 0.0
        %2199 = vmatprep.subr.mxu0 0.0
        %2200 = vmatpush1.msra.mxu0 0.0
        %2201 = vmatprep.subr.mxu0 0.0
        %2202 = vmatpush1.msra.mxu0 0.0
        %2203 = vmatprep.subr.mxu0 0.0
        %2204 = vmatpush1.msra.mxu0 0.0
        %2205 = vmatprep.subr.mxu0 0.0
        %2206 = vmatpush1.msra.mxu0 0.0
        %2207 = vmatprep.subr.mxu0 0.0
        %2208 = vmatpush1.msra.mxu0 0.0
        %2209 = vmatprep.subr.mxu0 0.0
        %2210 = vmatpush1.msra.mxu0 0.0
        %2211 = vmatprep.subr.mxu0 0.0
        %2212 = vmatpush1.msra.mxu0 0.0
        %2213 = vmatprep.subr.mxu0 0.0
        %2214 = vmatpush1.msra.mxu0 0.0
        %2215 = vmatprep.subr.mxu0 0.0
        %2216 = vmatpush1.msra.mxu0 %v525
        %2217 = vmatprep.subr.mxu0 0.0
        %2218 = vmatpush2.msra.mxu0 0.0
        %2219 = vmatprep.subr.mxu0 0.0
        %2220 = vmatpush2.msra.mxu0 0.0
        %2221 = vmatprep.subr.mxu0 0.0
        %2222 = vmatpush2.msra.mxu0 0.0
        %2223 = vmatprep.subr.mxu0 0.0
        %2224 = vmatpush2.msra.mxu0 0.0
        %2225 = vmatprep.subr.mxu0 0.0
        %2226 = vmatpush2.msra.mxu0 0.0
        %2227 = vmatprep.subr.mxu0 0.0
        %2228 = vmatpush2.msra.mxu0 0.0
        %2229 = vmatprep.subr.mxu0 0.0
        %2230 = vmatpush2.msra.mxu0 0.0
        %2231 = vmatprep.subr.mxu0 0.0
        %2232 = vmatpush2.msra.mxu0 0.0
        %2233 = vmatprep.subr.mxu0 0.0
        %2234 = vmatpush2.msra.mxu0 0.0
        %2235 = vmatprep.subr.mxu0 0.0
        %2236 = vmatpush2.msra.mxu0 0.0
        %2237 = vmatprep.subr.mxu0 0.0
        %2238 = vmatpush2.msra.mxu0 0.0
        %2239 = vmatprep.subr.mxu0 0.0
        %2240 = vmatpush2.msra.mxu0 0.0
        %2241 = vmatprep.subr.mxu0 0.0
        %2242 = vmatpush2.msra.mxu0 0.0
        %2243 = vmatprep.subr.mxu0 0.0
        %2244 = vmatpush2.msra.mxu0 0.0
        %2245 = vmatprep.subr.mxu0 0.0
        %2246 = vmatpush2.msra.mxu0 0.0
        %2247 = vmatprep.subr.mxu0 0.0
        %2248 = vmatpush2.msra.mxu0 0.0
        %2249 = vmatprep.mubr.f32.mxu0 0.0
        %2250 = vmatmul.mubr.f32.gmra.mxu0 %v2090
        %v2251 = vpop.f32.mrf.mxu0
        %v2252 = vadd.f32 %v1931, %v2251
        %v2253 = vpop.f32.mrf.mxu0
        %2254 = vmatprep.mubr.f32.mxu0 0.0
        %2255 = vmatmul.mubr.f32.gmra.mxu0 %v2093
        %v2256 = vpop.f32.mrf.mxu0
        %v2257 = vadd.f32 %v1936, %v2256
        %v2258 = vpop.f32.mrf.mxu0
        %2259 = vmatprep.mubr.f32.mxu0 0.0
        %2260 = vmatmul.mubr.f32.gmra.mxu0 %v2096
        %v2261 = vpop.f32.mrf.mxu0
        %v2262 = vadd.f32 %v1941, %v2261
        %v2263 = vpop.f32.mrf.mxu0
        %2264 = vmatprep.mubr.f32.mxu0 0.0
        %2265 = vmatmul.mubr.f32.gmra.mxu0 %v2099
        %v2266 = vpop.f32.mrf.mxu0
        %v2267 = vadd.f32 %v1946, %v2266
        %v2268 = vpop.f32.mrf.mxu0
        %2269 = vmatprep.mubr.f32.mxu0 0.0
        %2270 = vmatmul.mubr.f32.gmra.mxu0 %v2102
        %v2271 = vpop.f32.mrf.mxu0
        %v2272 = vadd.f32 %v1951, %v2271
        %v2273 = vpop.f32.mrf.mxu0
        %2274 = vmatprep.mubr.f32.mxu0 0.0
        %2275 = vmatmul.mubr.f32.gmra.mxu0 %v2105
        %v2276 = vpop.f32.mrf.mxu0
        %v2277 = vadd.f32 %v1956, %v2276
        %v2278 = vpop.f32.mrf.mxu0
        %2279 = vmatprep.mubr.f32.mxu0 0.0
        %2280 = vmatmul.mubr.f32.gmra.mxu0 %v2108
        %v2281 = vpop.f32.mrf.mxu0
        %v2282 = vadd.f32 %v1961, %v2281
        %v2283 = vpop.f32.mrf.mxu0
        %2284 = vmatprep.mubr.f32.mxu0 0.0
        %2285 = vmatmul.mubr.f32.gmra.mxu0 %v2111
        %v2286 = vpop.f32.mrf.mxu0
        %v2287 = vadd.f32 %v1966, %v2286
        %v2288 = vpop.f32.mrf.mxu0
        %2289 = vmatprep.mubr.f32.mxu0 0.0
        %2290 = vmatmul.mubr.f32.gmra.mxu0 %v2114
        %v2291 = vpop.f32.mrf.mxu0
        %v2292 = vadd.f32 %v1971, %v2291
        %v2293 = vpop.f32.mrf.mxu0
        %2294 = vmatprep.mubr.f32.mxu0 0.0
        %2295 = vmatmul.mubr.f32.gmra.mxu0 %v2117
        %v2296 = vpop.f32.mrf.mxu0
        %v2297 = vadd.f32 %v1976, %v2296
        %v2298 = vpop.f32.mrf.mxu0
        %2299 = vmatprep.mubr.f32.mxu0 0.0
        %2300 = vmatmul.mubr.f32.gmra.mxu0 %v2120
        %v2301 = vpop.f32.mrf.mxu0
        %v2302 = vadd.f32 %v1981, %v2301
        %v2303 = vpop.f32.mrf.mxu0
        %2304 = vmatprep.mubr.f32.mxu0 0.0
        %2305 = vmatmul.mubr.f32.gmra.mxu0 %v2123
        %v2306 = vpop.f32.mrf.mxu0
        %v2307 = vadd.f32 %v1986, %v2306
        %v2308 = vpop.f32.mrf.mxu0
        %2309 = vmatprep.mubr.f32.mxu0 0.0
        %2310 = vmatmul.mubr.f32.gmra.mxu0 %v2126
        %v2311 = vpop.f32.mrf.mxu0
        %v2312 = vadd.f32 %v1991, %v2311
        %v2313 = vpop.f32.mrf.mxu0
        %2314 = vmatprep.mubr.f32.mxu0 0.0
        %2315 = vmatmul.mubr.f32.gmra.mxu0 %v2129
        %v2316 = vpop.f32.mrf.mxu0
        %v2317 = vadd.f32 %v1996, %v2316
        %v2318 = vpop.f32.mrf.mxu0
        %2319 = vmatprep.mubr.f32.mxu0 0.0
        %2320 = vmatmul.mubr.f32.gmra.mxu0 %v2132
        %v2321 = vpop.f32.mrf.mxu0
        %v2322 = vadd.f32 %v2001, %v2321
        %v2323 = vpop.f32.mrf.mxu0
        %2324 = vmatprep.mubr.f32.mxu0 0.0
        %2325 = vmatmul.mubr.f32.gmra.mxu0 %v2135
        %v2326 = vpop.f32.mrf.mxu0
        %v2327 = vadd.f32 %v2006, %v2326
        %v2328 = vpop.f32.mrf.mxu0
        %2329 = vmatprep.mubr.f32.mxu0 0.0
        %2330 = vmatmul.mubr.f32.gmra.mxu0 %v2138
        %v2331 = vpop.f32.mrf.mxu0
        %v2332 = vadd.f32 %v2011, %v2331
        %v2333 = vpop.f32.mrf.mxu0
        %2334 = vmatprep.mubr.f32.mxu0 0.0
        %2335 = vmatmul.mubr.f32.gmra.mxu0 %v2141
        %v2336 = vpop.f32.mrf.mxu0
        %v2337 = vadd.f32 %v2016, %v2336
        %v2338 = vpop.f32.mrf.mxu0
        %2339 = vmatprep.mubr.f32.mxu0 0.0
        %2340 = vmatmul.mubr.f32.gmra.mxu0 %v2144
        %v2341 = vpop.f32.mrf.mxu0
        %v2342 = vadd.f32 %v2021, %v2341
        %v2343 = vpop.f32.mrf.mxu0
        %2344 = vmatprep.mubr.f32.mxu0 0.0
        %2345 = vmatmul.mubr.f32.gmra.mxu0 %v2147
        %v2346 = vpop.f32.mrf.mxu0
        %v2347 = vadd.f32 %v2026, %v2346
        %v2348 = vpop.f32.mrf.mxu0
        %2349 = vmatprep.mubr.f32.mxu0 0.0
        %2350 = vmatmul.mubr.f32.gmra.mxu0 %v2150
        %v2351 = vpop.f32.mrf.mxu0
        %v2352 = vadd.f32 %v2031, %v2351
        %v2353 = vpop.f32.mrf.mxu0
        %2354 = vmatprep.mubr.f32.mxu0 0.0
        %2355 = vmatmul.mubr.f32.gmra.mxu0 %v2153
        %v2356 = vpop.f32.mrf.mxu0
        %v2357 = vadd.f32 %v2036, %v2356
        %v2358 = vpop.f32.mrf.mxu0
        %2359 = vmatprep.mubr.f32.mxu0 0.0
        %2360 = vmatmul.mubr.f32.gmra.mxu0 %v2156
        %v2361 = vpop.f32.mrf.mxu0
        %v2362 = vadd.f32 %v2041, %v2361
        %v2363 = vpop.f32.mrf.mxu0
        %2364 = vmatprep.mubr.f32.mxu0 0.0
        %2365 = vmatmul.mubr.f32.gmra.mxu0 %v2159
        %v2366 = vpop.f32.mrf.mxu0
        %v2367 = vadd.f32 %v2046, %v2366
        %v2368 = vpop.f32.mrf.mxu0
        %2369 = vmatprep.mubr.f32.mxu0 0.0
        %2370 = vmatmul.mubr.f32.gmra.mxu0 %v2162
        %v2371 = vpop.f32.mrf.mxu0
        %v2372 = vadd.f32 %v2051, %v2371
        %v2373 = vpop.f32.mrf.mxu0
        %2374 = vmatprep.mubr.f32.mxu0 0.0
        %2375 = vmatmul.mubr.f32.gmra.mxu0 %v2165
        %v2376 = vpop.f32.mrf.mxu0
        %v2377 = vadd.f32 %v2056, %v2376
        %v2378 = vpop.f32.mrf.mxu0
        %2379 = vmatprep.mubr.f32.mxu0 0.0
        %2380 = vmatmul.mubr.f32.gmra.mxu0 %v2168
        %v2381 = vpop.f32.mrf.mxu0
        %v2382 = vadd.f32 %v2061, %v2381
        %v2383 = vpop.f32.mrf.mxu0
        %2384 = vmatprep.mubr.f32.mxu0 0.0
        %2385 = vmatmul.mubr.f32.gmra.mxu0 %v2171
        %v2386 = vpop.f32.mrf.mxu0
        %v2387 = vadd.f32 %v2066, %v2386
        %v2388 = vpop.f32.mrf.mxu0
        %2389 = vmatprep.mubr.f32.mxu0 0.0
        %2390 = vmatmul.mubr.f32.gmra.mxu0 %v2174
        %v2391 = vpop.f32.mrf.mxu0
        %v2392 = vadd.f32 %v2071, %v2391
        %v2393 = vpop.f32.mrf.mxu0
        %2394 = vmatprep.mubr.f32.mxu0 0.0
        %2395 = vmatmul.mubr.f32.gmra.mxu0 %v2177
        %v2396 = vpop.f32.mrf.mxu0
        %v2397 = vadd.f32 %v2076, %v2396
        %v2398 = vpop.f32.mrf.mxu0
        %2399 = vmatprep.mubr.f32.mxu0 0.0
        %2400 = vmatmul.mubr.f32.gmra.mxu0 %v2180
        %v2401 = vpop.f32.mrf.mxu0
        %v2402 = vadd.f32 %v2081, %v2401
        %v2403 = vpop.f32.mrf.mxu0
        %2404 = vmatprep.mubr.f32.mxu0 0.0
        %2405 = vmatmul.mubr.f32.gmra.mxu0 %v2183
        %v2406 = vpop.f32.mrf.mxu0
        %v2407 = vadd.f32 %v2086, %v2406
        %v2408 = vpop.f32.mrf.mxu0
        %2409 = vdwg.mxu0
        %vm2410 = vcmp.gt.f32.partialorder %v1223, 0.0
        %vm2411 = vcmp.gt.f32.partialorder %v1224, 0.0
        %vm2412 = vcmp.gt.f32.partialorder %v1225, 0.0
        %vm2413 = vcmp.gt.f32.partialorder %v1226, 0.0
        %vm2414 = vcmp.gt.f32.partialorder %v1227, 0.0
        %vm2415 = vcmp.gt.f32.partialorder %v1228, 0.0
        %vm2416 = vcmp.gt.f32.partialorder %v1229, 0.0
        %vm2417 = vcmp.gt.f32.partialorder %v1230, 0.0
        %vm2418 = vcmp.gt.f32.partialorder %v1231, 0.0
        %vm2419 = vcmp.gt.f32.partialorder %v1232, 0.0
        %vm2420 = vcmp.gt.f32.partialorder %v1233, 0.0
        %vm2421 = vcmp.gt.f32.partialorder %v1234, 0.0
        %vm2422 = vcmp.gt.f32.partialorder %v1235, 0.0
        %vm2423 = vcmp.gt.f32.partialorder %v1236, 0.0
        %vm2424 = vcmp.gt.f32.partialorder %v1237, 0.0
        %vm2425 = vcmp.gt.f32.partialorder %v1238, 0.0
        %vm2426 = vcmp.gt.f32.partialorder %v1239, 0.0
        %vm2427 = vcmp.gt.f32.partialorder %v1240, 0.0
        %vm2428 = vcmp.gt.f32.partialorder %v1241, 0.0
        %vm2429 = vcmp.gt.f32.partialorder %v1242, 0.0
        %vm2430 = vcmp.gt.f32.partialorder %v1243, 0.0
        %vm2431 = vcmp.gt.f32.partialorder %v1244, 0.0
        %vm2432 = vcmp.gt.f32.partialorder %v1245, 0.0
        %vm2433 = vcmp.gt.f32.partialorder %v1246, 0.0
        %vm2434 = vcmp.gt.f32.partialorder %v1247, 0.0
        %vm2435 = vcmp.gt.f32.partialorder %v1248, 0.0
        %vm2436 = vcmp.gt.f32.partialorder %v1249, 0.0
        %vm2437 = vcmp.gt.f32.partialorder %v1250, 0.0
        %vm2438 = vcmp.gt.f32.partialorder %v1251, 0.0
        %vm2439 = vcmp.gt.f32.partialorder %v1252, 0.0
        %vm2440 = vcmp.gt.f32.partialorder %v1253, 0.0
        %vm2441 = vcmp.gt.f32.partialorder %v1254, 0.0
        %v2442 = vmin.f32 %v1223, 0.0
        %v2443 = vmin.f32 %v1224, 0.0
        %v2444 = vmin.f32 %v1225, 0.0
        %v2445 = vmin.f32 %v1226, 0.0
        %v2446 = vmin.f32 %v1227, 0.0
        %v2447 = vmin.f32 %v1228, 0.0
        %v2448 = vmin.f32 %v1229, 0.0
        %v2449 = vmin.f32 %v1230, 0.0
        %v2450 = vmin.f32 %v1231, 0.0
        %v2451 = vmin.f32 %v1232, 0.0
        %v2452 = vmin.f32 %v1233, 0.0
        %v2453 = vmin.f32 %v1234, 0.0
        %v2454 = vmin.f32 %v1235, 0.0
        %v2455 = vmin.f32 %v1236, 0.0
        %v2456 = vmin.f32 %v1237, 0.0
        %v2457 = vmin.f32 %v1238, 0.0
        %v2458 = vmin.f32 %v1239, 0.0
        %v2459 = vmin.f32 %v1240, 0.0
        %v2460 = vmin.f32 %v1241, 0.0
        %v2461 = vmin.f32 %v1242, 0.0
        %v2462 = vmin.f32 %v1243, 0.0
        %v2463 = vmin.f32 %v1244, 0.0
        %v2464 = vmin.f32 %v1245, 0.0
        %v2465 = vmin.f32 %v1246, 0.0
        %v2466 = vmin.f32 %v1247, 0.0
        %v2467 = vmin.f32 %v1248, 0.0
        %v2468 = vmin.f32 %v1249, 0.0
        %v2469 = vmin.f32 %v1250, 0.0
        %v2470 = vmin.f32 %v1251, 0.0
        %v2471 = vmin.f32 %v1252, 0.0
        %v2472 = vmin.f32 %v1253, 0.0
        %v2473 = vmin.f32 %v1254, 0.0
        %v2474 = vmul.f32 %v2442, 1.442695
        %v2475 = vpow.pop %v2474
        %v2476 = vmul.f32 %v2443, 1.442695
        %v2477 = vpow.pop %v2476
        %v2478 = vmul.f32 %v2444, 1.442695
        %v2479 = vpow.pop %v2478
        %v2480 = vmul.f32 %v2445, 1.442695
        %v2481 = vpow.pop %v2480
        %v2482 = vmul.f32 %v2446, 1.442695
        %v2483 = vpow.pop %v2482
        %v2484 = vmul.f32 %v2447, 1.442695
        %v2485 = vpow.pop %v2484
        %v2486 = vmul.f32 %v2448, 1.442695
        %v2487 = vpow.pop %v2486
        %v2488 = vmul.f32 %v2449, 1.442695
        %v2489 = vpow.pop %v2488
        %v2490 = vmul.f32 %v2450, 1.442695
        %v2491 = vpow.pop %v2490
        %v2492 = vmul.f32 %v2451, 1.442695
        %v2493 = vpow.pop %v2492
        %v2494 = vmul.f32 %v2452, 1.442695
        %v2495 = vpow.pop %v2494
        %v2496 = vmul.f32 %v2453, 1.442695
        %v2497 = vpow.pop %v2496
        %v2498 = vmul.f32 %v2454, 1.442695
        %v2499 = vpow.pop %v2498
        %v2500 = vmul.f32 %v2455, 1.442695
        %v2501 = vpow.pop %v2500
        %v2502 = vmul.f32 %v2456, 1.442695
        %v2503 = vpow.pop %v2502
        %v2504 = vmul.f32 %v2457, 1.442695
        %v2505 = vpow.pop %v2504
        %v2506 = vmul.f32 %v2458, 1.442695
        %v2507 = vpow.pop %v2506
        %v2508 = vmul.f32 %v2459, 1.442695
        %v2509 = vpow.pop %v2508
        %v2510 = vmul.f32 %v2460, 1.442695
        %v2511 = vpow.pop %v2510
        %v2512 = vmul.f32 %v2461, 1.442695
        %v2513 = vpow.pop %v2512
        %v2514 = vmul.f32 %v2462, 1.442695
        %v2515 = vpow.pop %v2514
        %v2516 = vmul.f32 %v2463, 1.442695
        %v2517 = vpow.pop %v2516
        %v2518 = vmul.f32 %v2464, 1.442695
        %v2519 = vpow.pop %v2518
        %v2520 = vmul.f32 %v2465, 1.442695
        %v2521 = vpow.pop %v2520
        %v2522 = vmul.f32 %v2466, 1.442695
        %v2523 = vpow.pop %v2522
        %v2524 = vmul.f32 %v2467, 1.442695
        %v2525 = vpow.pop %v2524
        %v2526 = vmul.f32 %v2468, 1.442695
        %v2527 = vpow.pop %v2526
        %v2528 = vmul.f32 %v2469, 1.442695
        %v2529 = vpow.pop %v2528
        %v2530 = vmul.f32 %v2470, 1.442695
        %v2531 = vpow.pop %v2530
        %v2532 = vmul.f32 %v2471, 1.442695
        %v2533 = vpow.pop %v2532
        %v2534 = vmul.f32 %v2472, 1.442695
        %v2535 = vpow.pop %v2534
        %v2536 = vmul.f32 %v2473, 1.442695
        %v2537 = vpow.pop %v2536
        %v2538 = vsub.f32 %v2475, 1.0
        %v2539 = vsub.f32 %v2477, 1.0
        %v2540 = vsub.f32 %v2479, 1.0
        %v2541 = vsub.f32 %v2481, 1.0
        %v2542 = vsub.f32 %v2483, 1.0
        %v2543 = vsub.f32 %v2485, 1.0
        %v2544 = vsub.f32 %v2487, 1.0
        %v2545 = vsub.f32 %v2489, 1.0
        %v2546 = vsub.f32 %v2491, 1.0
        %v2547 = vsub.f32 %v2493, 1.0
        %v2548 = vsub.f32 %v2495, 1.0
        %v2549 = vsub.f32 %v2497, 1.0
        %v2550 = vsub.f32 %v2499, 1.0
        %v2551 = vsub.f32 %v2501, 1.0
        %v2552 = vsub.f32 %v2503, 1.0
        %v2553 = vsub.f32 %v2505, 1.0
        %v2554 = vsub.f32 %v2507, 1.0
        %v2555 = vsub.f32 %v2509, 1.0
        %v2556 = vsub.f32 %v2511, 1.0
        %v2557 = vsub.f32 %v2513, 1.0
        %v2558 = vsub.f32 %v2515, 1.0
        %v2559 = vsub.f32 %v2517, 1.0
        %v2560 = vsub.f32 %v2519, 1.0
        %v2561 = vsub.f32 %v2521, 1.0
        %v2562 = vsub.f32 %v2523, 1.0
        %v2563 = vsub.f32 %v2525, 1.0
        %v2564 = vsub.f32 %v2527, 1.0
        %v2565 = vsub.f32 %v2529, 1.0
        %v2566 = vsub.f32 %v2531, 1.0
        %v2567 = vsub.f32 %v2533, 1.0
        %v2568 = vsub.f32 %v2535, 1.0
        %v2569 = vsub.f32 %v2537, 1.0
        %v2570 = vmul.f32 %v2538, 1.6732632
        %v2571 = vmul.f32 %v2539, 1.6732632
        %v2572 = vmul.f32 %v2540, 1.6732632
        %v2573 = vmul.f32 %v2541, 1.6732632
        %v2574 = vmul.f32 %v2542, 1.6732632
        %v2575 = vmul.f32 %v2543, 1.6732632
        %v2576 = vmul.f32 %v2544, 1.6732632
        %v2577 = vmul.f32 %v2545, 1.6732632
        %v2578 = vmul.f32 %v2546, 1.6732632
        %v2579 = vmul.f32 %v2547, 1.6732632
        %v2580 = vmul.f32 %v2548, 1.6732632
        %v2581 = vmul.f32 %v2549, 1.6732632
        %v2582 = vmul.f32 %v2550, 1.6732632
        %v2583 = vmul.f32 %v2551, 1.6732632
        %v2584 = vmul.f32 %v2552, 1.6732632
        %v2585 = vmul.f32 %v2553, 1.6732632
        %v2586 = vmul.f32 %v2554, 1.6732632
        %v2587 = vmul.f32 %v2555, 1.6732632
        %v2588 = vmul.f32 %v2556, 1.6732632
        %v2589 = vmul.f32 %v2557, 1.6732632
        %v2590 = vmul.f32 %v2558, 1.6732632
        %v2591 = vmul.f32 %v2559, 1.6732632
        %v2592 = vmul.f32 %v2560, 1.6732632
        %v2593 = vmul.f32 %v2561, 1.6732632
        %v2594 = vmul.f32 %v2562, 1.6732632
        %v2595 = vmul.f32 %v2563, 1.6732632
        %v2596 = vmul.f32 %v2564, 1.6732632
        %v2597 = vmul.f32 %v2565, 1.6732632
        %v2598 = vmul.f32 %v2566, 1.6732632
        %v2599 = vmul.f32 %v2567, 1.6732632
        %v2600 = vmul.f32 %v2568, 1.6732632
        %v2601 = vmul.f32 %v2569, 1.6732632
        %v2602 = vsel %vm2410, %v1223, %v2570
        %v2603 = vsel %vm2411, %v1224, %v2571
        %v2604 = vsel %vm2412, %v1225, %v2572
        %v2605 = vsel %vm2413, %v1226, %v2573
        %v2606 = vsel %vm2414, %v1227, %v2574
        %v2607 = vsel %vm2415, %v1228, %v2575
        %v2608 = vsel %vm2416, %v1229, %v2576
        %v2609 = vsel %vm2417, %v1230, %v2577
        %v2610 = vsel %vm2418, %v1231, %v2578
        %v2611 = vsel %vm2419, %v1232, %v2579
        %v2612 = vsel %vm2420, %v1233, %v2580
        %v2613 = vsel %vm2421, %v1234, %v2581
        %v2614 = vsel %vm2422, %v1235, %v2582
        %v2615 = vsel %vm2423, %v1236, %v2583
        %v2616 = vsel %vm2424, %v1237, %v2584
        %v2617 = vsel %vm2425, %v1238, %v2585
        %v2618 = vsel %vm2426, %v1239, %v2586
        %v2619 = vsel %vm2427, %v1240, %v2587
        %v2620 = vsel %vm2428, %v1241, %v2588
        %v2621 = vsel %vm2429, %v1242, %v2589
        %v2622 = vsel %vm2430, %v1243, %v2590
        %v2623 = vsel %vm2431, %v1244, %v2591
        %v2624 = vsel %vm2432, %v1245, %v2592
        %v2625 = vsel %vm2433, %v1246, %v2593
        %v2626 = vsel %vm2434, %v1247, %v2594
        %v2627 = vsel %vm2435, %v1248, %v2595
        %v2628 = vsel %vm2436, %v1249, %v2596
        %v2629 = vsel %vm2437, %v1250, %v2597
        %v2630 = vsel %vm2438, %v1251, %v2598
        %v2631 = vsel %vm2439, %v1252, %v2599
        %v2632 = vsel %vm2440, %v1253, %v2600
        %v2633 = vsel %vm2441, %v1254, %v2601
        %v2634 = vmul.f32 %v2602, 1.050701
        %v2635 = vmul.f32 %v2603, 1.050701
        %v2636 = vmul.f32 %v2604, 1.050701
        %v2637 = vmul.f32 %v2605, 1.050701
        %v2638 = vmul.f32 %v2606, 1.050701
        %v2639 = vmul.f32 %v2607, 1.050701
        %v2640 = vmul.f32 %v2608, 1.050701
        %v2641 = vmul.f32 %v2609, 1.050701
        %v2642 = vmul.f32 %v2610, 1.050701
        %v2643 = vmul.f32 %v2611, 1.050701
        %v2644 = vmul.f32 %v2612, 1.050701
        %v2645 = vmul.f32 %v2613, 1.050701
        %v2646 = vmul.f32 %v2614, 1.050701
        %v2647 = vmul.f32 %v2615, 1.050701
        %v2648 = vmul.f32 %v2616, 1.050701
        %v2649 = vmul.f32 %v2617, 1.050701
        %v2650 = vmul.f32 %v2618, 1.050701
        %v2651 = vmul.f32 %v2619, 1.050701
        %v2652 = vmul.f32 %v2620, 1.050701
        %v2653 = vmul.f32 %v2621, 1.050701
        %v2654 = vmul.f32 %v2622, 1.050701
        %v2655 = vmul.f32 %v2623, 1.050701
        %v2656 = vmul.f32 %v2624, 1.050701
        %v2657 = vmul.f32 %v2625, 1.050701
        %v2658 = vmul.f32 %v2626, 1.050701
        %v2659 = vmul.f32 %v2627, 1.050701
        %v2660 = vmul.f32 %v2628, 1.050701
        %v2661 = vmul.f32 %v2629, 1.050701
        %v2662 = vmul.f32 %v2630, 1.050701
        %v2663 = vmul.f32 %v2631, 1.050701
        %v2664 = vmul.f32 %v2632, 1.050701
        %v2665 = vmul.f32 %v2633, 1.050701
        %v2667 = vsel %vm1767, %v2634, 0
        %v2670 = vsel %vm1767, %v2635, 0
        %v2673 = vsel %vm1767, %v2636, 0
        %v2676 = vsel %vm1767, %v2637, 0
        %v2679 = vsel %vm1767, %v2638, 0
        %v2682 = vsel %vm1767, %v2639, 0
        %v2685 = vsel %vm1767, %v2640, 0
        %v2688 = vsel %vm1767, %v2641, 0
        %v2691 = vsel %vm1767, %v2642, 0
        %v2694 = vsel %vm1767, %v2643, 0
        %v2697 = vsel %vm1767, %v2644, 0
        %v2700 = vsel %vm1767, %v2645, 0
        %v2703 = vsel %vm1767, %v2646, 0
        %v2706 = vsel %vm1767, %v2647, 0
        %v2709 = vsel %vm1767, %v2648, 0
        %v2712 = vsel %vm1767, %v2649, 0
        %v2715 = vsel %vm1767, %v2650, 0
        %v2718 = vsel %vm1767, %v2651, 0
        %v2721 = vsel %vm1767, %v2652, 0
        %v2724 = vsel %vm1767, %v2653, 0
        %v2727 = vsel %vm1767, %v2654, 0
        %v2730 = vsel %vm1767, %v2655, 0
        %v2733 = vsel %vm1767, %v2656, 0
        %v2736 = vsel %vm1767, %v2657, 0
        %v2739 = vsel %vm1767, %v2658, 0
        %v2742 = vsel %vm1767, %v2659, 0
        %v2745 = vsel %vm1767, %v2660, 0
        %v2748 = vsel %vm1767, %v2661, 0
        %v2751 = vsel %vm1767, %v2662, 0
        %v2754 = vsel %vm1767, %v2663, 0
        %v2757 = vsel %vm1767, %v2664, 0
        %v2760 = vsel %vm1767, %v2665, 0
        %2762 = vmatprep.subr.mxu0 0.0
        %2763 = vmatpush1.msra.mxu0 0.0
        %2764 = vmatprep.subr.mxu0 0.0
        %2765 = vmatpush1.msra.mxu0 0.0
        %2766 = vmatprep.subr.mxu0 0.0
        %2767 = vmatpush1.msra.mxu0 0.0
        %2768 = vmatprep.subr.mxu0 0.0
        %2769 = vmatpush1.msra.mxu0 0.0
        %2770 = vmatprep.subr.mxu0 0.0
        %2771 = vmatpush1.msra.mxu0 0.0
        %2772 = vmatprep.subr.mxu0 0.0
        %2773 = vmatpush1.msra.mxu0 0.0
        %2774 = vmatprep.subr.mxu0 0.0
        %2775 = vmatpush1.msra.mxu0 0.0
        %2776 = vmatprep.subr.mxu0 0.0
        %2777 = vmatpush1.msra.mxu0 0.0
        %2778 = vmatprep.subr.mxu0 0.0
        %2779 = vmatpush1.msra.mxu0 0.0
        %2780 = vmatprep.subr.mxu0 0.0
        %2781 = vmatpush1.msra.mxu0 0.0
        %2782 = vmatprep.subr.mxu0 0.0
        %2783 = vmatpush1.msra.mxu0 0.0
        %2784 = vmatprep.subr.mxu0 0.0
        %2785 = vmatpush1.msra.mxu0 0.0
        %2786 = vmatprep.subr.mxu0 0.0
        %2787 = vmatpush1.msra.mxu0 0.0
        %2788 = vmatprep.subr.mxu0 0.0
        %2789 = vmatpush1.msra.mxu0 0.0
        %2790 = vmatprep.subr.mxu0 0.0
        %2791 = vmatpush1.msra.mxu0 0.0
        %2792 = vmatprep.subr.mxu0 0.0
        %2793 = vmatpush1.msra.mxu0 %v527
        %2794 = vmatprep.subr.mxu0 0.0
        %2795 = vmatpush2.msra.mxu0 0.0
        %2796 = vmatprep.subr.mxu0 0.0
        %2797 = vmatpush2.msra.mxu0 0.0
        %2798 = vmatprep.subr.mxu0 0.0
        %2799 = vmatpush2.msra.mxu0 0.0
        %2800 = vmatprep.subr.mxu0 0.0
        %2801 = vmatpush2.msra.mxu0 0.0
        %2802 = vmatprep.subr.mxu0 0.0
        %2803 = vmatpush2.msra.mxu0 0.0
        %2804 = vmatprep.subr.mxu0 0.0
        %2805 = vmatpush2.msra.mxu0 0.0
        %2806 = vmatprep.subr.mxu0 0.0
        %2807 = vmatpush2.msra.mxu0 0.0
        %2808 = vmatprep.subr.mxu0 0.0
        %2809 = vmatpush2.msra.mxu0 0.0
        %2810 = vmatprep.subr.mxu0 0.0
        %2811 = vmatpush2.msra.mxu0 0.0
        %2812 = vmatprep.subr.mxu0 0.0
        %2813 = vmatpush2.msra.mxu0 0.0
        %2814 = vmatprep.subr.mxu0 0.0
        %2815 = vmatpush2.msra.mxu0 0.0
        %2816 = vmatprep.subr.mxu0 0.0
        %2817 = vmatpush2.msra.mxu0 0.0
        %2818 = vmatprep.subr.mxu0 0.0
        %2819 = vmatpush2.msra.mxu0 0.0
        %2820 = vmatprep.subr.mxu0 0.0
        %2821 = vmatpush2.msra.mxu0 0.0
        %2822 = vmatprep.subr.mxu0 0.0
        %2823 = vmatpush2.msra.mxu0 0.0
        %2824 = vmatprep.subr.mxu0 0.0
        %2825 = vmatpush2.msra.mxu0 0.0
        %2826 = vmatprep.mubr.f32.mxu0 0.0
        %2827 = vmatmul.mubr.f32.gmra.mxu0 %v2667
        %v2828 = vpop.f32.mrf.mxu0
        %v2829 = vadd.f32 0.0, %v2828
        %v2830 = vpop.f32.mrf.mxu0
        %2831 = vmatprep.mubr.f32.mxu0 0.0
        %2832 = vmatmul.mubr.f32.gmra.mxu0 %v2670
        %v2833 = vpop.f32.mrf.mxu0
        %v2834 = vadd.f32 0.0, %v2833
        %v2835 = vpop.f32.mrf.mxu0
        %2836 = vmatprep.mubr.f32.mxu0 0.0
        %2837 = vmatmul.mubr.f32.gmra.mxu0 %v2673
        %v2838 = vpop.f32.mrf.mxu0
        %v2839 = vadd.f32 0.0, %v2838
        %v2840 = vpop.f32.mrf.mxu0
        %2841 = vmatprep.mubr.f32.mxu0 0.0
        %2842 = vmatmul.mubr.f32.gmra.mxu0 %v2676
        %v2843 = vpop.f32.mrf.mxu0
        %v2844 = vadd.f32 0.0, %v2843
        %v2845 = vpop.f32.mrf.mxu0
        %2846 = vmatprep.mubr.f32.mxu0 0.0
        %2847 = vmatmul.mubr.f32.gmra.mxu0 %v2679
        %v2848 = vpop.f32.mrf.mxu0
        %v2849 = vadd.f32 0.0, %v2848
        %v2850 = vpop.f32.mrf.mxu0
        %2851 = vmatprep.mubr.f32.mxu0 0.0
        %2852 = vmatmul.mubr.f32.gmra.mxu0 %v2682
        %v2853 = vpop.f32.mrf.mxu0
        %v2854 = vadd.f32 0.0, %v2853
        %v2855 = vpop.f32.mrf.mxu0
        %2856 = vmatprep.mubr.f32.mxu0 0.0
        %2857 = vmatmul.mubr.f32.gmra.mxu0 %v2685
        %v2858 = vpop.f32.mrf.mxu0
        %v2859 = vadd.f32 0.0, %v2858
        %v2860 = vpop.f32.mrf.mxu0
        %2861 = vmatprep.mubr.f32.mxu0 0.0
        %2862 = vmatmul.mubr.f32.gmra.mxu0 %v2688
        %v2863 = vpop.f32.mrf.mxu0
        %v2864 = vadd.f32 0.0, %v2863
        %v2865 = vpop.f32.mrf.mxu0
        %2866 = vmatprep.mubr.f32.mxu0 0.0
        %2867 = vmatmul.mubr.f32.gmra.mxu0 %v2691
        %v2868 = vpop.f32.mrf.mxu0
        %v2869 = vadd.f32 0.0, %v2868
        %v2870 = vpop.f32.mrf.mxu0
        %2871 = vmatprep.mubr.f32.mxu0 0.0
        %2872 = vmatmul.mubr.f32.gmra.mxu0 %v2694
        %v2873 = vpop.f32.mrf.mxu0
        %v2874 = vadd.f32 0.0, %v2873
        %v2875 = vpop.f32.mrf.mxu0
        %2876 = vmatprep.mubr.f32.mxu0 0.0
        %2877 = vmatmul.mubr.f32.gmra.mxu0 %v2697
        %v2878 = vpop.f32.mrf.mxu0
        %v2879 = vadd.f32 0.0, %v2878
        %v2880 = vpop.f32.mrf.mxu0
        %2881 = vmatprep.mubr.f32.mxu0 0.0
        %2882 = vmatmul.mubr.f32.gmra.mxu0 %v2700
        %v2883 = vpop.f32.mrf.mxu0
        %v2884 = vadd.f32 0.0, %v2883
        %v2885 = vpop.f32.mrf.mxu0
        %2886 = vmatprep.mubr.f32.mxu0 0.0
        %2887 = vmatmul.mubr.f32.gmra.mxu0 %v2703
        %v2888 = vpop.f32.mrf.mxu0
        %v2889 = vadd.f32 0.0, %v2888
        %v2890 = vpop.f32.mrf.mxu0
        %2891 = vmatprep.mubr.f32.mxu0 0.0
        %2892 = vmatmul.mubr.f32.gmra.mxu0 %v2706
        %v2893 = vpop.f32.mrf.mxu0
        %v2894 = vadd.f32 0.0, %v2893
        %v2895 = vpop.f32.mrf.mxu0
        %2896 = vmatprep.mubr.f32.mxu0 0.0
        %2897 = vmatmul.mubr.f32.gmra.mxu0 %v2709
        %v2898 = vpop.f32.mrf.mxu0
        %v2899 = vadd.f32 0.0, %v2898
        %v2900 = vpop.f32.mrf.mxu0
        %2901 = vmatprep.mubr.f32.mxu0 0.0
        %2902 = vmatmul.mubr.f32.gmra.mxu0 %v2712
        %v2903 = vpop.f32.mrf.mxu0
        %v2904 = vadd.f32 0.0, %v2903
        %v2905 = vpop.f32.mrf.mxu0
        %2906 = vmatprep.mubr.f32.mxu0 0.0
        %2907 = vmatmul.mubr.f32.gmra.mxu0 %v2715
        %v2908 = vpop.f32.mrf.mxu0
        %v2909 = vadd.f32 0.0, %v2908
        %v2910 = vpop.f32.mrf.mxu0
        %2911 = vmatprep.mubr.f32.mxu0 0.0
        %2912 = vmatmul.mubr.f32.gmra.mxu0 %v2718
        %v2913 = vpop.f32.mrf.mxu0
        %v2914 = vadd.f32 0.0, %v2913
        %v2915 = vpop.f32.mrf.mxu0
        %2916 = vmatprep.mubr.f32.mxu0 0.0
        %2917 = vmatmul.mubr.f32.gmra.mxu0 %v2721
        %v2918 = vpop.f32.mrf.mxu0
        %v2919 = vadd.f32 0.0, %v2918
        %v2920 = vpop.f32.mrf.mxu0
        %2921 = vmatprep.mubr.f32.mxu0 0.0
        %2922 = vmatmul.mubr.f32.gmra.mxu0 %v2724
        %v2923 = vpop.f32.mrf.mxu0
        %v2924 = vadd.f32 0.0, %v2923
        %v2925 = vpop.f32.mrf.mxu0
        %2926 = vmatprep.mubr.f32.mxu0 0.0
        %2927 = vmatmul.mubr.f32.gmra.mxu0 %v2727
        %v2928 = vpop.f32.mrf.mxu0
        %v2929 = vadd.f32 0.0, %v2928
        %v2930 = vpop.f32.mrf.mxu0
        %2931 = vmatprep.mubr.f32.mxu0 0.0
        %2932 = vmatmul.mubr.f32.gmra.mxu0 %v2730
        %v2933 = vpop.f32.mrf.mxu0
        %v2934 = vadd.f32 0.0, %v2933
        %v2935 = vpop.f32.mrf.mxu0
        %2936 = vmatprep.mubr.f32.mxu0 0.0
        %2937 = vmatmul.mubr.f32.gmra.mxu0 %v2733
        %v2938 = vpop.f32.mrf.mxu0
        %v2939 = vadd.f32 0.0, %v2938
        %v2940 = vpop.f32.mrf.mxu0
        %2941 = vmatprep.mubr.f32.mxu0 0.0
        %2942 = vmatmul.mubr.f32.gmra.mxu0 %v2736
        %v2943 = vpop.f32.mrf.mxu0
        %v2944 = vadd.f32 0.0, %v2943
        %v2945 = vpop.f32.mrf.mxu0
        %2946 = vmatprep.mubr.f32.mxu0 0.0
        %2947 = vmatmul.mubr.f32.gmra.mxu0 %v2739
        %v2948 = vpop.f32.mrf.mxu0
        %v2949 = vadd.f32 0.0, %v2948
        %v2950 = vpop.f32.mrf.mxu0
        %2951 = vmatprep.mubr.f32.mxu0 0.0
        %2952 = vmatmul.mubr.f32.gmra.mxu0 %v2742
        %v2953 = vpop.f32.mrf.mxu0
        %v2954 = vadd.f32 0.0, %v2953
        %v2955 = vpop.f32.mrf.mxu0
        %2956 = vmatprep.mubr.f32.mxu0 0.0
        %2957 = vmatmul.mubr.f32.gmra.mxu0 %v2745
        %v2958 = vpop.f32.mrf.mxu0
        %v2959 = vadd.f32 0.0, %v2958
        %v2960 = vpop.f32.mrf.mxu0
        %2961 = vmatprep.mubr.f32.mxu0 0.0
        %2962 = vmatmul.mubr.f32.gmra.mxu0 %v2748
        %v2963 = vpop.f32.mrf.mxu0
        %v2964 = vadd.f32 0.0, %v2963
        %v2965 = vpop.f32.mrf.mxu0
        %2966 = vmatprep.mubr.f32.mxu0 0.0
        %2967 = vmatmul.mubr.f32.gmra.mxu0 %v2751
        %v2968 = vpop.f32.mrf.mxu0
        %v2969 = vadd.f32 0.0, %v2968
        %v2970 = vpop.f32.mrf.mxu0
        %2971 = vmatprep.mubr.f32.mxu0 0.0
        %2972 = vmatmul.mubr.f32.gmra.mxu0 %v2754
        %v2973 = vpop.f32.mrf.mxu0
        %v2974 = vadd.f32 0.0, %v2973
        %v2975 = vpop.f32.mrf.mxu0
        %2976 = vmatprep.mubr.f32.mxu0 0.0
        %2977 = vmatmul.mubr.f32.gmra.mxu0 %v2757
        %v2978 = vpop.f32.mrf.mxu0
        %v2979 = vadd.f32 0.0, %v2978
        %v2980 = vpop.f32.mrf.mxu0
        %2981 = vmatprep.mubr.f32.mxu0 0.0
        %2982 = vmatmul.mubr.f32.gmra.mxu0 %v2760
        %v2983 = vpop.f32.mrf.mxu0
        %v2984 = vadd.f32 0.0, %v2983
        %v2985 = vpop.f32.mrf.mxu0
        %2986 = vdwg.mxu0
        %v2987 = vadd.f32 %v2252, %v2829
        %v2988 = vadd.f32 %v2257, %v2834
        %v2989 = vadd.f32 %v2262, %v2839
        %v2990 = vadd.f32 %v2267, %v2844
        %v2991 = vadd.f32 %v2272, %v2849
        %v2992 = vadd.f32 %v2277, %v2854
        %v2993 = vadd.f32 %v2282, %v2859
        %v2994 = vadd.f32 %v2287, %v2864
        %v2995 = vadd.f32 %v2292, %v2869
        %v2996 = vadd.f32 %v2297, %v2874
        %v2997 = vadd.f32 %v2302, %v2879
        %v2998 = vadd.f32 %v2307, %v2884
        %v2999 = vadd.f32 %v2312, %v2889
        %v3000 = vadd.f32 %v2317, %v2894
        %v3001 = vadd.f32 %v2322, %v2899
        %v3002 = vadd.f32 %v2327, %v2904
        %v3003 = vadd.f32 %v2332, %v2909
        %v3004 = vadd.f32 %v2337, %v2914
        %v3005 = vadd.f32 %v2342, %v2919
        %v3006 = vadd.f32 %v2347, %v2924
        %v3007 = vadd.f32 %v2352, %v2929
        %v3008 = vadd.f32 %v2357, %v2934
        %v3009 = vadd.f32 %v2362, %v2939
        %v3010 = vadd.f32 %v2367, %v2944
        %v3011 = vadd.f32 %v2372, %v2949
        %v3012 = vadd.f32 %v2377, %v2954
        %v3013 = vadd.f32 %v2382, %v2959
        %v3014 = vadd.f32 %v2387, %v2964
        %v3015 = vadd.f32 %v2392, %v2969
        %v3016 = vadd.f32 %v2397, %v2974
        %v3017 = vadd.f32 %v2402, %v2979
        %v3018 = vadd.f32 %v2407, %v2984
        %v3020 = vsel %vm602, %v535, 0
        %v3023 = vsel %vm602, %v536, 0
        %v3026 = vsel %vm602, %v537, 0
        %v3029 = vsel %vm602, %v538, 0
        %v3032 = vsel %vm602, %v539, 0
        %v3035 = vsel %vm602, %v540, 0
        %v3038 = vsel %vm602, %v541, 0
        %v3041 = vsel %vm602, %v542, 0
        %v3044 = vsel %vm602, %v543, 0
        %v3047 = vsel %vm602, %v544, 0
        %v3050 = vsel %vm602, %v545, 0
        %v3053 = vsel %vm602, %v546, 0
        %v3056 = vsel %vm602, %v547, 0
        %v3059 = vsel %vm602, %v548, 0
        %v3062 = vsel %vm602, %v549, 0
        %v3065 = vsel %vm602, %v550, 0
        %v3068 = vsel %vm602, %v551, 0
        %v3071 = vsel %vm602, %v552, 0
        %v3074 = vsel %vm602, %v553, 0
        %v3077 = vsel %vm602, %v554, 0
        %v3080 = vsel %vm602, %v555, 0
        %v3083 = vsel %vm602, %v556, 0
        %v3086 = vsel %vm602, %v557, 0
        %v3089 = vsel %vm602, %v558, 0
        %v3092 = vsel %vm602, %v559, 0
        %v3095 = vsel %vm602, %v560, 0
        %v3098 = vsel %vm602, %v561, 0
        %v3101 = vsel %vm602, %v562, 0
        %v3104 = vsel %vm602, %v563, 0
        %v3107 = vsel %vm602, %v564, 0
        %v3110 = vsel %vm602, %v565, 0
        %v3113 = vsel %vm602, %v566, 0
        %3115 = vmatprep.subr.mxu0 0.0
        %3116 = vmatpush1.msra.mxu0 0.0
        %3117 = vmatprep.subr.mxu0 0.0
        %3118 = vmatpush1.msra.mxu0 0.0
        %3119 = vmatprep.subr.mxu0 0.0
        %3120 = vmatpush1.msra.mxu0 0.0
        %3121 = vmatprep.subr.mxu0 0.0
        %3122 = vmatpush1.msra.mxu0 0.0
        %3123 = vmatprep.subr.mxu0 0.0
        %3124 = vmatpush1.msra.mxu0 0.0
        %3125 = vmatprep.subr.mxu0 0.0
        %3126 = vmatpush1.msra.mxu0 0.0
        %3127 = vmatprep.subr.mxu0 0.0
        %3128 = vmatpush1.msra.mxu0 0.0
        %3129 = vmatprep.subr.mxu0 0.0
        %3130 = vmatpush1.msra.mxu0 0.0
        %3131 = vmatprep.subr.mxu0 0.0
        %3132 = vmatpush1.msra.mxu0 0.0
        %3133 = vmatprep.subr.mxu0 0.0
        %3134 = vmatpush1.msra.mxu0 0.0
        %3135 = vmatprep.subr.mxu0 0.0
        %3136 = vmatpush1.msra.mxu0 0.0
        %3137 = vmatprep.subr.mxu0 0.0
        %3138 = vmatpush1.msra.mxu0 0.0
        %3139 = vmatprep.subr.mxu0 0.0
        %3140 = vmatpush1.msra.mxu0 %v531
        %3141 = vmatprep.subr.mxu0 0.0
        %3142 = vmatpush1.msra.mxu0 %v530
        %3143 = vmatprep.subr.mxu0 0.0
        %3144 = vmatpush1.msra.mxu0 %v529
        %3145 = vmatprep.subr.mxu0 0.0
        %3146 = vmatpush1.msra.mxu0 %v528
        %3147 = vmatprep.subr.mxu0 0.0
        %3148 = vmatpush2.msra.mxu0 0.0
        %3149 = vmatprep.subr.mxu0 0.0
        %3150 = vmatpush2.msra.mxu0 0.0
        %3151 = vmatprep.subr.mxu0 0.0
        %3152 = vmatpush2.msra.mxu0 0.0
        %3153 = vmatprep.subr.mxu0 0.0
        %3154 = vmatpush2.msra.mxu0 0.0
        %3155 = vmatprep.subr.mxu0 0.0
        %3156 = vmatpush2.msra.mxu0 0.0
        %3157 = vmatprep.subr.mxu0 0.0
        %3158 = vmatpush2.msra.mxu0 0.0
        %3159 = vmatprep.subr.mxu0 0.0
        %3160 = vmatpush2.msra.mxu0 0.0
        %3161 = vmatprep.subr.mxu0 0.0
        %3162 = vmatpush2.msra.mxu0 0.0
        %3163 = vmatprep.subr.mxu0 0.0
        %3164 = vmatpush2.msra.mxu0 0.0
        %3165 = vmatprep.subr.mxu0 0.0
        %3166 = vmatpush2.msra.mxu0 0.0
        %3167 = vmatprep.subr.mxu0 0.0
        %3168 = vmatpush2.msra.mxu0 0.0
        %3169 = vmatprep.subr.mxu0 0.0
        %3170 = vmatpush2.msra.mxu0 0.0
        %3171 = vmatprep.subr.mxu0 0.0
        %3172 = vmatpush2.msra.mxu0 0.0
        %3173 = vmatprep.subr.mxu0 0.0
        %3174 = vmatpush2.msra.mxu0 0.0
        %3175 = vmatprep.subr.mxu0 0.0
        %3176 = vmatpush2.msra.mxu0 0.0
        %3177 = vmatprep.subr.mxu0 0.0
        %3178 = vmatpush2.msra.mxu0 0.0
        %3179 = vmatprep.mubr.f32.mxu0 0.0
        %3180 = vmatmul.mubr.f32.gmra.mxu0 %v3020
        %v3181 = vpop.f32.mrf.mxu0
        %v3182 = vadd.f32 0.0, %v3181
        %v3183 = vpop.f32.mrf.mxu0
        %3184 = vmatprep.mubr.f32.mxu0 0.0
        %3185 = vmatmul.mubr.f32.gmra.mxu0 %v3023
        %v3186 = vpop.f32.mrf.mxu0
        %v3187 = vadd.f32 0.0, %v3186
        %v3188 = vpop.f32.mrf.mxu0
        %3189 = vmatprep.mubr.f32.mxu0 0.0
        %3190 = vmatmul.mubr.f32.gmra.mxu0 %v3026
        %v3191 = vpop.f32.mrf.mxu0
        %v3192 = vadd.f32 0.0, %v3191
        %v3193 = vpop.f32.mrf.mxu0
        %3194 = vmatprep.mubr.f32.mxu0 0.0
        %3195 = vmatmul.mubr.f32.gmra.mxu0 %v3029
        %v3196 = vpop.f32.mrf.mxu0
        %v3197 = vadd.f32 0.0, %v3196
        %v3198 = vpop.f32.mrf.mxu0
        %3199 = vmatprep.mubr.f32.mxu0 0.0
        %3200 = vmatmul.mubr.f32.gmra.mxu0 %v3032
        %v3201 = vpop.f32.mrf.mxu0
        %v3202 = vadd.f32 0.0, %v3201
        %v3203 = vpop.f32.mrf.mxu0
        %3204 = vmatprep.mubr.f32.mxu0 0.0
        %3205 = vmatmul.mubr.f32.gmra.mxu0 %v3035
        %v3206 = vpop.f32.mrf.mxu0
        %v3207 = vadd.f32 0.0, %v3206
        %v3208 = vpop.f32.mrf.mxu0
        %3209 = vmatprep.mubr.f32.mxu0 0.0
        %3210 = vmatmul.mubr.f32.gmra.mxu0 %v3038
        %v3211 = vpop.f32.mrf.mxu0
        %v3212 = vadd.f32 0.0, %v3211
        %v3213 = vpop.f32.mrf.mxu0
        %3214 = vmatprep.mubr.f32.mxu0 0.0
        %3215 = vmatmul.mubr.f32.gmra.mxu0 %v3041
        %v3216 = vpop.f32.mrf.mxu0
        %v3217 = vadd.f32 0.0, %v3216
        %v3218 = vpop.f32.mrf.mxu0
        %3219 = vmatprep.mubr.f32.mxu0 0.0
        %3220 = vmatmul.mubr.f32.gmra.mxu0 %v3044
        %v3221 = vpop.f32.mrf.mxu0
        %v3222 = vadd.f32 0.0, %v3221
        %v3223 = vpop.f32.mrf.mxu0
        %3224 = vmatprep.mubr.f32.mxu0 0.0
        %3225 = vmatmul.mubr.f32.gmra.mxu0 %v3047
        %v3226 = vpop.f32.mrf.mxu0
        %v3227 = vadd.f32 0.0, %v3226
        %v3228 = vpop.f32.mrf.mxu0
        %3229 = vmatprep.mubr.f32.mxu0 0.0
        %3230 = vmatmul.mubr.f32.gmra.mxu0 %v3050
        %v3231 = vpop.f32.mrf.mxu0
        %v3232 = vadd.f32 0.0, %v3231
        %v3233 = vpop.f32.mrf.mxu0
        %3234 = vmatprep.mubr.f32.mxu0 0.0
        %3235 = vmatmul.mubr.f32.gmra.mxu0 %v3053
        %v3236 = vpop.f32.mrf.mxu0
        %v3237 = vadd.f32 0.0, %v3236
        %v3238 = vpop.f32.mrf.mxu0
        %3239 = vmatprep.mubr.f32.mxu0 0.0
        %3240 = vmatmul.mubr.f32.gmra.mxu0 %v3056
        %v3241 = vpop.f32.mrf.mxu0
        %v3242 = vadd.f32 0.0, %v3241
        %v3243 = vpop.f32.mrf.mxu0
        %3244 = vmatprep.mubr.f32.mxu0 0.0
        %3245 = vmatmul.mubr.f32.gmra.mxu0 %v3059
        %v3246 = vpop.f32.mrf.mxu0
        %v3247 = vadd.f32 0.0, %v3246
        %v3248 = vpop.f32.mrf.mxu0
        %3249 = vmatprep.mubr.f32.mxu0 0.0
        %3250 = vmatmul.mubr.f32.gmra.mxu0 %v3062
        %v3251 = vpop.f32.mrf.mxu0
        %v3252 = vadd.f32 0.0, %v3251
        %v3253 = vpop.f32.mrf.mxu0
        %3254 = vmatprep.mubr.f32.mxu0 0.0
        %3255 = vmatmul.mubr.f32.gmra.mxu0 %v3065
        %v3256 = vpop.f32.mrf.mxu0
        %v3257 = vadd.f32 0.0, %v3256
        %v3258 = vpop.f32.mrf.mxu0
        %3259 = vmatprep.mubr.f32.mxu0 0.0
        %3260 = vmatmul.mubr.f32.gmra.mxu0 %v3068
        %v3261 = vpop.f32.mrf.mxu0
        %v3262 = vadd.f32 0.0, %v3261
        %v3263 = vpop.f32.mrf.mxu0
        %3264 = vmatprep.mubr.f32.mxu0 0.0
        %3265 = vmatmul.mubr.f32.gmra.mxu0 %v3071
        %v3266 = vpop.f32.mrf.mxu0
        %v3267 = vadd.f32 0.0, %v3266
        %v3268 = vpop.f32.mrf.mxu0
        %3269 = vmatprep.mubr.f32.mxu0 0.0
        %3270 = vmatmul.mubr.f32.gmra.mxu0 %v3074
        %v3271 = vpop.f32.mrf.mxu0
        %v3272 = vadd.f32 0.0, %v3271
        %v3273 = vpop.f32.mrf.mxu0
        %3274 = vmatprep.mubr.f32.mxu0 0.0
        %3275 = vmatmul.mubr.f32.gmra.mxu0 %v3077
        %v3276 = vpop.f32.mrf.mxu0
        %v3277 = vadd.f32 0.0, %v3276
        %v3278 = vpop.f32.mrf.mxu0
        %3279 = vmatprep.mubr.f32.mxu0 0.0
        %3280 = vmatmul.mubr.f32.gmra.mxu0 %v3080
        %v3281 = vpop.f32.mrf.mxu0
        %v3282 = vadd.f32 0.0, %v3281
        %v3283 = vpop.f32.mrf.mxu0
        %3284 = vmatprep.mubr.f32.mxu0 0.0
        %3285 = vmatmul.mubr.f32.gmra.mxu0 %v3083
        %v3286 = vpop.f32.mrf.mxu0
        %v3287 = vadd.f32 0.0, %v3286
        %v3288 = vpop.f32.mrf.mxu0
        %3289 = vmatprep.mubr.f32.mxu0 0.0
        %3290 = vmatmul.mubr.f32.gmra.mxu0 %v3086
        %v3291 = vpop.f32.mrf.mxu0
        %v3292 = vadd.f32 0.0, %v3291
        %v3293 = vpop.f32.mrf.mxu0
        %3294 = vmatprep.mubr.f32.mxu0 0.0
        %3295 = vmatmul.mubr.f32.gmra.mxu0 %v3089
        %v3296 = vpop.f32.mrf.mxu0
        %v3297 = vadd.f32 0.0, %v3296
        %v3298 = vpop.f32.mrf.mxu0
        %3299 = vmatprep.mubr.f32.mxu0 0.0
        %3300 = vmatmul.mubr.f32.gmra.mxu0 %v3092
        %v3301 = vpop.f32.mrf.mxu0
        %v3302 = vadd.f32 0.0, %v3301
        %v3303 = vpop.f32.mrf.mxu0
        %3304 = vmatprep.mubr.f32.mxu0 0.0
        %3305 = vmatmul.mubr.f32.gmra.mxu0 %v3095
        %v3306 = vpop.f32.mrf.mxu0
        %v3307 = vadd.f32 0.0, %v3306
        %v3308 = vpop.f32.mrf.mxu0
        %3309 = vmatprep.mubr.f32.mxu0 0.0
        %3310 = vmatmul.mubr.f32.gmra.mxu0 %v3098
        %v3311 = vpop.f32.mrf.mxu0
        %v3312 = vadd.f32 0.0, %v3311
        %v3313 = vpop.f32.mrf.mxu0
        %3314 = vmatprep.mubr.f32.mxu0 0.0
        %3315 = vmatmul.mubr.f32.gmra.mxu0 %v3101
        %v3316 = vpop.f32.mrf.mxu0
        %v3317 = vadd.f32 0.0, %v3316
        %v3318 = vpop.f32.mrf.mxu0
        %3319 = vmatprep.mubr.f32.mxu0 0.0
        %3320 = vmatmul.mubr.f32.gmra.mxu0 %v3104
        %v3321 = vpop.f32.mrf.mxu0
        %v3322 = vadd.f32 0.0, %v3321
        %v3323 = vpop.f32.mrf.mxu0
        %3324 = vmatprep.mubr.f32.mxu0 0.0
        %3325 = vmatmul.mubr.f32.gmra.mxu0 %v3107
        %v3326 = vpop.f32.mrf.mxu0
        %v3327 = vadd.f32 0.0, %v3326
        %v3328 = vpop.f32.mrf.mxu0
        %3329 = vmatprep.mubr.f32.mxu0 0.0
        %3330 = vmatmul.mubr.f32.gmra.mxu0 %v3110
        %v3331 = vpop.f32.mrf.mxu0
        %v3332 = vadd.f32 0.0, %v3331
        %v3333 = vpop.f32.mrf.mxu0
        %3334 = vmatprep.mubr.f32.mxu0 0.0
        %3335 = vmatmul.mubr.f32.gmra.mxu0 %v3113
        %v3336 = vpop.f32.mrf.mxu0
        %v3337 = vadd.f32 0.0, %v3336
        %v3338 = vpop.f32.mrf.mxu0
        %3339 = vdwg.mxu0
        %v3340 = vadd.f32 %v2987, %v3182
        %v3341 = vadd.f32 %v2988, %v3187
        %v3342 = vadd.f32 %v2989, %v3192
        %v3343 = vadd.f32 %v2990, %v3197
        %v3344 = vadd.f32 %v2991, %v3202
        %v3345 = vadd.f32 %v2992, %v3207
        %v3346 = vadd.f32 %v2993, %v3212
        %v3347 = vadd.f32 %v2994, %v3217
        %v3348 = vadd.f32 %v2995, %v3222
        %v3349 = vadd.f32 %v2996, %v3227
        %v3350 = vadd.f32 %v2997, %v3232
        %v3351 = vadd.f32 %v2998, %v3237
        %v3352 = vadd.f32 %v2999, %v3242
        %v3353 = vadd.f32 %v3000, %v3247
        %v3354 = vadd.f32 %v3001, %v3252
        %v3355 = vadd.f32 %v3002, %v3257
        %v3356 = vadd.f32 %v3003, %v3262
        %v3357 = vadd.f32 %v3004, %v3267
        %v3358 = vadd.f32 %v3005, %v3272
        %v3359 = vadd.f32 %v3006, %v3277
        %v3360 = vadd.f32 %v3007, %v3282
        %v3361 = vadd.f32 %v3008, %v3287
        %v3362 = vadd.f32 %v3009, %v3292
        %v3363 = vadd.f32 %v3010, %v3297
        %v3364 = vadd.f32 %v3011, %v3302
        %v3365 = vadd.f32 %v3012, %v3307
        %v3366 = vadd.f32 %v3013, %v3312
        %v3367 = vadd.f32 %v3014, %v3317
        %v3368 = vadd.f32 %v3015, %v3322
        %v3369 = vadd.f32 %v3016, %v3327
        %v3370 = vadd.f32 %v3017, %v3332
        %v3371 = vadd.f32 %v3018, %v3337
        %v3373 = vlaneseq
        %v3374 = vshrl.u32 %v3373, 7
        %v3375 = vsub.s32 0, %v3374
        %v3376 = vrot.slane %v532, %v3375
        %v3378 = vadd.f32 %v3340, %v3376
        %v3379 = vadd.f32 %v3341, %v3376
        %v3380 = vadd.f32 %v3342, %v3376
        %v3381 = vadd.f32 %v3343, %v3376
        %v3382 = vadd.f32 %v3344, %v3376
        %v3383 = vadd.f32 %v3345, %v3376
        %v3384 = vadd.f32 %v3346, %v3376
        %v3385 = vadd.f32 %v3347, %v3376
        %v3386 = vadd.f32 %v3348, %v3376
        %v3387 = vadd.f32 %v3349, %v3376
        %v3388 = vadd.f32 %v3350, %v3376
        %v3389 = vadd.f32 %v3351, %v3376
        %v3390 = vadd.f32 %v3352, %v3376
        %v3391 = vadd.f32 %v3353, %v3376
        %v3392 = vadd.f32 %v3354, %v3376
        %v3393 = vadd.f32 %v3355, %v3376
        %v3394 = vadd.f32 %v3356, %v3376
        %v3395 = vadd.f32 %v3357, %v3376
        %v3396 = vadd.f32 %v3358, %v3376
        %v3397 = vadd.f32 %v3359, %v3376
        %v3398 = vadd.f32 %v3360, %v3376
        %v3399 = vadd.f32 %v3361, %v3376
        %v3400 = vadd.f32 %v3362, %v3376
        %v3401 = vadd.f32 %v3363, %v3376
        %v3402 = vadd.f32 %v3364, %v3376
        %v3403 = vadd.f32 %v3365, %v3376
        %v3404 = vadd.f32 %v3366, %v3376
        %v3405 = vadd.f32 %v3367, %v3376
        %v3406 = vadd.f32 %v3368, %v3376
        %v3407 = vadd.f32 %v3369, %v3376
        %v3408 = vadd.f32 %v3370, %v3376
        %v3409 = vadd.f32 %v3371, %v3376
        %vm3410 = vcmp.gt.f32.partialorder %v3378, 0.0
        %vm3411 = vcmp.gt.f32.partialorder %v3379, 0.0
        %vm3412 = vcmp.gt.f32.partialorder %v3380, 0.0
        %vm3413 = vcmp.gt.f32.partialorder %v3381, 0.0
        %vm3414 = vcmp.gt.f32.partialorder %v3382, 0.0
        %vm3415 = vcmp.gt.f32.partialorder %v3383, 0.0
        %vm3416 = vcmp.gt.f32.partialorder %v3384, 0.0
        %vm3417 = vcmp.gt.f32.partialorder %v3385, 0.0
        %vm3418 = vcmp.gt.f32.partialorder %v3386, 0.0
        %vm3419 = vcmp.gt.f32.partialorder %v3387, 0.0
        %vm3420 = vcmp.gt.f32.partialorder %v3388, 0.0
        %vm3421 = vcmp.gt.f32.partialorder %v3389, 0.0
        %vm3422 = vcmp.gt.f32.partialorder %v3390, 0.0
        %vm3423 = vcmp.gt.f32.partialorder %v3391, 0.0
        %vm3424 = vcmp.gt.f32.partialorder %v3392, 0.0
        %vm3425 = vcmp.gt.f32.partialorder %v3393, 0.0
        %vm3426 = vcmp.gt.f32.partialorder %v3394, 0.0
        %vm3427 = vcmp.gt.f32.partialorder %v3395, 0.0
        %vm3428 = vcmp.gt.f32.partialorder %v3396, 0.0
        %vm3429 = vcmp.gt.f32.partialorder %v3397, 0.0
        %vm3430 = vcmp.gt.f32.partialorder %v3398, 0.0
        %vm3431 = vcmp.gt.f32.partialorder %v3399, 0.0
        %vm3432 = vcmp.gt.f32.partialorder %v3400, 0.0
        %vm3433 = vcmp.gt.f32.partialorder %v3401, 0.0
        %vm3434 = vcmp.gt.f32.partialorder %v3402, 0.0
        %vm3435 = vcmp.gt.f32.partialorder %v3403, 0.0
        %vm3436 = vcmp.gt.f32.partialorder %v3404, 0.0
        %vm3437 = vcmp.gt.f32.partialorder %v3405, 0.0
        %vm3438 = vcmp.gt.f32.partialorder %v3406, 0.0
        %vm3439 = vcmp.gt.f32.partialorder %v3407, 0.0
        %vm3440 = vcmp.gt.f32.partialorder %v3408, 0.0
        %vm3441 = vcmp.gt.f32.partialorder %v3409, 0.0
        %v3442 = vmin.f32 %v3378, 0.0
        %v3443 = vmin.f32 %v3379, 0.0
        %v3444 = vmin.f32 %v3380, 0.0
        %v3445 = vmin.f32 %v3381, 0.0
        %v3446 = vmin.f32 %v3382, 0.0
        %v3447 = vmin.f32 %v3383, 0.0
        %v3448 = vmin.f32 %v3384, 0.0
        %v3449 = vmin.f32 %v3385, 0.0
        %v3450 = vmin.f32 %v3386, 0.0
        %v3451 = vmin.f32 %v3387, 0.0
        %v3452 = vmin.f32 %v3388, 0.0
        %v3453 = vmin.f32 %v3389, 0.0
        %v3454 = vmin.f32 %v3390, 0.0
        %v3455 = vmin.f32 %v3391, 0.0
        %v3456 = vmin.f32 %v3392, 0.0
        %v3457 = vmin.f32 %v3393, 0.0
        %v3458 = vmin.f32 %v3394, 0.0
        %v3459 = vmin.f32 %v3395, 0.0
        %v3460 = vmin.f32 %v3396, 0.0
        %v3461 = vmin.f32 %v3397, 0.0
        %v3462 = vmin.f32 %v3398, 0.0
        %v3463 = vmin.f32 %v3399, 0.0
        %v3464 = vmin.f32 %v3400, 0.0
        %v3465 = vmin.f32 %v3401, 0.0
        %v3466 = vmin.f32 %v3402, 0.0
        %v3467 = vmin.f32 %v3403, 0.0
        %v3468 = vmin.f32 %v3404, 0.0
        %v3469 = vmin.f32 %v3405, 0.0
        %v3470 = vmin.f32 %v3406, 0.0
        %v3471 = vmin.f32 %v3407, 0.0
        %v3472 = vmin.f32 %v3408, 0.0
        %v3473 = vmin.f32 %v3409, 0.0
        %v3474 = vmul.f32 %v3442, 1.442695
        %v3475 = vpow.pop %v3474
        %v3476 = vmul.f32 %v3443, 1.442695
        %v3477 = vpow.pop %v3476
        %v3478 = vmul.f32 %v3444, 1.442695
        %v3479 = vpow.pop %v3478
        %v3480 = vmul.f32 %v3445, 1.442695
        %v3481 = vpow.pop %v3480
        %v3482 = vmul.f32 %v3446, 1.442695
        %v3483 = vpow.pop %v3482
        %v3484 = vmul.f32 %v3447, 1.442695
        %v3485 = vpow.pop %v3484
        %v3486 = vmul.f32 %v3448, 1.442695
        %v3487 = vpow.pop %v3486
        %v3488 = vmul.f32 %v3449, 1.442695
        %v3489 = vpow.pop %v3488
        %v3490 = vmul.f32 %v3450, 1.442695
        %v3491 = vpow.pop %v3490
        %v3492 = vmul.f32 %v3451, 1.442695
        %v3493 = vpow.pop %v3492
        %v3494 = vmul.f32 %v3452, 1.442695
        %v3495 = vpow.pop %v3494
        %v3496 = vmul.f32 %v3453, 1.442695
        %v3497 = vpow.pop %v3496
        %v3498 = vmul.f32 %v3454, 1.442695
        %v3499 = vpow.pop %v3498
        %v3500 = vmul.f32 %v3455, 1.442695
        %v3501 = vpow.pop %v3500
        %v3502 = vmul.f32 %v3456, 1.442695
        %v3503 = vpow.pop %v3502
        %v3504 = vmul.f32 %v3457, 1.442695
        %v3505 = vpow.pop %v3504
        %v3506 = vmul.f32 %v3458, 1.442695
        %v3507 = vpow.pop %v3506
        %v3508 = vmul.f32 %v3459, 1.442695
        %v3509 = vpow.pop %v3508
        %v3510 = vmul.f32 %v3460, 1.442695
        %v3511 = vpow.pop %v3510
        %v3512 = vmul.f32 %v3461, 1.442695
        %v3513 = vpow.pop %v3512
        %v3514 = vmul.f32 %v3462, 1.442695
        %v3515 = vpow.pop %v3514
        %v3516 = vmul.f32 %v3463, 1.442695
        %v3517 = vpow.pop %v3516
        %v3518 = vmul.f32 %v3464, 1.442695
        %v3519 = vpow.pop %v3518
        %v3520 = vmul.f32 %v3465, 1.442695
        %v3521 = vpow.pop %v3520
        %v3522 = vmul.f32 %v3466, 1.442695
        %v3523 = vpow.pop %v3522
        %v3524 = vmul.f32 %v3467, 1.442695
        %v3525 = vpow.pop %v3524
        %v3526 = vmul.f32 %v3468, 1.442695
        %v3527 = vpow.pop %v3526
        %v3528 = vmul.f32 %v3469, 1.442695
        %v3529 = vpow.pop %v3528
        %v3530 = vmul.f32 %v3470, 1.442695
        %v3531 = vpow.pop %v3530
        %v3532 = vmul.f32 %v3471, 1.442695
        %v3533 = vpow.pop %v3532
        %v3534 = vmul.f32 %v3472, 1.442695
        %v3535 = vpow.pop %v3534
        %v3536 = vmul.f32 %v3473, 1.442695
        %v3537 = vpow.pop %v3536
        %v3538 = vsub.f32 %v3475, 1.0
        %v3539 = vsub.f32 %v3477, 1.0
        %v3540 = vsub.f32 %v3479, 1.0
        %v3541 = vsub.f32 %v3481, 1.0
        %v3542 = vsub.f32 %v3483, 1.0
        %v3543 = vsub.f32 %v3485, 1.0
        %v3544 = vsub.f32 %v3487, 1.0
        %v3545 = vsub.f32 %v3489, 1.0
        %v3546 = vsub.f32 %v3491, 1.0
        %v3547 = vsub.f32 %v3493, 1.0
        %v3548 = vsub.f32 %v3495, 1.0
        %v3549 = vsub.f32 %v3497, 1.0
        %v3550 = vsub.f32 %v3499, 1.0
        %v3551 = vsub.f32 %v3501, 1.0
        %v3552 = vsub.f32 %v3503, 1.0
        %v3553 = vsub.f32 %v3505, 1.0
        %v3554 = vsub.f32 %v3507, 1.0
        %v3555 = vsub.f32 %v3509, 1.0
        %v3556 = vsub.f32 %v3511, 1.0
        %v3557 = vsub.f32 %v3513, 1.0
        %v3558 = vsub.f32 %v3515, 1.0
        %v3559 = vsub.f32 %v3517, 1.0
        %v3560 = vsub.f32 %v3519, 1.0
        %v3561 = vsub.f32 %v3521, 1.0
        %v3562 = vsub.f32 %v3523, 1.0
        %v3563 = vsub.f32 %v3525, 1.0
        %v3564 = vsub.f32 %v3527, 1.0
        %v3565 = vsub.f32 %v3529, 1.0
        %v3566 = vsub.f32 %v3531, 1.0
        %v3567 = vsub.f32 %v3533, 1.0
        %v3568 = vsub.f32 %v3535, 1.0
        %v3569 = vsub.f32 %v3537, 1.0
        %v3570 = vmul.f32 %v3538, 1.6732632
        %v3571 = vmul.f32 %v3539, 1.6732632
        %v3572 = vmul.f32 %v3540, 1.6732632
        %v3573 = vmul.f32 %v3541, 1.6732632
        %v3574 = vmul.f32 %v3542, 1.6732632
        %v3575 = vmul.f32 %v3543, 1.6732632
        %v3576 = vmul.f32 %v3544, 1.6732632
        %v3577 = vmul.f32 %v3545, 1.6732632
        %v3578 = vmul.f32 %v3546, 1.6732632
        %v3579 = vmul.f32 %v3547, 1.6732632
        %v3580 = vmul.f32 %v3548, 1.6732632
        %v3581 = vmul.f32 %v3549, 1.6732632
        %v3582 = vmul.f32 %v3550, 1.6732632
        %v3583 = vmul.f32 %v3551, 1.6732632
        %v3584 = vmul.f32 %v3552, 1.6732632
        %v3585 = vmul.f32 %v3553, 1.6732632
        %v3586 = vmul.f32 %v3554, 1.6732632
        %v3587 = vmul.f32 %v3555, 1.6732632
        %v3588 = vmul.f32 %v3556, 1.6732632
        %v3589 = vmul.f32 %v3557, 1.6732632
        %v3590 = vmul.f32 %v3558, 1.6732632
        %v3591 = vmul.f32 %v3559, 1.6732632
        %v3592 = vmul.f32 %v3560, 1.6732632
        %v3593 = vmul.f32 %v3561, 1.6732632
        %v3594 = vmul.f32 %v3562, 1.6732632
        %v3595 = vmul.f32 %v3563, 1.6732632
        %v3596 = vmul.f32 %v3564, 1.6732632
        %v3597 = vmul.f32 %v3565, 1.6732632
        %v3598 = vmul.f32 %v3566, 1.6732632
        %v3599 = vmul.f32 %v3567, 1.6732632
        %v3600 = vmul.f32 %v3568, 1.6732632
        %v3601 = vmul.f32 %v3569, 1.6732632
        %v3602 = vsel %vm3410, %v3378, %v3570
        %v3603 = vsel %vm3411, %v3379, %v3571
        %v3604 = vsel %vm3412, %v3380, %v3572
        %v3605 = vsel %vm3413, %v3381, %v3573
        %v3606 = vsel %vm3414, %v3382, %v3574
        %v3607 = vsel %vm3415, %v3383, %v3575
        %v3608 = vsel %vm3416, %v3384, %v3576
        %v3609 = vsel %vm3417, %v3385, %v3577
        %v3610 = vsel %vm3418, %v3386, %v3578
        %v3611 = vsel %vm3419, %v3387, %v3579
        %v3612 = vsel %vm3420, %v3388, %v3580
        %v3613 = vsel %vm3421, %v3389, %v3581
        %v3614 = vsel %vm3422, %v3390, %v3582
        %v3615 = vsel %vm3423, %v3391, %v3583
        %v3616 = vsel %vm3424, %v3392, %v3584
        %v3617 = vsel %vm3425, %v3393, %v3585
        %v3618 = vsel %vm3426, %v3394, %v3586
        %v3619 = vsel %vm3427, %v3395, %v3587
        %v3620 = vsel %vm3428, %v3396, %v3588
        %v3621 = vsel %vm3429, %v3397, %v3589
        %v3622 = vsel %vm3430, %v3398, %v3590
        %v3623 = vsel %vm3431, %v3399, %v3591
        %v3624 = vsel %vm3432, %v3400, %v3592
        %v3625 = vsel %vm3433, %v3401, %v3593
        %v3626 = vsel %vm3434, %v3402, %v3594
        %v3627 = vsel %vm3435, %v3403, %v3595
        %v3628 = vsel %vm3436, %v3404, %v3596
        %v3629 = vsel %vm3437, %v3405, %v3597
        %v3630 = vsel %vm3438, %v3406, %v3598
        %v3631 = vsel %vm3439, %v3407, %v3599
        %v3632 = vsel %vm3440, %v3408, %v3600
        %v3633 = vsel %vm3441, %v3409, %v3601
        %v3634 = vmul.f32 %v3602, 1.050701
        %v3635 = vmul.f32 %v3603, 1.050701
        %v3636 = vmul.f32 %v3604, 1.050701
        %v3637 = vmul.f32 %v3605, 1.050701
        %v3638 = vmul.f32 %v3606, 1.050701
        %v3639 = vmul.f32 %v3607, 1.050701
        %v3640 = vmul.f32 %v3608, 1.050701
        %v3641 = vmul.f32 %v3609, 1.050701
        %v3642 = vmul.f32 %v3610, 1.050701
        %v3643 = vmul.f32 %v3611, 1.050701
        %v3644 = vmul.f32 %v3612, 1.050701
        %v3645 = vmul.f32 %v3613, 1.050701
        %v3646 = vmul.f32 %v3614, 1.050701
        %v3647 = vmul.f32 %v3615, 1.050701
        %v3648 = vmul.f32 %v3616, 1.050701
        %v3649 = vmul.f32 %v3617, 1.050701
        %v3650 = vmul.f32 %v3618, 1.050701
        %v3651 = vmul.f32 %v3619, 1.050701
        %v3652 = vmul.f32 %v3620, 1.050701
        %v3653 = vmul.f32 %v3621, 1.050701
        %v3654 = vmul.f32 %v3622, 1.050701
        %v3655 = vmul.f32 %v3623, 1.050701
        %v3656 = vmul.f32 %v3624, 1.050701
        %v3657 = vmul.f32 %v3625, 1.050701
        %v3658 = vmul.f32 %v3626, 1.050701
        %v3659 = vmul.f32 %v3627, 1.050701
        %v3660 = vmul.f32 %v3628, 1.050701
        %v3661 = vmul.f32 %v3629, 1.050701
        %v3662 = vmul.f32 %v3630, 1.050701
        %v3663 = vmul.f32 %v3631, 1.050701
        %v3664 = vmul.f32 %v3632, 1.050701
        %v3665 = vmul.f32 %v3633, 1.050701
        %v3666 = vsel %vm602, %v3634, 0.0
        %3667 = vadd.xlane.f32.xlu0 %v3666
        %v3668 = vpop.xlane.xlu0 %3667
        %v3669 = vsel %vm602, %v3635, 0.0
        %3670 = vadd.xlane.f32.xlu0 %v3669
        %v3671 = vpop.xlane.xlu0 %3670
        %v3672 = vsel %vm602, %v3636, 0.0
        %3673 = vadd.xlane.f32.xlu0 %v3672
        %v3674 = vpop.xlane.xlu0 %3673
        %v3675 = vsel %vm602, %v3637, 0.0
        %3676 = vadd.xlane.f32.xlu0 %v3675
        %v3677 = vpop.xlane.xlu0 %3676
        %v3678 = vsel %vm602, %v3638, 0.0
        %3679 = vadd.xlane.f32.xlu0 %v3678
        %v3680 = vpop.xlane.xlu0 %3679
        %v3681 = vsel %vm602, %v3639, 0.0
        %3682 = vadd.xlane.f32.xlu0 %v3681
        %v3683 = vpop.xlane.xlu0 %3682
        %v3684 = vsel %vm602, %v3640, 0.0
        %3685 = vadd.xlane.f32.xlu0 %v3684
        %v3686 = vpop.xlane.xlu0 %3685
        %v3687 = vsel %vm602, %v3641, 0.0
        %3688 = vadd.xlane.f32.xlu0 %v3687
        %v3689 = vpop.xlane.xlu0 %3688
        %v3690 = vsel %vm602, %v3642, 0.0
        %3691 = vadd.xlane.f32.xlu0 %v3690
        %v3692 = vpop.xlane.xlu0 %3691
        %v3693 = vsel %vm602, %v3643, 0.0
        %3694 = vadd.xlane.f32.xlu0 %v3693
        %v3695 = vpop.xlane.xlu0 %3694
        %v3696 = vsel %vm602, %v3644, 0.0
        %3697 = vadd.xlane.f32.xlu0 %v3696
        %v3698 = vpop.xlane.xlu0 %3697
        %v3699 = vsel %vm602, %v3645, 0.0
        %3700 = vadd.xlane.f32.xlu0 %v3699
        %v3701 = vpop.xlane.xlu0 %3700
        %v3702 = vsel %vm602, %v3646, 0.0
        %3703 = vadd.xlane.f32.xlu0 %v3702
        %v3704 = vpop.xlane.xlu0 %3703
        %v3705 = vsel %vm602, %v3647, 0.0
        %3706 = vadd.xlane.f32.xlu0 %v3705
        %v3707 = vpop.xlane.xlu0 %3706
        %v3708 = vsel %vm602, %v3648, 0.0
        %3709 = vadd.xlane.f32.xlu0 %v3708
        %v3710 = vpop.xlane.xlu0 %3709
        %v3711 = vsel %vm602, %v3649, 0.0
        %3712 = vadd.xlane.f32.xlu0 %v3711
        %v3713 = vpop.xlane.xlu0 %3712
        %v3714 = vsel %vm602, %v3650, 0.0
        %3715 = vadd.xlane.f32.xlu0 %v3714
        %v3716 = vpop.xlane.xlu0 %3715
        %v3717 = vsel %vm602, %v3651, 0.0
        %3718 = vadd.xlane.f32.xlu0 %v3717
        %v3719 = vpop.xlane.xlu0 %3718
        %v3720 = vsel %vm602, %v3652, 0.0
        %3721 = vadd.xlane.f32.xlu0 %v3720
        %v3722 = vpop.xlane.xlu0 %3721
        %v3723 = vsel %vm602, %v3653, 0.0
        %3724 = vadd.xlane.f32.xlu0 %v3723
        %v3725 = vpop.xlane.xlu0 %3724
        %v3726 = vsel %vm602, %v3654, 0.0
        %3727 = vadd.xlane.f32.xlu0 %v3726
        %v3728 = vpop.xlane.xlu0 %3727
        %v3729 = vsel %vm602, %v3655, 0.0
        %3730 = vadd.xlane.f32.xlu0 %v3729
        %v3731 = vpop.xlane.xlu0 %3730
        %v3732 = vsel %vm602, %v3656, 0.0
        %3733 = vadd.xlane.f32.xlu0 %v3732
        %v3734 = vpop.xlane.xlu0 %3733
        %v3735 = vsel %vm602, %v3657, 0.0
        %3736 = vadd.xlane.f32.xlu0 %v3735
        %v3737 = vpop.xlane.xlu0 %3736
        %v3738 = vsel %vm602, %v3658, 0.0
        %3739 = vadd.xlane.f32.xlu0 %v3738
        %v3740 = vpop.xlane.xlu0 %3739
        %v3741 = vsel %vm602, %v3659, 0.0
        %3742 = vadd.xlane.f32.xlu0 %v3741
        %v3743 = vpop.xlane.xlu0 %3742
        %v3744 = vsel %vm602, %v3660, 0.0
        %3745 = vadd.xlane.f32.xlu0 %v3744
        %v3746 = vpop.xlane.xlu0 %3745
        %v3747 = vsel %vm602, %v3661, 0.0
        %3748 = vadd.xlane.f32.xlu0 %v3747
        %v3749 = vpop.xlane.xlu0 %3748
        %v3750 = vsel %vm602, %v3662, 0.0
        %3751 = vadd.xlane.f32.xlu0 %v3750
        %v3752 = vpop.xlane.xlu0 %3751
        %v3753 = vsel %vm602, %v3663, 0.0
        %3754 = vadd.xlane.f32.xlu0 %v3753
        %v3755 = vpop.xlane.xlu0 %3754
        %v3756 = vsel %vm602, %v3664, 0.0
        %3757 = vadd.xlane.f32.xlu0 %v3756
        %v3758 = vpop.xlane.xlu0 %3757
        %v3759 = vsel %vm602, %v3665, 0.0
        %3760 = vadd.xlane.f32.xlu0 %v3759
        %v3761 = vpop.xlane.xlu0 %3760
        %v3762 = vrcp.pop 32.0
        %v3763 = vmul.f32 %v3668, %v3762
        %v3764 = vmul.f32 %v3671, %v3762
        %v3765 = vmul.f32 %v3674, %v3762
        %v3766 = vmul.f32 %v3677, %v3762
        %v3767 = vmul.f32 %v3680, %v3762
        %v3768 = vmul.f32 %v3683, %v3762
        %v3769 = vmul.f32 %v3686, %v3762
        %v3770 = vmul.f32 %v3689, %v3762
        %v3771 = vmul.f32 %v3692, %v3762
        %v3772 = vmul.f32 %v3695, %v3762
        %v3773 = vmul.f32 %v3698, %v3762
        %v3774 = vmul.f32 %v3701, %v3762
        %v3775 = vmul.f32 %v3704, %v3762
        %v3776 = vmul.f32 %v3707, %v3762
        %v3777 = vmul.f32 %v3710, %v3762
        %v3778 = vmul.f32 %v3713, %v3762
        %v3779 = vmul.f32 %v3716, %v3762
        %v3780 = vmul.f32 %v3719, %v3762
        %v3781 = vmul.f32 %v3722, %v3762
        %v3782 = vmul.f32 %v3725, %v3762
        %v3783 = vmul.f32 %v3728, %v3762
        %v3784 = vmul.f32 %v3731, %v3762
        %v3785 = vmul.f32 %v3734, %v3762
        %v3786 = vmul.f32 %v3737, %v3762
        %v3787 = vmul.f32 %v3740, %v3762
        %v3788 = vmul.f32 %v3743, %v3762
        %v3789 = vmul.f32 %v3746, %v3762
        %v3790 = vmul.f32 %v3749, %v3762
        %v3791 = vmul.f32 %v3752, %v3762
        %v3792 = vmul.f32 %v3755, %v3762
        %v3793 = vmul.f32 %v3758, %v3762
        %v3794 = vmul.f32 %v3761, %v3762
        %v3795 = vsub.f32 %v3634, %v3763
        %v3796 = vsub.f32 %v3635, %v3764
        %v3797 = vsub.f32 %v3636, %v3765
        %v3798 = vsub.f32 %v3637, %v3766
        %v3799 = vsub.f32 %v3638, %v3767
        %v3800 = vsub.f32 %v3639, %v3768
        %v3801 = vsub.f32 %v3640, %v3769
        %v3802 = vsub.f32 %v3641, %v3770
        %v3803 = vsub.f32 %v3642, %v3771
        %v3804 = vsub.f32 %v3643, %v3772
        %v3805 = vsub.f32 %v3644, %v3773
        %v3806 = vsub.f32 %v3645, %v3774
        %v3807 = vsub.f32 %v3646, %v3775
        %v3808 = vsub.f32 %v3647, %v3776
        %v3809 = vsub.f32 %v3648, %v3777
        %v3810 = vsub.f32 %v3649, %v3778
        %v3811 = vsub.f32 %v3650, %v3779
        %v3812 = vsub.f32 %v3651, %v3780
        %v3813 = vsub.f32 %v3652, %v3781
        %v3814 = vsub.f32 %v3653, %v3782
        %v3815 = vsub.f32 %v3654, %v3783
        %v3816 = vsub.f32 %v3655, %v3784
        %v3817 = vsub.f32 %v3656, %v3785
        %v3818 = vsub.f32 %v3657, %v3786
        %v3819 = vsub.f32 %v3658, %v3787
        %v3820 = vsub.f32 %v3659, %v3788
        %v3821 = vsub.f32 %v3660, %v3789
        %v3822 = vsub.f32 %v3661, %v3790
        %v3823 = vsub.f32 %v3662, %v3791
        %v3824 = vsub.f32 %v3663, %v3792
        %v3825 = vsub.f32 %v3664, %v3793
        %v3826 = vsub.f32 %v3665, %v3794
        %v3827 = vmul.f32 %v3795, %v3795
        %v3828 = vmul.f32 %v3796, %v3796
        %v3829 = vmul.f32 %v3797, %v3797
        %v3830 = vmul.f32 %v3798, %v3798
        %v3831 = vmul.f32 %v3799, %v3799
        %v3832 = vmul.f32 %v3800, %v3800
        %v3833 = vmul.f32 %v3801, %v3801
        %v3834 = vmul.f32 %v3802, %v3802
        %v3835 = vmul.f32 %v3803, %v3803
        %v3836 = vmul.f32 %v3804, %v3804
        %v3837 = vmul.f32 %v3805, %v3805
        %v3838 = vmul.f32 %v3806, %v3806
        %v3839 = vmul.f32 %v3807, %v3807
        %v3840 = vmul.f32 %v3808, %v3808
        %v3841 = vmul.f32 %v3809, %v3809
        %v3842 = vmul.f32 %v3810, %v3810
        %v3843 = vmul.f32 %v3811, %v3811
        %v3844 = vmul.f32 %v3812, %v3812
        %v3845 = vmul.f32 %v3813, %v3813
        %v3846 = vmul.f32 %v3814, %v3814
        %v3847 = vmul.f32 %v3815, %v3815
        %v3848 = vmul.f32 %v3816, %v3816
        %v3849 = vmul.f32 %v3817, %v3817
        %v3850 = vmul.f32 %v3818, %v3818
        %v3851 = vmul.f32 %v3819, %v3819
        %v3852 = vmul.f32 %v3820, %v3820
        %v3853 = vmul.f32 %v3821, %v3821
        %v3854 = vmul.f32 %v3822, %v3822
        %v3855 = vmul.f32 %v3823, %v3823
        %v3856 = vmul.f32 %v3824, %v3824
        %v3857 = vmul.f32 %v3825, %v3825
        %v3858 = vmul.f32 %v3826, %v3826
        %v3859 = vsel %vm602, %v3827, 0.0
        %3860 = vadd.xlane.f32.xlu0 %v3859
        %v3861 = vpop.xlane.xlu0 %3860
        %v3862 = vsel %vm602, %v3828, 0.0
        %3863 = vadd.xlane.f32.xlu0 %v3862
        %v3864 = vpop.xlane.xlu0 %3863
        %v3865 = vsel %vm602, %v3829, 0.0
        %3866 = vadd.xlane.f32.xlu0 %v3865
        %v3867 = vpop.xlane.xlu0 %3866
        %v3868 = vsel %vm602, %v3830, 0.0
        %3869 = vadd.xlane.f32.xlu0 %v3868
        %v3870 = vpop.xlane.xlu0 %3869
        %v3871 = vsel %vm602, %v3831, 0.0
        %3872 = vadd.xlane.f32.xlu0 %v3871
        %v3873 = vpop.xlane.xlu0 %3872
        %v3874 = vsel %vm602, %v3832, 0.0
        %3875 = vadd.xlane.f32.xlu0 %v3874
        %v3876 = vpop.xlane.xlu0 %3875
        %v3877 = vsel %vm602, %v3833, 0.0
        %3878 = vadd.xlane.f32.xlu0 %v3877
        %v3879 = vpop.xlane.xlu0 %3878
        %v3880 = vsel %vm602, %v3834, 0.0
        %3881 = vadd.xlane.f32.xlu0 %v3880
        %v3882 = vpop.xlane.xlu0 %3881
        %v3883 = vsel %vm602, %v3835, 0.0
        %3884 = vadd.xlane.f32.xlu0 %v3883
        %v3885 = vpop.xlane.xlu0 %3884
        %v3886 = vsel %vm602, %v3836, 0.0
        %3887 = vadd.xlane.f32.xlu0 %v3886
        %v3888 = vpop.xlane.xlu0 %3887
        %v3889 = vsel %vm602, %v3837, 0.0
        %3890 = vadd.xlane.f32.xlu0 %v3889
        %v3891 = vpop.xlane.xlu0 %3890
        %v3892 = vsel %vm602, %v3838, 0.0
        %3893 = vadd.xlane.f32.xlu0 %v3892
        %v3894 = vpop.xlane.xlu0 %3893
        %v3895 = vsel %vm602, %v3839, 0.0
        %3896 = vadd.xlane.f32.xlu0 %v3895
        %v3897 = vpop.xlane.xlu0 %3896
        %v3898 = vsel %vm602, %v3840, 0.0
        %3899 = vadd.xlane.f32.xlu0 %v3898
        %v3900 = vpop.xlane.xlu0 %3899
        %v3901 = vsel %vm602, %v3841, 0.0
        %3902 = vadd.xlane.f32.xlu0 %v3901
        %v3903 = vpop.xlane.xlu0 %3902
        %v3904 = vsel %vm602, %v3842, 0.0
        %3905 = vadd.xlane.f32.xlu0 %v3904
        %v3906 = vpop.xlane.xlu0 %3905
        %v3907 = vsel %vm602, %v3843, 0.0
        %3908 = vadd.xlane.f32.xlu0 %v3907
        %v3909 = vpop.xlane.xlu0 %3908
        %v3910 = vsel %vm602, %v3844, 0.0
        %3911 = vadd.xlane.f32.xlu0 %v3910
        %v3912 = vpop.xlane.xlu0 %3911
        %v3913 = vsel %vm602, %v3845, 0.0
        %3914 = vadd.xlane.f32.xlu0 %v3913
        %v3915 = vpop.xlane.xlu0 %3914
        %v3916 = vsel %vm602, %v3846, 0.0
        %3917 = vadd.xlane.f32.xlu0 %v3916
        %v3918 = vpop.xlane.xlu0 %3917
        %v3919 = vsel %vm602, %v3847, 0.0
        %3920 = vadd.xlane.f32.xlu0 %v3919
        %v3921 = vpop.xlane.xlu0 %3920
        %v3922 = vsel %vm602, %v3848, 0.0
        %3923 = vadd.xlane.f32.xlu0 %v3922
        %v3924 = vpop.xlane.xlu0 %3923
        %v3925 = vsel %vm602, %v3849, 0.0
        %3926 = vadd.xlane.f32.xlu0 %v3925
        %v3927 = vpop.xlane.xlu0 %3926
        %v3928 = vsel %vm602, %v3850, 0.0
        %3929 = vadd.xlane.f32.xlu0 %v3928
        %v3930 = vpop.xlane.xlu0 %3929
        %v3931 = vsel %vm602, %v3851, 0.0
        %3932 = vadd.xlane.f32.xlu0 %v3931
        %v3933 = vpop.xlane.xlu0 %3932
        %v3934 = vsel %vm602, %v3852, 0.0
        %3935 = vadd.xlane.f32.xlu0 %v3934
        %v3936 = vpop.xlane.xlu0 %3935
        %v3937 = vsel %vm602, %v3853, 0.0
        %3938 = vadd.xlane.f32.xlu0 %v3937
        %v3939 = vpop.xlane.xlu0 %3938
        %v3940 = vsel %vm602, %v3854, 0.0
        %3941 = vadd.xlane.f32.xlu0 %v3940
        %v3942 = vpop.xlane.xlu0 %3941
        %v3943 = vsel %vm602, %v3855, 0.0
        %3944 = vadd.xlane.f32.xlu0 %v3943
        %v3945 = vpop.xlane.xlu0 %3944
        %v3946 = vsel %vm602, %v3856, 0.0
        %3947 = vadd.xlane.f32.xlu0 %v3946
        %v3948 = vpop.xlane.xlu0 %3947
        %v3949 = vsel %vm602, %v3857, 0.0
        %3950 = vadd.xlane.f32.xlu0 %v3949
        %v3951 = vpop.xlane.xlu0 %3950
        %v3952 = vsel %vm602, %v3858, 0.0
        %3953 = vadd.xlane.f32.xlu0 %v3952
        %v3954 = vpop.xlane.xlu0 %3953
        %v3955 = vmul.f32 %v3861, %v3762
        %v3956 = vmul.f32 %v3864, %v3762
        %v3957 = vmul.f32 %v3867, %v3762
        %v3958 = vmul.f32 %v3870, %v3762
        %v3959 = vmul.f32 %v3873, %v3762
        %v3960 = vmul.f32 %v3876, %v3762
        %v3961 = vmul.f32 %v3879, %v3762
        %v3962 = vmul.f32 %v3882, %v3762
        %v3963 = vmul.f32 %v3885, %v3762
        %v3964 = vmul.f32 %v3888, %v3762
        %v3965 = vmul.f32 %v3891, %v3762
        %v3966 = vmul.f32 %v3894, %v3762
        %v3967 = vmul.f32 %v3897, %v3762
        %v3968 = vmul.f32 %v3900, %v3762
        %v3969 = vmul.f32 %v3903, %v3762
        %v3970 = vmul.f32 %v3906, %v3762
        %v3971 = vmul.f32 %v3909, %v3762
        %v3972 = vmul.f32 %v3912, %v3762
        %v3973 = vmul.f32 %v3915, %v3762
        %v3974 = vmul.f32 %v3918, %v3762
        %v3975 = vmul.f32 %v3921, %v3762
        %v3976 = vmul.f32 %v3924, %v3762
        %v3977 = vmul.f32 %v3927, %v3762
        %v3978 = vmul.f32 %v3930, %v3762
        %v3979 = vmul.f32 %v3933, %v3762
        %v3980 = vmul.f32 %v3936, %v3762
        %v3981 = vmul.f32 %v3939, %v3762
        %v3982 = vmul.f32 %v3942, %v3762
        %v3983 = vmul.f32 %v3945, %v3762
        %v3984 = vmul.f32 %v3948, %v3762
        %v3985 = vmul.f32 %v3951, %v3762
        %v3986 = vmul.f32 %v3954, %v3762
        %v3987 = vadd.f32 %v3955, 1e-05
        %v3988 = vadd.f32 %v3956, 1e-05
        %v3989 = vadd.f32 %v3957, 1e-05
        %v3990 = vadd.f32 %v3958, 1e-05
        %v3991 = vadd.f32 %v3959, 1e-05
        %v3992 = vadd.f32 %v3960, 1e-05
        %v3993 = vadd.f32 %v3961, 1e-05
        %v3994 = vadd.f32 %v3962, 1e-05
        %v3995 = vadd.f32 %v3963, 1e-05
        %v3996 = vadd.f32 %v3964, 1e-05
        %v3997 = vadd.f32 %v3965, 1e-05
        %v3998 = vadd.f32 %v3966, 1e-05
        %v3999 = vadd.f32 %v3967, 1e-05
        %v4000 = vadd.f32 %v3968, 1e-05
        %v4001 = vadd.f32 %v3969, 1e-05
        %v4002 = vadd.f32 %v3970, 1e-05
        %v4003 = vadd.f32 %v3971, 1e-05
        %v4004 = vadd.f32 %v3972, 1e-05
        %v4005 = vadd.f32 %v3973, 1e-05
        %v4006 = vadd.f32 %v3974, 1e-05
        %v4007 = vadd.f32 %v3975, 1e-05
        %v4008 = vadd.f32 %v3976, 1e-05
        %v4009 = vadd.f32 %v3977, 1e-05
        %v4010 = vadd.f32 %v3978, 1e-05
        %v4011 = vadd.f32 %v3979, 1e-05
        %v4012 = vadd.f32 %v3980, 1e-05
        %v4013 = vadd.f32 %v3981, 1e-05
        %v4014 = vadd.f32 %v3982, 1e-05
        %v4015 = vadd.f32 %v3983, 1e-05
        %v4016 = vadd.f32 %v3984, 1e-05
        %v4017 = vadd.f32 %v3985, 1e-05
        %v4018 = vadd.f32 %v3986, 1e-05
        %v4019 = vrsqrt.pop %v3987
        %v4020 = vrsqrt.pop %v3988
        %v4021 = vrsqrt.pop %v3989
        %v4022 = vrsqrt.pop %v3990
        %v4023 = vrsqrt.pop %v3991
        %v4024 = vrsqrt.pop %v3992
        %v4025 = vrsqrt.pop %v3993
        %v4026 = vrsqrt.pop %v3994
        %v4027 = vrsqrt.pop %v3995
        %v4028 = vrsqrt.pop %v3996
        %v4029 = vrsqrt.pop %v3997
        %v4030 = vrsqrt.pop %v3998
        %v4031 = vrsqrt.pop %v3999
        %v4032 = vrsqrt.pop %v4000
        %v4033 = vrsqrt.pop %v4001
        %v4034 = vrsqrt.pop %v4002
        %v4035 = vrsqrt.pop %v4003
        %v4036 = vrsqrt.pop %v4004
        %v4037 = vrsqrt.pop %v4005
        %v4038 = vrsqrt.pop %v4006
        %v4039 = vrsqrt.pop %v4007
        %v4040 = vrsqrt.pop %v4008
        %v4041 = vrsqrt.pop %v4009
        %v4042 = vrsqrt.pop %v4010
        %v4043 = vrsqrt.pop %v4011
        %v4044 = vrsqrt.pop %v4012
        %v4045 = vrsqrt.pop %v4013
        %v4046 = vrsqrt.pop %v4014
        %v4047 = vrsqrt.pop %v4015
        %v4048 = vrsqrt.pop %v4016
        %v4049 = vrsqrt.pop %v4017
        %v4050 = vrsqrt.pop %v4018
        %v4051 = vmul.f32 %v3795, %v4019
        %v4052 = vmul.f32 %v3796, %v4020
        %v4053 = vmul.f32 %v3797, %v4021
        %v4054 = vmul.f32 %v3798, %v4022
        %v4055 = vmul.f32 %v3799, %v4023
        %v4056 = vmul.f32 %v3800, %v4024
        %v4057 = vmul.f32 %v3801, %v4025
        %v4058 = vmul.f32 %v3802, %v4026
        %v4059 = vmul.f32 %v3803, %v4027
        %v4060 = vmul.f32 %v3804, %v4028
        %v4061 = vmul.f32 %v3805, %v4029
        %v4062 = vmul.f32 %v3806, %v4030
        %v4063 = vmul.f32 %v3807, %v4031
        %v4064 = vmul.f32 %v3808, %v4032
        %v4065 = vmul.f32 %v3809, %v4033
        %v4066 = vmul.f32 %v3810, %v4034
        %v4067 = vmul.f32 %v3811, %v4035
        %v4068 = vmul.f32 %v3812, %v4036
        %v4069 = vmul.f32 %v3813, %v4037
        %v4070 = vmul.f32 %v3814, %v4038
        %v4071 = vmul.f32 %v3815, %v4039
        %v4072 = vmul.f32 %v3816, %v4040
        %v4073 = vmul.f32 %v3817, %v4041
        %v4074 = vmul.f32 %v3818, %v4042
        %v4075 = vmul.f32 %v3819, %v4043
        %v4076 = vmul.f32 %v3820, %v4044
        %v4077 = vmul.f32 %v3821, %v4045
        %v4078 = vmul.f32 %v3822, %v4046
        %v4079 = vmul.f32 %v3823, %v4047
        %v4080 = vmul.f32 %v3824, %v4048
        %v4081 = vmul.f32 %v3825, %v4049
        %v4082 = vmul.f32 %v3826, %v4050
        %v4084 = vlaneseq
        %v4085 = vshrl.u32 %v4084, 7
        %v4086 = vsub.s32 0, %v4085
        %v4087 = vrot.slane %v533, %v4086
        %v4089 = vmul.f32 %v4051, %v4087
        %v4090 = vmul.f32 %v4052, %v4087
        %v4091 = vmul.f32 %v4053, %v4087
        %v4092 = vmul.f32 %v4054, %v4087
        %v4093 = vmul.f32 %v4055, %v4087
        %v4094 = vmul.f32 %v4056, %v4087
        %v4095 = vmul.f32 %v4057, %v4087
        %v4096 = vmul.f32 %v4058, %v4087
        %v4097 = vmul.f32 %v4059, %v4087
        %v4098 = vmul.f32 %v4060, %v4087
        %v4099 = vmul.f32 %v4061, %v4087
        %v4100 = vmul.f32 %v4062, %v4087
        %v4101 = vmul.f32 %v4063, %v4087
        %v4102 = vmul.f32 %v4064, %v4087
        %v4103 = vmul.f32 %v4065, %v4087
        %v4104 = vmul.f32 %v4066, %v4087
        %v4105 = vmul.f32 %v4067, %v4087
        %v4106 = vmul.f32 %v4068, %v4087
        %v4107 = vmul.f32 %v4069, %v4087
        %v4108 = vmul.f32 %v4070, %v4087
        %v4109 = vmul.f32 %v4071, %v4087
        %v4110 = vmul.f32 %v4072, %v4087
        %v4111 = vmul.f32 %v4073, %v4087
        %v4112 = vmul.f32 %v4074, %v4087
        %v4113 = vmul.f32 %v4075, %v4087
        %v4114 = vmul.f32 %v4076, %v4087
        %v4115 = vmul.f32 %v4077, %v4087
        %v4116 = vmul.f32 %v4078, %v4087
        %v4117 = vmul.f32 %v4079, %v4087
        %v4118 = vmul.f32 %v4080, %v4087
        %v4119 = vmul.f32 %v4081, %v4087
        %v4120 = vmul.f32 %v4082, %v4087
        %v4122 = vlaneseq
        %v4123 = vshrl.u32 %v4122, 7
        %v4124 = vsub.s32 0, %v4123
        %v4125 = vrot.slane %v534, %v4124
        %v4127 = vadd.f32 %v4089, %v4125
        %v4128 = vadd.f32 %v4090, %v4125
        %v4129 = vadd.f32 %v4091, %v4125
        %v4130 = vadd.f32 %v4092, %v4125
        %v4131 = vadd.f32 %v4093, %v4125
        %v4132 = vadd.f32 %v4094, %v4125
        %v4133 = vadd.f32 %v4095, %v4125
        %v4134 = vadd.f32 %v4096, %v4125
        %v4135 = vadd.f32 %v4097, %v4125
        %v4136 = vadd.f32 %v4098, %v4125
        %v4137 = vadd.f32 %v4099, %v4125
        %v4138 = vadd.f32 %v4100, %v4125
        %v4139 = vadd.f32 %v4101, %v4125
        %v4140 = vadd.f32 %v4102, %v4125
        %v4141 = vadd.f32 %v4103, %v4125
        %v4142 = vadd.f32 %v4104, %v4125
        %v4143 = vadd.f32 %v4105, %v4125
        %v4144 = vadd.f32 %v4106, %v4125
        %v4145 = vadd.f32 %v4107, %v4125
        %v4146 = vadd.f32 %v4108, %v4125
        %v4147 = vadd.f32 %v4109, %v4125
        %v4148 = vadd.f32 %v4110, %v4125
        %v4149 = vadd.f32 %v4111, %v4125
        %v4150 = vadd.f32 %v4112, %v4125
        %v4151 = vadd.f32 %v4113, %v4125
        %v4152 = vadd.f32 %v4114, %v4125
        %v4153 = vadd.f32 %v4115, %v4125
        %v4154 = vadd.f32 %v4116, %v4125
        %v4155 = vadd.f32 %v4117, %v4125
        %v4156 = vadd.f32 %v4118, %v4125
        %v4157 = vadd.f32 %v4119, %v4125
        %v4158 = vadd.f32 %v4120, %v4125
        %v4159 = vld [vmem:[%s10] sm:$0xff]
        %v4160 = vld [vmem:[%s10 + $0x8] sm:$0xff]
        %v4161 = vld [vmem:[%s10 + $0x10] sm:$0xff]
        %v4162 = vld [vmem:[%s10 + $0x18] sm:$0xff]
        %v4163 = vld [vmem:[%s11] sm:$0x1]
        %v4164 = vld [vmem:[%s12] sm:$0x1]
        %v4165 = vld [vmem:[%s13] sm:$0x1]
        %v4167 = vlaneseq
        %v4168 = vshrl.u32 %v4167, 7
        %v4169 = vsub.s32 0, %v4168
        %v4170 = vrot.slane %v4163, %v4169
        %v4173 = vsel %vm602, %v4127, 0
        %v4176 = vsel %vm602, %v4128, 0
        %v4179 = vsel %vm602, %v4129, 0
        %v4182 = vsel %vm602, %v4130, 0
        %v4185 = vsel %vm602, %v4131, 0
        %v4188 = vsel %vm602, %v4132, 0
        %v4191 = vsel %vm602, %v4133, 0
        %v4194 = vsel %vm602, %v4134, 0
        %v4197 = vsel %vm602, %v4135, 0
        %v4200 = vsel %vm602, %v4136, 0
        %v4203 = vsel %vm602, %v4137, 0
        %v4206 = vsel %vm602, %v4138, 0
        %v4209 = vsel %vm602, %v4139, 0
        %v4212 = vsel %vm602, %v4140, 0
        %v4215 = vsel %vm602, %v4141, 0
        %v4218 = vsel %vm602, %v4142, 0
        %v4221 = vsel %vm602, %v4143, 0
        %v4224 = vsel %vm602, %v4144, 0
        %v4227 = vsel %vm602, %v4145, 0
        %v4230 = vsel %vm602, %v4146, 0
        %v4233 = vsel %vm602, %v4147, 0
        %v4236 = vsel %vm602, %v4148, 0
        %v4239 = vsel %vm602, %v4149, 0
        %v4242 = vsel %vm602, %v4150, 0
        %v4245 = vsel %vm602, %v4151, 0
        %v4248 = vsel %vm602, %v4152, 0
        %v4251 = vsel %vm602, %v4153, 0
        %v4254 = vsel %vm602, %v4154, 0
        %v4257 = vsel %vm602, %v4155, 0
        %v4260 = vsel %vm602, %v4156, 0
        %v4263 = vsel %vm602, %v4157, 0
        %v4266 = vsel %vm602, %v4158, 0
        %4268 = vmatprep.subr.mxu0 0.0
        %4269 = vmatpush1.msra.mxu0 0.0
        %4270 = vmatprep.subr.mxu0 0.0
        %4271 = vmatpush1.msra.mxu0 0.0
        %4272 = vmatprep.subr.mxu0 0.0
        %4273 = vmatpush1.msra.mxu0 0.0
        %4274 = vmatprep.subr.mxu0 0.0
        %4275 = vmatpush1.msra.mxu0 0.0
        %4276 = vmatprep.subr.mxu0 0.0
        %4277 = vmatpush1.msra.mxu0 0.0
        %4278 = vmatprep.subr.mxu0 0.0
        %4279 = vmatpush1.msra.mxu0 0.0
        %4280 = vmatprep.subr.mxu0 0.0
        %4281 = vmatpush1.msra.mxu0 0.0
        %4282 = vmatprep.subr.mxu0 0.0
        %4283 = vmatpush1.msra.mxu0 0.0
        %4284 = vmatprep.subr.mxu0 0.0
        %4285 = vmatpush1.msra.mxu0 0.0
        %4286 = vmatprep.subr.mxu0 0.0
        %4287 = vmatpush1.msra.mxu0 0.0
        %4288 = vmatprep.subr.mxu0 0.0
        %4289 = vmatpush1.msra.mxu0 0.0
        %4290 = vmatprep.subr.mxu0 0.0
        %4291 = vmatpush1.msra.mxu0 0.0
        %4292 = vmatprep.subr.mxu0 0.0
        %4293 = vmatpush1.msra.mxu0 %v4162
        %4294 = vmatprep.subr.mxu0 0.0
        %4295 = vmatpush1.msra.mxu0 %v4161
        %4296 = vmatprep.subr.mxu0 0.0
        %4297 = vmatpush1.msra.mxu0 %v4160
        %4298 = vmatprep.subr.mxu0 0.0
        %4299 = vmatpush1.msra.mxu0 %v4159
        %4300 = vmatprep.subr.mxu0 0.0
        %4301 = vmatpush2.msra.mxu0 0.0
        %4302 = vmatprep.subr.mxu0 0.0
        %4303 = vmatpush2.msra.mxu0 0.0
        %4304 = vmatprep.subr.mxu0 0.0
        %4305 = vmatpush2.msra.mxu0 0.0
        %4306 = vmatprep.subr.mxu0 0.0
        %4307 = vmatpush2.msra.mxu0 0.0
        %4308 = vmatprep.subr.mxu0 0.0
        %4309 = vmatpush2.msra.mxu0 0.0
        %4310 = vmatprep.subr.mxu0 0.0
        %4311 = vmatpush2.msra.mxu0 0.0
        %4312 = vmatprep.subr.mxu0 0.0
        %4313 = vmatpush2.msra.mxu0 0.0
        %4314 = vmatprep.subr.mxu0 0.0
        %4315 = vmatpush2.msra.mxu0 0.0
        %4316 = vmatprep.subr.mxu0 0.0
        %4317 = vmatpush2.msra.mxu0 0.0
        %4318 = vmatprep.subr.mxu0 0.0
        %4319 = vmatpush2.msra.mxu0 0.0
        %4320 = vmatprep.subr.mxu0 0.0
        %4321 = vmatpush2.msra.mxu0 0.0
        %4322 = vmatprep.subr.mxu0 0.0
        %4323 = vmatpush2.msra.mxu0 0.0
        %4324 = vmatprep.subr.mxu0 0.0
        %4325 = vmatpush2.msra.mxu0 0.0
        %4326 = vmatprep.subr.mxu0 0.0
        %4327 = vmatpush2.msra.mxu0 0.0
        %4328 = vmatprep.subr.mxu0 0.0
        %4329 = vmatpush2.msra.mxu0 0.0
        %4330 = vmatprep.subr.mxu0 0.0
        %4331 = vmatpush2.msra.mxu0 0.0
        %4332 = vmatprep.mubr.f32.mxu0 0.0
        %4333 = vmatmul.mubr.f32.gmra.mxu0 %v4173
        %v4334 = vpop.f32.mrf.mxu0
        %v4335 = vadd.f32 %v4170, %v4334
        %v4336 = vpop.f32.mrf.mxu0
        %4337 = vmatprep.mubr.f32.mxu0 0.0
        %4338 = vmatmul.mubr.f32.gmra.mxu0 %v4176
        %v4339 = vpop.f32.mrf.mxu0
        %v4340 = vadd.f32 %v4170, %v4339
        %v4341 = vpop.f32.mrf.mxu0
        %4342 = vmatprep.mubr.f32.mxu0 0.0
        %4343 = vmatmul.mubr.f32.gmra.mxu0 %v4179
        %v4344 = vpop.f32.mrf.mxu0
        %v4345 = vadd.f32 %v4170, %v4344
        %v4346 = vpop.f32.mrf.mxu0
        %4347 = vmatprep.mubr.f32.mxu0 0.0
        %4348 = vmatmul.mubr.f32.gmra.mxu0 %v4182
        %v4349 = vpop.f32.mrf.mxu0
        %v4350 = vadd.f32 %v4170, %v4349
        %v4351 = vpop.f32.mrf.mxu0
        %4352 = vmatprep.mubr.f32.mxu0 0.0
        %4353 = vmatmul.mubr.f32.gmra.mxu0 %v4185
        %v4354 = vpop.f32.mrf.mxu0
        %v4355 = vadd.f32 %v4170, %v4354
        %v4356 = vpop.f32.mrf.mxu0
        %4357 = vmatprep.mubr.f32.mxu0 0.0
        %4358 = vmatmul.mubr.f32.gmra.mxu0 %v4188
        %v4359 = vpop.f32.mrf.mxu0
        %v4360 = vadd.f32 %v4170, %v4359
        %v4361 = vpop.f32.mrf.mxu0
        %4362 = vmatprep.mubr.f32.mxu0 0.0
        %4363 = vmatmul.mubr.f32.gmra.mxu0 %v4191
        %v4364 = vpop.f32.mrf.mxu0
        %v4365 = vadd.f32 %v4170, %v4364
        %v4366 = vpop.f32.mrf.mxu0
        %4367 = vmatprep.mubr.f32.mxu0 0.0
        %4368 = vmatmul.mubr.f32.gmra.mxu0 %v4194
        %v4369 = vpop.f32.mrf.mxu0
        %v4370 = vadd.f32 %v4170, %v4369
        %v4371 = vpop.f32.mrf.mxu0
        %4372 = vmatprep.mubr.f32.mxu0 0.0
        %4373 = vmatmul.mubr.f32.gmra.mxu0 %v4197
        %v4374 = vpop.f32.mrf.mxu0
        %v4375 = vadd.f32 %v4170, %v4374
        %v4376 = vpop.f32.mrf.mxu0
        %4377 = vmatprep.mubr.f32.mxu0 0.0
        %4378 = vmatmul.mubr.f32.gmra.mxu0 %v4200
        %v4379 = vpop.f32.mrf.mxu0
        %v4380 = vadd.f32 %v4170, %v4379
        %v4381 = vpop.f32.mrf.mxu0
        %4382 = vmatprep.mubr.f32.mxu0 0.0
        %4383 = vmatmul.mubr.f32.gmra.mxu0 %v4203
        %v4384 = vpop.f32.mrf.mxu0
        %v4385 = vadd.f32 %v4170, %v4384
        %v4386 = vpop.f32.mrf.mxu0
        %4387 = vmatprep.mubr.f32.mxu0 0.0
        %4388 = vmatmul.mubr.f32.gmra.mxu0 %v4206
        %v4389 = vpop.f32.mrf.mxu0
        %v4390 = vadd.f32 %v4170, %v4389
        %v4391 = vpop.f32.mrf.mxu0
        %4392 = vmatprep.mubr.f32.mxu0 0.0
        %4393 = vmatmul.mubr.f32.gmra.mxu0 %v4209
        %v4394 = vpop.f32.mrf.mxu0
        %v4395 = vadd.f32 %v4170, %v4394
        %v4396 = vpop.f32.mrf.mxu0
        %4397 = vmatprep.mubr.f32.mxu0 0.0
        %4398 = vmatmul.mubr.f32.gmra.mxu0 %v4212
        %v4399 = vpop.f32.mrf.mxu0
        %v4400 = vadd.f32 %v4170, %v4399
        %v4401 = vpop.f32.mrf.mxu0
        %4402 = vmatprep.mubr.f32.mxu0 0.0
        %4403 = vmatmul.mubr.f32.gmra.mxu0 %v4215
        %v4404 = vpop.f32.mrf.mxu0
        %v4405 = vadd.f32 %v4170, %v4404
        %v4406 = vpop.f32.mrf.mxu0
        %4407 = vmatprep.mubr.f32.mxu0 0.0
        %4408 = vmatmul.mubr.f32.gmra.mxu0 %v4218
        %v4409 = vpop.f32.mrf.mxu0
        %v4410 = vadd.f32 %v4170, %v4409
        %v4411 = vpop.f32.mrf.mxu0
        %4412 = vmatprep.mubr.f32.mxu0 0.0
        %4413 = vmatmul.mubr.f32.gmra.mxu0 %v4221
        %v4414 = vpop.f32.mrf.mxu0
        %v4415 = vadd.f32 %v4170, %v4414
        %v4416 = vpop.f32.mrf.mxu0
        %4417 = vmatprep.mubr.f32.mxu0 0.0
        %4418 = vmatmul.mubr.f32.gmra.mxu0 %v4224
        %v4419 = vpop.f32.mrf.mxu0
        %v4420 = vadd.f32 %v4170, %v4419
        %v4421 = vpop.f32.mrf.mxu0
        %4422 = vmatprep.mubr.f32.mxu0 0.0
        %4423 = vmatmul.mubr.f32.gmra.mxu0 %v4227
        %v4424 = vpop.f32.mrf.mxu0
        %v4425 = vadd.f32 %v4170, %v4424
        %v4426 = vpop.f32.mrf.mxu0
        %4427 = vmatprep.mubr.f32.mxu0 0.0
        %4428 = vmatmul.mubr.f32.gmra.mxu0 %v4230
        %v4429 = vpop.f32.mrf.mxu0
        %v4430 = vadd.f32 %v4170, %v4429
        %v4431 = vpop.f32.mrf.mxu0
        %4432 = vmatprep.mubr.f32.mxu0 0.0
        %4433 = vmatmul.mubr.f32.gmra.mxu0 %v4233
        %v4434 = vpop.f32.mrf.mxu0
        %v4435 = vadd.f32 %v4170, %v4434
        %v4436 = vpop.f32.mrf.mxu0
        %4437 = vmatprep.mubr.f32.mxu0 0.0
        %4438 = vmatmul.mubr.f32.gmra.mxu0 %v4236
        %v4439 = vpop.f32.mrf.mxu0
        %v4440 = vadd.f32 %v4170, %v4439
        %v4441 = vpop.f32.mrf.mxu0
        %4442 = vmatprep.mubr.f32.mxu0 0.0
        %4443 = vmatmul.mubr.f32.gmra.mxu0 %v4239
        %v4444 = vpop.f32.mrf.mxu0
        %v4445 = vadd.f32 %v4170, %v4444
        %v4446 = vpop.f32.mrf.mxu0
        %4447 = vmatprep.mubr.f32.mxu0 0.0
        %4448 = vmatmul.mubr.f32.gmra.mxu0 %v4242
        %v4449 = vpop.f32.mrf.mxu0
        %v4450 = vadd.f32 %v4170, %v4449
        %v4451 = vpop.f32.mrf.mxu0
        %4452 = vmatprep.mubr.f32.mxu0 0.0
        %4453 = vmatmul.mubr.f32.gmra.mxu0 %v4245
        %v4454 = vpop.f32.mrf.mxu0
        %v4455 = vadd.f32 %v4170, %v4454
        %v4456 = vpop.f32.mrf.mxu0
        %4457 = vmatprep.mubr.f32.mxu0 0.0
        %4458 = vmatmul.mubr.f32.gmra.mxu0 %v4248
        %v4459 = vpop.f32.mrf.mxu0
        %v4460 = vadd.f32 %v4170, %v4459
        %v4461 = vpop.f32.mrf.mxu0
        %4462 = vmatprep.mubr.f32.mxu0 0.0
        %4463 = vmatmul.mubr.f32.gmra.mxu0 %v4251
        %v4464 = vpop.f32.mrf.mxu0
        %v4465 = vadd.f32 %v4170, %v4464
        %v4466 = vpop.f32.mrf.mxu0
        %4467 = vmatprep.mubr.f32.mxu0 0.0
        %4468 = vmatmul.mubr.f32.gmra.mxu0 %v4254
        %v4469 = vpop.f32.mrf.mxu0
        %v4470 = vadd.f32 %v4170, %v4469
        %v4471 = vpop.f32.mrf.mxu0
        %4472 = vmatprep.mubr.f32.mxu0 0.0
        %4473 = vmatmul.mubr.f32.gmra.mxu0 %v4257
        %v4474 = vpop.f32.mrf.mxu0
        %v4475 = vadd.f32 %v4170, %v4474
        %v4476 = vpop.f32.mrf.mxu0
        %4477 = vmatprep.mubr.f32.mxu0 0.0
        %4478 = vmatmul.mubr.f32.gmra.mxu0 %v4260
        %v4479 = vpop.f32.mrf.mxu0
        %v4480 = vadd.f32 %v4170, %v4479
        %v4481 = vpop.f32.mrf.mxu0
        %4482 = vmatprep.mubr.f32.mxu0 0.0
        %4483 = vmatmul.mubr.f32.gmra.mxu0 %v4263
        %v4484 = vpop.f32.mrf.mxu0
        %v4485 = vadd.f32 %v4170, %v4484
        %v4486 = vpop.f32.mrf.mxu0
        %4487 = vmatprep.mubr.f32.mxu0 0.0
        %4488 = vmatmul.mubr.f32.gmra.mxu0 %v4266
        %v4489 = vpop.f32.mrf.mxu0
        %v4490 = vadd.f32 %v4170, %v4489
        %v4491 = vpop.f32.mrf.mxu0
        %4492 = vdwg.mxu0
        %vm4493 = vcmp.gt.f32.partialorder %v4335, 0.0
        %vm4494 = vcmp.gt.f32.partialorder %v4340, 0.0
        %vm4495 = vcmp.gt.f32.partialorder %v4345, 0.0
        %vm4496 = vcmp.gt.f32.partialorder %v4350, 0.0
        %vm4497 = vcmp.gt.f32.partialorder %v4355, 0.0
        %vm4498 = vcmp.gt.f32.partialorder %v4360, 0.0
        %vm4499 = vcmp.gt.f32.partialorder %v4365, 0.0
        %vm4500 = vcmp.gt.f32.partialorder %v4370, 0.0
        %vm4501 = vcmp.gt.f32.partialorder %v4375, 0.0
        %vm4502 = vcmp.gt.f32.partialorder %v4380, 0.0
        %vm4503 = vcmp.gt.f32.partialorder %v4385, 0.0
        %vm4504 = vcmp.gt.f32.partialorder %v4390, 0.0
        %vm4505 = vcmp.gt.f32.partialorder %v4395, 0.0
        %vm4506 = vcmp.gt.f32.partialorder %v4400, 0.0
        %vm4507 = vcmp.gt.f32.partialorder %v4405, 0.0
        %vm4508 = vcmp.gt.f32.partialorder %v4410, 0.0
        %vm4509 = vcmp.gt.f32.partialorder %v4415, 0.0
        %vm4510 = vcmp.gt.f32.partialorder %v4420, 0.0
        %vm4511 = vcmp.gt.f32.partialorder %v4425, 0.0
        %vm4512 = vcmp.gt.f32.partialorder %v4430, 0.0
        %vm4513 = vcmp.gt.f32.partialorder %v4435, 0.0
        %vm4514 = vcmp.gt.f32.partialorder %v4440, 0.0
        %vm4515 = vcmp.gt.f32.partialorder %v4445, 0.0
        %vm4516 = vcmp.gt.f32.partialorder %v4450, 0.0
        %vm4517 = vcmp.gt.f32.partialorder %v4455, 0.0
        %vm4518 = vcmp.gt.f32.partialorder %v4460, 0.0
        %vm4519 = vcmp.gt.f32.partialorder %v4465, 0.0
        %vm4520 = vcmp.gt.f32.partialorder %v4470, 0.0
        %vm4521 = vcmp.gt.f32.partialorder %v4475, 0.0
        %vm4522 = vcmp.gt.f32.partialorder %v4480, 0.0
        %vm4523 = vcmp.gt.f32.partialorder %v4485, 0.0
        %vm4524 = vcmp.gt.f32.partialorder %v4490, 0.0
        %v4525 = vmin.f32 %v4335, 0.0
        %v4526 = vmin.f32 %v4340, 0.0
        %v4527 = vmin.f32 %v4345, 0.0
        %v4528 = vmin.f32 %v4350, 0.0
        %v4529 = vmin.f32 %v4355, 0.0
        %v4530 = vmin.f32 %v4360, 0.0
        %v4531 = vmin.f32 %v4365, 0.0
        %v4532 = vmin.f32 %v4370, 0.0
        %v4533 = vmin.f32 %v4375, 0.0
        %v4534 = vmin.f32 %v4380, 0.0
        %v4535 = vmin.f32 %v4385, 0.0
        %v4536 = vmin.f32 %v4390, 0.0
        %v4537 = vmin.f32 %v4395, 0.0
        %v4538 = vmin.f32 %v4400, 0.0
        %v4539 = vmin.f32 %v4405, 0.0
        %v4540 = vmin.f32 %v4410, 0.0
        %v4541 = vmin.f32 %v4415, 0.0
        %v4542 = vmin.f32 %v4420, 0.0
        %v4543 = vmin.f32 %v4425, 0.0
        %v4544 = vmin.f32 %v4430, 0.0
        %v4545 = vmin.f32 %v4435, 0.0
        %v4546 = vmin.f32 %v4440, 0.0
        %v4547 = vmin.f32 %v4445, 0.0
        %v4548 = vmin.f32 %v4450, 0.0
        %v4549 = vmin.f32 %v4455, 0.0
        %v4550 = vmin.f32 %v4460, 0.0
        %v4551 = vmin.f32 %v4465, 0.0
        %v4552 = vmin.f32 %v4470, 0.0
        %v4553 = vmin.f32 %v4475, 0.0
        %v4554 = vmin.f32 %v4480, 0.0
        %v4555 = vmin.f32 %v4485, 0.0
        %v4556 = vmin.f32 %v4490, 0.0
        %v4557 = vmul.f32 %v4525, 1.442695
        %v4558 = vpow.pop %v4557
        %v4559 = vmul.f32 %v4526, 1.442695
        %v4560 = vpow.pop %v4559
        %v4561 = vmul.f32 %v4527, 1.442695
        %v4562 = vpow.pop %v4561
        %v4563 = vmul.f32 %v4528, 1.442695
        %v4564 = vpow.pop %v4563
        %v4565 = vmul.f32 %v4529, 1.442695
        %v4566 = vpow.pop %v4565
        %v4567 = vmul.f32 %v4530, 1.442695
        %v4568 = vpow.pop %v4567
        %v4569 = vmul.f32 %v4531, 1.442695
        %v4570 = vpow.pop %v4569
        %v4571 = vmul.f32 %v4532, 1.442695
        %v4572 = vpow.pop %v4571
        %v4573 = vmul.f32 %v4533, 1.442695
        %v4574 = vpow.pop %v4573
        %v4575 = vmul.f32 %v4534, 1.442695
        %v4576 = vpow.pop %v4575
        %v4577 = vmul.f32 %v4535, 1.442695
        %v4578 = vpow.pop %v4577
        %v4579 = vmul.f32 %v4536, 1.442695
        %v4580 = vpow.pop %v4579
        %v4581 = vmul.f32 %v4537, 1.442695
        %v4582 = vpow.pop %v4581
        %v4583 = vmul.f32 %v4538, 1.442695
        %v4584 = vpow.pop %v4583
        %v4585 = vmul.f32 %v4539, 1.442695
        %v4586 = vpow.pop %v4585
        %v4587 = vmul.f32 %v4540, 1.442695
        %v4588 = vpow.pop %v4587
        %v4589 = vmul.f32 %v4541, 1.442695
        %v4590 = vpow.pop %v4589
        %v4591 = vmul.f32 %v4542, 1.442695
        %v4592 = vpow.pop %v4591
        %v4593 = vmul.f32 %v4543, 1.442695
        %v4594 = vpow.pop %v4593
        %v4595 = vmul.f32 %v4544, 1.442695
        %v4596 = vpow.pop %v4595
        %v4597 = vmul.f32 %v4545, 1.442695
        %v4598 = vpow.pop %v4597
        %v4599 = vmul.f32 %v4546, 1.442695
        %v4600 = vpow.pop %v4599
        %v4601 = vmul.f32 %v4547, 1.442695
        %v4602 = vpow.pop %v4601
        %v4603 = vmul.f32 %v4548, 1.442695
        %v4604 = vpow.pop %v4603
        %v4605 = vmul.f32 %v4549, 1.442695
        %v4606 = vpow.pop %v4605
        %v4607 = vmul.f32 %v4550, 1.442695
        %v4608 = vpow.pop %v4607
        %v4609 = vmul.f32 %v4551, 1.442695
        %v4610 = vpow.pop %v4609
        %v4611 = vmul.f32 %v4552, 1.442695
        %v4612 = vpow.pop %v4611
        %v4613 = vmul.f32 %v4553, 1.442695
        %v4614 = vpow.pop %v4613
        %v4615 = vmul.f32 %v4554, 1.442695
        %v4616 = vpow.pop %v4615
        %v4617 = vmul.f32 %v4555, 1.442695
        %v4618 = vpow.pop %v4617
        %v4619 = vmul.f32 %v4556, 1.442695
        %v4620 = vpow.pop %v4619
        %v4621 = vsub.f32 %v4558, 1.0
        %v4622 = vsub.f32 %v4560, 1.0
        %v4623 = vsub.f32 %v4562, 1.0
        %v4624 = vsub.f32 %v4564, 1.0
        %v4625 = vsub.f32 %v4566, 1.0
        %v4626 = vsub.f32 %v4568, 1.0
        %v4627 = vsub.f32 %v4570, 1.0
        %v4628 = vsub.f32 %v4572, 1.0
        %v4629 = vsub.f32 %v4574, 1.0
        %v4630 = vsub.f32 %v4576, 1.0
        %v4631 = vsub.f32 %v4578, 1.0
        %v4632 = vsub.f32 %v4580, 1.0
        %v4633 = vsub.f32 %v4582, 1.0
        %v4634 = vsub.f32 %v4584, 1.0
        %v4635 = vsub.f32 %v4586, 1.0
        %v4636 = vsub.f32 %v4588, 1.0
        %v4637 = vsub.f32 %v4590, 1.0
        %v4638 = vsub.f32 %v4592, 1.0
        %v4639 = vsub.f32 %v4594, 1.0
        %v4640 = vsub.f32 %v4596, 1.0
        %v4641 = vsub.f32 %v4598, 1.0
        %v4642 = vsub.f32 %v4600, 1.0
        %v4643 = vsub.f32 %v4602, 1.0
        %v4644 = vsub.f32 %v4604, 1.0
        %v4645 = vsub.f32 %v4606, 1.0
        %v4646 = vsub.f32 %v4608, 1.0
        %v4647 = vsub.f32 %v4610, 1.0
        %v4648 = vsub.f32 %v4612, 1.0
        %v4649 = vsub.f32 %v4614, 1.0
        %v4650 = vsub.f32 %v4616, 1.0
        %v4651 = vsub.f32 %v4618, 1.0
        %v4652 = vsub.f32 %v4620, 1.0
        %v4653 = vmul.f32 %v4621, 1.6732632
        %v4654 = vmul.f32 %v4622, 1.6732632
        %v4655 = vmul.f32 %v4623, 1.6732632
        %v4656 = vmul.f32 %v4624, 1.6732632
        %v4657 = vmul.f32 %v4625, 1.6732632
        %v4658 = vmul.f32 %v4626, 1.6732632
        %v4659 = vmul.f32 %v4627, 1.6732632
        %v4660 = vmul.f32 %v4628, 1.6732632
        %v4661 = vmul.f32 %v4629, 1.6732632
        %v4662 = vmul.f32 %v4630, 1.6732632
        %v4663 = vmul.f32 %v4631, 1.6732632
        %v4664 = vmul.f32 %v4632, 1.6732632
        %v4665 = vmul.f32 %v4633, 1.6732632
        %v4666 = vmul.f32 %v4634, 1.6732632
        %v4667 = vmul.f32 %v4635, 1.6732632
        %v4668 = vmul.f32 %v4636, 1.6732632
        %v4669 = vmul.f32 %v4637, 1.6732632
        %v4670 = vmul.f32 %v4638, 1.6732632
        %v4671 = vmul.f32 %v4639, 1.6732632
        %v4672 = vmul.f32 %v4640, 1.6732632
        %v4673 = vmul.f32 %v4641, 1.6732632
        %v4674 = vmul.f32 %v4642, 1.6732632
        %v4675 = vmul.f32 %v4643, 1.6732632
        %v4676 = vmul.f32 %v4644, 1.6732632
        %v4677 = vmul.f32 %v4645, 1.6732632
        %v4678 = vmul.f32 %v4646, 1.6732632
        %v4679 = vmul.f32 %v4647, 1.6732632
        %v4680 = vmul.f32 %v4648, 1.6732632
        %v4681 = vmul.f32 %v4649, 1.6732632
        %v4682 = vmul.f32 %v4650, 1.6732632
        %v4683 = vmul.f32 %v4651, 1.6732632
        %v4684 = vmul.f32 %v4652, 1.6732632
        %v4685 = vsel %vm4493, %v4335, %v4653
        %v4686 = vsel %vm4494, %v4340, %v4654
        %v4687 = vsel %vm4495, %v4345, %v4655
        %v4688 = vsel %vm4496, %v4350, %v4656
        %v4689 = vsel %vm4497, %v4355, %v4657
        %v4690 = vsel %vm4498, %v4360, %v4658
        %v4691 = vsel %vm4499, %v4365, %v4659
        %v4692 = vsel %vm4500, %v4370, %v4660
        %v4693 = vsel %vm4501, %v4375, %v4661
        %v4694 = vsel %vm4502, %v4380, %v4662
        %v4695 = vsel %vm4503, %v4385, %v4663
        %v4696 = vsel %vm4504, %v4390, %v4664
        %v4697 = vsel %vm4505, %v4395, %v4665
        %v4698 = vsel %vm4506, %v4400, %v4666
        %v4699 = vsel %vm4507, %v4405, %v4667
        %v4700 = vsel %vm4508, %v4410, %v4668
        %v4701 = vsel %vm4509, %v4415, %v4669
        %v4702 = vsel %vm4510, %v4420, %v4670
        %v4703 = vsel %vm4511, %v4425, %v4671
        %v4704 = vsel %vm4512, %v4430, %v4672
        %v4705 = vsel %vm4513, %v4435, %v4673
        %v4706 = vsel %vm4514, %v4440, %v4674
        %v4707 = vsel %vm4515, %v4445, %v4675
        %v4708 = vsel %vm4516, %v4450, %v4676
        %v4709 = vsel %vm4517, %v4455, %v4677
        %v4710 = vsel %vm4518, %v4460, %v4678
        %v4711 = vsel %vm4519, %v4465, %v4679
        %v4712 = vsel %vm4520, %v4470, %v4680
        %v4713 = vsel %vm4521, %v4475, %v4681
        %v4714 = vsel %vm4522, %v4480, %v4682
        %v4715 = vsel %vm4523, %v4485, %v4683
        %v4716 = vsel %vm4524, %v4490, %v4684
        %v4717 = vmul.f32 %v4685, 1.050701
        %v4718 = vmul.f32 %v4686, 1.050701
        %v4719 = vmul.f32 %v4687, 1.050701
        %v4720 = vmul.f32 %v4688, 1.050701
        %v4721 = vmul.f32 %v4689, 1.050701
        %v4722 = vmul.f32 %v4690, 1.050701
        %v4723 = vmul.f32 %v4691, 1.050701
        %v4724 = vmul.f32 %v4692, 1.050701
        %v4725 = vmul.f32 %v4693, 1.050701
        %v4726 = vmul.f32 %v4694, 1.050701
        %v4727 = vmul.f32 %v4695, 1.050701
        %v4728 = vmul.f32 %v4696, 1.050701
        %v4729 = vmul.f32 %v4697, 1.050701
        %v4730 = vmul.f32 %v4698, 1.050701
        %v4731 = vmul.f32 %v4699, 1.050701
        %v4732 = vmul.f32 %v4700, 1.050701
        %v4733 = vmul.f32 %v4701, 1.050701
        %v4734 = vmul.f32 %v4702, 1.050701
        %v4735 = vmul.f32 %v4703, 1.050701
        %v4736 = vmul.f32 %v4704, 1.050701
        %v4737 = vmul.f32 %v4705, 1.050701
        %v4738 = vmul.f32 %v4706, 1.050701
        %v4739 = vmul.f32 %v4707, 1.050701
        %v4740 = vmul.f32 %v4708, 1.050701
        %v4741 = vmul.f32 %v4709, 1.050701
        %v4742 = vmul.f32 %v4710, 1.050701
        %v4743 = vmul.f32 %v4711, 1.050701
        %v4744 = vmul.f32 %v4712, 1.050701
        %v4745 = vmul.f32 %v4713, 1.050701
        %v4746 = vmul.f32 %v4714, 1.050701
        %v4747 = vmul.f32 %v4715, 1.050701
        %v4748 = vmul.f32 %v4716, 1.050701
        %v4749 = vsel %vm602, %v4717, 0.0
        %4750 = vadd.xlane.f32.xlu0 %v4749
        %v4751 = vpop.xlane.xlu0 %4750
        %v4752 = vsel %vm602, %v4718, 0.0
        %4753 = vadd.xlane.f32.xlu0 %v4752
        %v4754 = vpop.xlane.xlu0 %4753
        %v4755 = vsel %vm602, %v4719, 0.0
        %4756 = vadd.xlane.f32.xlu0 %v4755
        %v4757 = vpop.xlane.xlu0 %4756
        %v4758 = vsel %vm602, %v4720, 0.0
        %4759 = vadd.xlane.f32.xlu0 %v4758
        %v4760 = vpop.xlane.xlu0 %4759
        %v4761 = vsel %vm602, %v4721, 0.0
        %4762 = vadd.xlane.f32.xlu0 %v4761
        %v4763 = vpop.xlane.xlu0 %4762
        %v4764 = vsel %vm602, %v4722, 0.0
        %4765 = vadd.xlane.f32.xlu0 %v4764
        %v4766 = vpop.xlane.xlu0 %4765
        %v4767 = vsel %vm602, %v4723, 0.0
        %4768 = vadd.xlane.f32.xlu0 %v4767
        %v4769 = vpop.xlane.xlu0 %4768
        %v4770 = vsel %vm602, %v4724, 0.0
        %4771 = vadd.xlane.f32.xlu0 %v4770
        %v4772 = vpop.xlane.xlu0 %4771
        %v4773 = vsel %vm602, %v4725, 0.0
        %4774 = vadd.xlane.f32.xlu0 %v4773
        %v4775 = vpop.xlane.xlu0 %4774
        %v4776 = vsel %vm602, %v4726, 0.0
        %4777 = vadd.xlane.f32.xlu0 %v4776
        %v4778 = vpop.xlane.xlu0 %4777
        %v4779 = vsel %vm602, %v4727, 0.0
        %4780 = vadd.xlane.f32.xlu0 %v4779
        %v4781 = vpop.xlane.xlu0 %4780
        %v4782 = vsel %vm602, %v4728, 0.0
        %4783 = vadd.xlane.f32.xlu0 %v4782
        %v4784 = vpop.xlane.xlu0 %4783
        %v4785 = vsel %vm602, %v4729, 0.0
        %4786 = vadd.xlane.f32.xlu0 %v4785
        %v4787 = vpop.xlane.xlu0 %4786
        %v4788 = vsel %vm602, %v4730, 0.0
        %4789 = vadd.xlane.f32.xlu0 %v4788
        %v4790 = vpop.xlane.xlu0 %4789
        %v4791 = vsel %vm602, %v4731, 0.0
        %4792 = vadd.xlane.f32.xlu0 %v4791
        %v4793 = vpop.xlane.xlu0 %4792
        %v4794 = vsel %vm602, %v4732, 0.0
        %4795 = vadd.xlane.f32.xlu0 %v4794
        %v4796 = vpop.xlane.xlu0 %4795
        %v4797 = vsel %vm602, %v4733, 0.0
        %4798 = vadd.xlane.f32.xlu0 %v4797
        %v4799 = vpop.xlane.xlu0 %4798
        %v4800 = vsel %vm602, %v4734, 0.0
        %4801 = vadd.xlane.f32.xlu0 %v4800
        %v4802 = vpop.xlane.xlu0 %4801
        %v4803 = vsel %vm602, %v4735, 0.0
        %4804 = vadd.xlane.f32.xlu0 %v4803
        %v4805 = vpop.xlane.xlu0 %4804
        %v4806 = vsel %vm602, %v4736, 0.0
        %4807 = vadd.xlane.f32.xlu0 %v4806
        %v4808 = vpop.xlane.xlu0 %4807
        %v4809 = vsel %vm602, %v4737, 0.0
        %4810 = vadd.xlane.f32.xlu0 %v4809
        %v4811 = vpop.xlane.xlu0 %4810
        %v4812 = vsel %vm602, %v4738, 0.0
        %4813 = vadd.xlane.f32.xlu0 %v4812
        %v4814 = vpop.xlane.xlu0 %4813
        %v4815 = vsel %vm602, %v4739, 0.0
        %4816 = vadd.xlane.f32.xlu0 %v4815
        %v4817 = vpop.xlane.xlu0 %4816
        %v4818 = vsel %vm602, %v4740, 0.0
        %4819 = vadd.xlane.f32.xlu0 %v4818
        %v4820 = vpop.xlane.xlu0 %4819
        %v4821 = vsel %vm602, %v4741, 0.0
        %4822 = vadd.xlane.f32.xlu0 %v4821
        %v4823 = vpop.xlane.xlu0 %4822
        %v4824 = vsel %vm602, %v4742, 0.0
        %4825 = vadd.xlane.f32.xlu0 %v4824
        %v4826 = vpop.xlane.xlu0 %4825
        %v4827 = vsel %vm602, %v4743, 0.0
        %4828 = vadd.xlane.f32.xlu0 %v4827
        %v4829 = vpop.xlane.xlu0 %4828
        %v4830 = vsel %vm602, %v4744, 0.0
        %4831 = vadd.xlane.f32.xlu0 %v4830
        %v4832 = vpop.xlane.xlu0 %4831
        %v4833 = vsel %vm602, %v4745, 0.0
        %4834 = vadd.xlane.f32.xlu0 %v4833
        %v4835 = vpop.xlane.xlu0 %4834
        %v4836 = vsel %vm602, %v4746, 0.0
        %4837 = vadd.xlane.f32.xlu0 %v4836
        %v4838 = vpop.xlane.xlu0 %4837
        %v4839 = vsel %vm602, %v4747, 0.0
        %4840 = vadd.xlane.f32.xlu0 %v4839
        %v4841 = vpop.xlane.xlu0 %4840
        %v4842 = vsel %vm602, %v4748, 0.0
        %4843 = vadd.xlane.f32.xlu0 %v4842
        %v4844 = vpop.xlane.xlu0 %4843
        %v4845 = vmul.f32 %v4751, %v3762
        %v4846 = vmul.f32 %v4754, %v3762
        %v4847 = vmul.f32 %v4757, %v3762
        %v4848 = vmul.f32 %v4760, %v3762
        %v4849 = vmul.f32 %v4763, %v3762
        %v4850 = vmul.f32 %v4766, %v3762
        %v4851 = vmul.f32 %v4769, %v3762
        %v4852 = vmul.f32 %v4772, %v3762
        %v4853 = vmul.f32 %v4775, %v3762
        %v4854 = vmul.f32 %v4778, %v3762
        %v4855 = vmul.f32 %v4781, %v3762
        %v4856 = vmul.f32 %v4784, %v3762
        %v4857 = vmul.f32 %v4787, %v3762
        %v4858 = vmul.f32 %v4790, %v3762
        %v4859 = vmul.f32 %v4793, %v3762
        %v4860 = vmul.f32 %v4796, %v3762
        %v4861 = vmul.f32 %v4799, %v3762
        %v4862 = vmul.f32 %v4802, %v3762
        %v4863 = vmul.f32 %v4805, %v3762
        %v4864 = vmul.f32 %v4808, %v3762
        %v4865 = vmul.f32 %v4811, %v3762
        %v4866 = vmul.f32 %v4814, %v3762
        %v4867 = vmul.f32 %v4817, %v3762
        %v4868 = vmul.f32 %v4820, %v3762
        %v4869 = vmul.f32 %v4823, %v3762
        %v4870 = vmul.f32 %v4826, %v3762
        %v4871 = vmul.f32 %v4829, %v3762
        %v4872 = vmul.f32 %v4832, %v3762
        %v4873 = vmul.f32 %v4835, %v3762
        %v4874 = vmul.f32 %v4838, %v3762
        %v4875 = vmul.f32 %v4841, %v3762
        %v4876 = vmul.f32 %v4844, %v3762
        %v4877 = vsub.f32 %v4717, %v4845
        %v4878 = vsub.f32 %v4718, %v4846
        %v4879 = vsub.f32 %v4719, %v4847
        %v4880 = vsub.f32 %v4720, %v4848
        %v4881 = vsub.f32 %v4721, %v4849
        %v4882 = vsub.f32 %v4722, %v4850
        %v4883 = vsub.f32 %v4723, %v4851
        %v4884 = vsub.f32 %v4724, %v4852
        %v4885 = vsub.f32 %v4725, %v4853
        %v4886 = vsub.f32 %v4726, %v4854
        %v4887 = vsub.f32 %v4727, %v4855
        %v4888 = vsub.f32 %v4728, %v4856
        %v4889 = vsub.f32 %v4729, %v4857
        %v4890 = vsub.f32 %v4730, %v4858
        %v4891 = vsub.f32 %v4731, %v4859
        %v4892 = vsub.f32 %v4732, %v4860
        %v4893 = vsub.f32 %v4733, %v4861
        %v4894 = vsub.f32 %v4734, %v4862
        %v4895 = vsub.f32 %v4735, %v4863
        %v4896 = vsub.f32 %v4736, %v4864
        %v4897 = vsub.f32 %v4737, %v4865
        %v4898 = vsub.f32 %v4738, %v4866
        %v4899 = vsub.f32 %v4739, %v4867
        %v4900 = vsub.f32 %v4740, %v4868
        %v4901 = vsub.f32 %v4741, %v4869
        %v4902 = vsub.f32 %v4742, %v4870
        %v4903 = vsub.f32 %v4743, %v4871
        %v4904 = vsub.f32 %v4744, %v4872
        %v4905 = vsub.f32 %v4745, %v4873
        %v4906 = vsub.f32 %v4746, %v4874
        %v4907 = vsub.f32 %v4747, %v4875
        %v4908 = vsub.f32 %v4748, %v4876
        %v4909 = vmul.f32 %v4877, %v4877
        %v4910 = vmul.f32 %v4878, %v4878
        %v4911 = vmul.f32 %v4879, %v4879
        %v4912 = vmul.f32 %v4880, %v4880
        %v4913 = vmul.f32 %v4881, %v4881
        %v4914 = vmul.f32 %v4882, %v4882
        %v4915 = vmul.f32 %v4883, %v4883
        %v4916 = vmul.f32 %v4884, %v4884
        %v4917 = vmul.f32 %v4885, %v4885
        %v4918 = vmul.f32 %v4886, %v4886
        %v4919 = vmul.f32 %v4887, %v4887
        %v4920 = vmul.f32 %v4888, %v4888
        %v4921 = vmul.f32 %v4889, %v4889
        %v4922 = vmul.f32 %v4890, %v4890
        %v4923 = vmul.f32 %v4891, %v4891
        %v4924 = vmul.f32 %v4892, %v4892
        %v4925 = vmul.f32 %v4893, %v4893
        %v4926 = vmul.f32 %v4894, %v4894
        %v4927 = vmul.f32 %v4895, %v4895
        %v4928 = vmul.f32 %v4896, %v4896
        %v4929 = vmul.f32 %v4897, %v4897
        %v4930 = vmul.f32 %v4898, %v4898
        %v4931 = vmul.f32 %v4899, %v4899
        %v4932 = vmul.f32 %v4900, %v4900
        %v4933 = vmul.f32 %v4901, %v4901
        %v4934 = vmul.f32 %v4902, %v4902
        %v4935 = vmul.f32 %v4903, %v4903
        %v4936 = vmul.f32 %v4904, %v4904
        %v4937 = vmul.f32 %v4905, %v4905
        %v4938 = vmul.f32 %v4906, %v4906
        %v4939 = vmul.f32 %v4907, %v4907
        %v4940 = vmul.f32 %v4908, %v4908
        %v4941 = vsel %vm602, %v4909, 0.0
        %4942 = vadd.xlane.f32.xlu0 %v4941
        %v4943 = vpop.xlane.xlu0 %4942
        %v4944 = vsel %vm602, %v4910, 0.0
        %4945 = vadd.xlane.f32.xlu0 %v4944
        %v4946 = vpop.xlane.xlu0 %4945
        %v4947 = vsel %vm602, %v4911, 0.0
        %4948 = vadd.xlane.f32.xlu0 %v4947
        %v4949 = vpop.xlane.xlu0 %4948
        %v4950 = vsel %vm602, %v4912, 0.0
        %4951 = vadd.xlane.f32.xlu0 %v4950
        %v4952 = vpop.xlane.xlu0 %4951
        %v4953 = vsel %vm602, %v4913, 0.0
        %4954 = vadd.xlane.f32.xlu0 %v4953
        %v4955 = vpop.xlane.xlu0 %4954
        %v4956 = vsel %vm602, %v4914, 0.0
        %4957 = vadd.xlane.f32.xlu0 %v4956
        %v4958 = vpop.xlane.xlu0 %4957
        %v4959 = vsel %vm602, %v4915, 0.0
        %4960 = vadd.xlane.f32.xlu0 %v4959
        %v4961 = vpop.xlane.xlu0 %4960
        %v4962 = vsel %vm602, %v4916, 0.0
        %4963 = vadd.xlane.f32.xlu0 %v4962
        %v4964 = vpop.xlane.xlu0 %4963
        %v4965 = vsel %vm602, %v4917, 0.0
        %4966 = vadd.xlane.f32.xlu0 %v4965
        %v4967 = vpop.xlane.xlu0 %4966
        %v4968 = vsel %vm602, %v4918, 0.0
        %4969 = vadd.xlane.f32.xlu0 %v4968
        %v4970 = vpop.xlane.xlu0 %4969
        %v4971 = vsel %vm602, %v4919, 0.0
        %4972 = vadd.xlane.f32.xlu0 %v4971
        %v4973 = vpop.xlane.xlu0 %4972
        %v4974 = vsel %vm602, %v4920, 0.0
        %4975 = vadd.xlane.f32.xlu0 %v4974
        %v4976 = vpop.xlane.xlu0 %4975
        %v4977 = vsel %vm602, %v4921, 0.0
        %4978 = vadd.xlane.f32.xlu0 %v4977
        %v4979 = vpop.xlane.xlu0 %4978
        %v4980 = vsel %vm602, %v4922, 0.0
        %4981 = vadd.xlane.f32.xlu0 %v4980
        %v4982 = vpop.xlane.xlu0 %4981
        %v4983 = vsel %vm602, %v4923, 0.0
        %4984 = vadd.xlane.f32.xlu0 %v4983
        %v4985 = vpop.xlane.xlu0 %4984
        %v4986 = vsel %vm602, %v4924, 0.0
        %4987 = vadd.xlane.f32.xlu0 %v4986
        %v4988 = vpop.xlane.xlu0 %4987
        %v4989 = vsel %vm602, %v4925, 0.0
        %4990 = vadd.xlane.f32.xlu0 %v4989
        %v4991 = vpop.xlane.xlu0 %4990
        %v4992 = vsel %vm602, %v4926, 0.0
        %4993 = vadd.xlane.f32.xlu0 %v4992
        %v4994 = vpop.xlane.xlu0 %4993
        %v4995 = vsel %vm602, %v4927, 0.0
        %4996 = vadd.xlane.f32.xlu0 %v4995
        %v4997 = vpop.xlane.xlu0 %4996
        %v4998 = vsel %vm602, %v4928, 0.0
        %4999 = vadd.xlane.f32.xlu0 %v4998
        %v5000 = vpop.xlane.xlu0 %4999
        %v5001 = vsel %vm602, %v4929, 0.0
        %5002 = vadd.xlane.f32.xlu0 %v5001
        %v5003 = vpop.xlane.xlu0 %5002
        %v5004 = vsel %vm602, %v4930, 0.0
        %5005 = vadd.xlane.f32.xlu0 %v5004
        %v5006 = vpop.xlane.xlu0 %5005
        %v5007 = vsel %vm602, %v4931, 0.0
        %5008 = vadd.xlane.f32.xlu0 %v5007
        %v5009 = vpop.xlane.xlu0 %5008
        %v5010 = vsel %vm602, %v4932, 0.0
        %5011 = vadd.xlane.f32.xlu0 %v5010
        %v5012 = vpop.xlane.xlu0 %5011
        %v5013 = vsel %vm602, %v4933, 0.0
        %5014 = vadd.xlane.f32.xlu0 %v5013
        %v5015 = vpop.xlane.xlu0 %5014
        %v5016 = vsel %vm602, %v4934, 0.0
        %5017 = vadd.xlane.f32.xlu0 %v5016
        %v5018 = vpop.xlane.xlu0 %5017
        %v5019 = vsel %vm602, %v4935, 0.0
        %5020 = vadd.xlane.f32.xlu0 %v5019
        %v5021 = vpop.xlane.xlu0 %5020
        %v5022 = vsel %vm602, %v4936, 0.0
        %5023 = vadd.xlane.f32.xlu0 %v5022
        %v5024 = vpop.xlane.xlu0 %5023
        %v5025 = vsel %vm602, %v4937, 0.0
        %5026 = vadd.xlane.f32.xlu0 %v5025
        %v5027 = vpop.xlane.xlu0 %5026
        %v5028 = vsel %vm602, %v4938, 0.0
        %5029 = vadd.xlane.f32.xlu0 %v5028
        %v5030 = vpop.xlane.xlu0 %5029
        %v5031 = vsel %vm602, %v4939, 0.0
        %5032 = vadd.xlane.f32.xlu0 %v5031
        %v5033 = vpop.xlane.xlu0 %5032
        %v5034 = vsel %vm602, %v4940, 0.0
        %5035 = vadd.xlane.f32.xlu0 %v5034
        %v5036 = vpop.xlane.xlu0 %5035
        %v5037 = vmul.f32 %v4943, %v3762
        %v5038 = vmul.f32 %v4946, %v3762
        %v5039 = vmul.f32 %v4949, %v3762
        %v5040 = vmul.f32 %v4952, %v3762
        %v5041 = vmul.f32 %v4955, %v3762
        %v5042 = vmul.f32 %v4958, %v3762
        %v5043 = vmul.f32 %v4961, %v3762
        %v5044 = vmul.f32 %v4964, %v3762
        %v5045 = vmul.f32 %v4967, %v3762
        %v5046 = vmul.f32 %v4970, %v3762
        %v5047 = vmul.f32 %v4973, %v3762
        %v5048 = vmul.f32 %v4976, %v3762
        %v5049 = vmul.f32 %v4979, %v3762
        %v5050 = vmul.f32 %v4982, %v3762
        %v5051 = vmul.f32 %v4985, %v3762
        %v5052 = vmul.f32 %v4988, %v3762
        %v5053 = vmul.f32 %v4991, %v3762
        %v5054 = vmul.f32 %v4994, %v3762
        %v5055 = vmul.f32 %v4997, %v3762
        %v5056 = vmul.f32 %v5000, %v3762
        %v5057 = vmul.f32 %v5003, %v3762
        %v5058 = vmul.f32 %v5006, %v3762
        %v5059 = vmul.f32 %v5009, %v3762
        %v5060 = vmul.f32 %v5012, %v3762
        %v5061 = vmul.f32 %v5015, %v3762
        %v5062 = vmul.f32 %v5018, %v3762
        %v5063 = vmul.f32 %v5021, %v3762
        %v5064 = vmul.f32 %v5024, %v3762
        %v5065 = vmul.f32 %v5027, %v3762
        %v5066 = vmul.f32 %v5030, %v3762
        %v5067 = vmul.f32 %v5033, %v3762
        %v5068 = vmul.f32 %v5036, %v3762
        %v5069 = vadd.f32 %v5037, 1e-05
        %v5070 = vadd.f32 %v5038, 1e-05
        %v5071 = vadd.f32 %v5039, 1e-05
        %v5072 = vadd.f32 %v5040, 1e-05
        %v5073 = vadd.f32 %v5041, 1e-05
        %v5074 = vadd.f32 %v5042, 1e-05
        %v5075 = vadd.f32 %v5043, 1e-05
        %v5076 = vadd.f32 %v5044, 1e-05
        %v5077 = vadd.f32 %v5045, 1e-05
        %v5078 = vadd.f32 %v5046, 1e-05
        %v5079 = vadd.f32 %v5047, 1e-05
        %v5080 = vadd.f32 %v5048, 1e-05
        %v5081 = vadd.f32 %v5049, 1e-05
        %v5082 = vadd.f32 %v5050, 1e-05
        %v5083 = vadd.f32 %v5051, 1e-05
        %v5084 = vadd.f32 %v5052, 1e-05
        %v5085 = vadd.f32 %v5053, 1e-05
        %v5086 = vadd.f32 %v5054, 1e-05
        %v5087 = vadd.f32 %v5055, 1e-05
        %v5088 = vadd.f32 %v5056, 1e-05
        %v5089 = vadd.f32 %v5057, 1e-05
        %v5090 = vadd.f32 %v5058, 1e-05
        %v5091 = vadd.f32 %v5059, 1e-05
        %v5092 = vadd.f32 %v5060, 1e-05
        %v5093 = vadd.f32 %v5061, 1e-05
        %v5094 = vadd.f32 %v5062, 1e-05
        %v5095 = vadd.f32 %v5063, 1e-05
        %v5096 = vadd.f32 %v5064, 1e-05
        %v5097 = vadd.f32 %v5065, 1e-05
        %v5098 = vadd.f32 %v5066, 1e-05
        %v5099 = vadd.f32 %v5067, 1e-05
        %v5100 = vadd.f32 %v5068, 1e-05
        %v5101 = vrsqrt.pop %v5069
        %v5102 = vrsqrt.pop %v5070
        %v5103 = vrsqrt.pop %v5071
        %v5104 = vrsqrt.pop %v5072
        %v5105 = vrsqrt.pop %v5073
        %v5106 = vrsqrt.pop %v5074
        %v5107 = vrsqrt.pop %v5075
        %v5108 = vrsqrt.pop %v5076
        %v5109 = vrsqrt.pop %v5077
        %v5110 = vrsqrt.pop %v5078
        %v5111 = vrsqrt.pop %v5079
        %v5112 = vrsqrt.pop %v5080
        %v5113 = vrsqrt.pop %v5081
        %v5114 = vrsqrt.pop %v5082
        %v5115 = vrsqrt.pop %v5083
        %v5116 = vrsqrt.pop %v5084
        %v5117 = vrsqrt.pop %v5085
        %v5118 = vrsqrt.pop %v5086
        %v5119 = vrsqrt.pop %v5087
        %v5120 = vrsqrt.pop %v5088
        %v5121 = vrsqrt.pop %v5089
        %v5122 = vrsqrt.pop %v5090
        %v5123 = vrsqrt.pop %v5091
        %v5124 = vrsqrt.pop %v5092
        %v5125 = vrsqrt.pop %v5093
        %v5126 = vrsqrt.pop %v5094
        %v5127 = vrsqrt.pop %v5095
        %v5128 = vrsqrt.pop %v5096
        %v5129 = vrsqrt.pop %v5097
        %v5130 = vrsqrt.pop %v5098
        %v5131 = vrsqrt.pop %v5099
        %v5132 = vrsqrt.pop %v5100
        %v5133 = vmul.f32 %v4877, %v5101
        %v5134 = vmul.f32 %v4878, %v5102
        %v5135 = vmul.f32 %v4879, %v5103
        %v5136 = vmul.f32 %v4880, %v5104
        %v5137 = vmul.f32 %v4881, %v5105
        %v5138 = vmul.f32 %v4882, %v5106
        %v5139 = vmul.f32 %v4883, %v5107
        %v5140 = vmul.f32 %v4884, %v5108
        %v5141 = vmul.f32 %v4885, %v5109
        %v5142 = vmul.f32 %v4886, %v5110
        %v5143 = vmul.f32 %v4887, %v5111
        %v5144 = vmul.f32 %v4888, %v5112
        %v5145 = vmul.f32 %v4889, %v5113
        %v5146 = vmul.f32 %v4890, %v5114
        %v5147 = vmul.f32 %v4891, %v5115
        %v5148 = vmul.f32 %v4892, %v5116
        %v5149 = vmul.f32 %v4893, %v5117
        %v5150 = vmul.f32 %v4894, %v5118
        %v5151 = vmul.f32 %v4895, %v5119
        %v5152 = vmul.f32 %v4896, %v5120
        %v5153 = vmul.f32 %v4897, %v5121
        %v5154 = vmul.f32 %v4898, %v5122
        %v5155 = vmul.f32 %v4899, %v5123
        %v5156 = vmul.f32 %v4900, %v5124
        %v5157 = vmul.f32 %v4901, %v5125
        %v5158 = vmul.f32 %v4902, %v5126
        %v5159 = vmul.f32 %v4903, %v5127
        %v5160 = vmul.f32 %v4904, %v5128
        %v5161 = vmul.f32 %v4905, %v5129
        %v5162 = vmul.f32 %v4906, %v5130
        %v5163 = vmul.f32 %v4907, %v5131
        %v5164 = vmul.f32 %v4908, %v5132
        %v5166 = vlaneseq
        %v5167 = vshrl.u32 %v5166, 7
        %v5168 = vsub.s32 0, %v5167
        %v5169 = vrot.slane %v4164, %v5168
        %v5171 = vmul.f32 %v5133, %v5169
        %v5172 = vmul.f32 %v5134, %v5169
        %v5173 = vmul.f32 %v5135, %v5169
        %v5174 = vmul.f32 %v5136, %v5169
        %v5175 = vmul.f32 %v5137, %v5169
        %v5176 = vmul.f32 %v5138, %v5169
        %v5177 = vmul.f32 %v5139, %v5169
        %v5178 = vmul.f32 %v5140, %v5169
        %v5179 = vmul.f32 %v5141, %v5169
        %v5180 = vmul.f32 %v5142, %v5169
        %v5181 = vmul.f32 %v5143, %v5169
        %v5182 = vmul.f32 %v5144, %v5169
        %v5183 = vmul.f32 %v5145, %v5169
        %v5184 = vmul.f32 %v5146, %v5169
        %v5185 = vmul.f32 %v5147, %v5169
        %v5186 = vmul.f32 %v5148, %v5169
        %v5187 = vmul.f32 %v5149, %v5169
        %v5188 = vmul.f32 %v5150, %v5169
        %v5189 = vmul.f32 %v5151, %v5169
        %v5190 = vmul.f32 %v5152, %v5169
        %v5191 = vmul.f32 %v5153, %v5169
        %v5192 = vmul.f32 %v5154, %v5169
        %v5193 = vmul.f32 %v5155, %v5169
        %v5194 = vmul.f32 %v5156, %v5169
        %v5195 = vmul.f32 %v5157, %v5169
        %v5196 = vmul.f32 %v5158, %v5169
        %v5197 = vmul.f32 %v5159, %v5169
        %v5198 = vmul.f32 %v5160, %v5169
        %v5199 = vmul.f32 %v5161, %v5169
        %v5200 = vmul.f32 %v5162, %v5169
        %v5201 = vmul.f32 %v5163, %v5169
        %v5202 = vmul.f32 %v5164, %v5169
        %v5204 = vlaneseq
        %v5205 = vshrl.u32 %v5204, 7
        %v5206 = vsub.s32 0, %v5205
        %v5207 = vrot.slane %v4165, %v5206
        %v5209 = vadd.f32 %v5171, %v5207
        %v5210 = vadd.f32 %v5172, %v5207
        %v5211 = vadd.f32 %v5173, %v5207
        %v5212 = vadd.f32 %v5174, %v5207
        %v5213 = vadd.f32 %v5175, %v5207
        %v5214 = vadd.f32 %v5176, %v5207
        %v5215 = vadd.f32 %v5177, %v5207
        %v5216 = vadd.f32 %v5178, %v5207
        %v5217 = vadd.f32 %v5179, %v5207
        %v5218 = vadd.f32 %v5180, %v5207
        %v5219 = vadd.f32 %v5181, %v5207
        %v5220 = vadd.f32 %v5182, %v5207
        %v5221 = vadd.f32 %v5183, %v5207
        %v5222 = vadd.f32 %v5184, %v5207
        %v5223 = vadd.f32 %v5185, %v5207
        %v5224 = vadd.f32 %v5186, %v5207
        %v5225 = vadd.f32 %v5187, %v5207
        %v5226 = vadd.f32 %v5188, %v5207
        %v5227 = vadd.f32 %v5189, %v5207
        %v5228 = vadd.f32 %v5190, %v5207
        %v5229 = vadd.f32 %v5191, %v5207
        %v5230 = vadd.f32 %v5192, %v5207
        %v5231 = vadd.f32 %v5193, %v5207
        %v5232 = vadd.f32 %v5194, %v5207
        %v5233 = vadd.f32 %v5195, %v5207
        %v5234 = vadd.f32 %v5196, %v5207
        %v5235 = vadd.f32 %v5197, %v5207
        %v5236 = vadd.f32 %v5198, %v5207
        %v5237 = vadd.f32 %v5199, %v5207
        %v5238 = vadd.f32 %v5200, %v5207
        %v5239 = vadd.f32 %v5201, %v5207
        %v5240 = vadd.f32 %v5202, %v5207
        %v5241 = vld [vmem:[%s14] sm:$0xff]
        %v5242 = vld [vmem:[%s14 + $0x8] sm:$0xff]
        %v5243 = vld [vmem:[%s14 + $0x10] sm:$0xff]
        %v5244 = vld [vmem:[%s14 + $0x18] sm:$0xff]
        %v5245 = vld [vmem:[%s14 + $0x20] sm:$0xff]
        %v5246 = vld [vmem:[%s14 + $0x28] sm:$0xff]
        %v5247 = vld [vmem:[%s14 + $0x30] sm:$0xff]
        %v5248 = vld [vmem:[%s14 + $0x38] sm:$0xff]
        %v5249 = vld [vmem:[%s15] sm:$0x3]
        %v5251 = vlaneseq
        %v5252 = vshrl.u32 %v5251, 7
        %v5253 = vsub.s32 0, %v5252
        %v5254 = vrot.slane %v5249, %v5253
        %v5255 = vlaneseq
        %v5256 = vshrl.u32 %v5255, 7
        %v5257 = vsub.s32 1, %v5256
        %v5258 = vrot.slane %v5249, %v5257
        %v5262 = vsel %vm602, %v5209, 0
        %v5265 = vsel %vm602, %v5210, 0
        %v5268 = vsel %vm602, %v5211, 0
        %v5271 = vsel %vm602, %v5212, 0
        %v5274 = vsel %vm602, %v5213, 0
        %v5277 = vsel %vm602, %v5214, 0
        %v5280 = vsel %vm602, %v5215, 0
        %v5283 = vsel %vm602, %v5216, 0
        %v5286 = vsel %vm602, %v5217, 0
        %v5289 = vsel %vm602, %v5218, 0
        %v5292 = vsel %vm602, %v5219, 0
        %v5295 = vsel %vm602, %v5220, 0
        %v5298 = vsel %vm602, %v5221, 0
        %v5301 = vsel %vm602, %v5222, 0
        %v5304 = vsel %vm602, %v5223, 0
        %v5307 = vsel %vm602, %v5224, 0
        %v5310 = vsel %vm602, %v5225, 0
        %v5313 = vsel %vm602, %v5226, 0
        %v5316 = vsel %vm602, %v5227, 0
        %v5319 = vsel %vm602, %v5228, 0
        %v5322 = vsel %vm602, %v5229, 0
        %v5325 = vsel %vm602, %v5230, 0
        %v5328 = vsel %vm602, %v5231, 0
        %v5331 = vsel %vm602, %v5232, 0
        %v5334 = vsel %vm602, %v5233, 0
        %v5337 = vsel %vm602, %v5234, 0
        %v5340 = vsel %vm602, %v5235, 0
        %v5343 = vsel %vm602, %v5236, 0
        %v5346 = vsel %vm602, %v5237, 0
        %v5349 = vsel %vm602, %v5238, 0
        %v5352 = vsel %vm602, %v5239, 0
        %v5355 = vsel %vm602, %v5240, 0
        %5357 = vmatprep.subr.mxu0 0.0
        %5358 = vmatpush1.msra.mxu0 0.0
        %5359 = vmatprep.subr.mxu0 0.0
        %5360 = vmatpush1.msra.mxu0 0.0
        %5361 = vmatprep.subr.mxu0 0.0
        %5362 = vmatpush1.msra.mxu0 0.0
        %5363 = vmatprep.subr.mxu0 0.0
        %5364 = vmatpush1.msra.mxu0 0.0
        %5365 = vmatprep.subr.mxu0 0.0
        %5366 = vmatpush1.msra.mxu0 0.0
        %5367 = vmatprep.subr.mxu0 0.0
        %5368 = vmatpush1.msra.mxu0 0.0
        %5369 = vmatprep.subr.mxu0 0.0
        %5370 = vmatpush1.msra.mxu0 0.0
        %5371 = vmatprep.subr.mxu0 0.0
        %5372 = vmatpush1.msra.mxu0 0.0
        %5373 = vmatprep.subr.mxu0 0.0
        %5374 = vmatpush1.msra.mxu0 0.0
        %5375 = vmatprep.subr.mxu0 0.0
        %5376 = vmatpush1.msra.mxu0 0.0
        %5377 = vmatprep.subr.mxu0 0.0
        %5378 = vmatpush1.msra.mxu0 0.0
        %5379 = vmatprep.subr.mxu0 0.0
        %5380 = vmatpush1.msra.mxu0 0.0
        %5381 = vmatprep.subr.mxu0 %v5248
        %5382 = vmatpush1.msra.mxu0 %v5247
        %5383 = vmatprep.subr.mxu0 %v5246
        %5384 = vmatpush1.msra.mxu0 %v5245
        %5385 = vmatprep.subr.mxu0 %v5244
        %5386 = vmatpush1.msra.mxu0 %v5243
        %5387 = vmatprep.subr.mxu0 %v5242
        %5388 = vmatpush1.msra.mxu0 %v5241
        %5389 = vmatprep.subr.mxu0 0.0
        %5390 = vmatpush2.msra.mxu0 0.0
        %5391 = vmatprep.subr.mxu0 0.0
        %5392 = vmatpush2.msra.mxu0 0.0
        %5393 = vmatprep.subr.mxu0 0.0
        %5394 = vmatpush2.msra.mxu0 0.0
        %5395 = vmatprep.subr.mxu0 0.0
        %5396 = vmatpush2.msra.mxu0 0.0
        %5397 = vmatprep.subr.mxu0 0.0
        %5398 = vmatpush2.msra.mxu0 0.0
        %5399 = vmatprep.subr.mxu0 0.0
        %5400 = vmatpush2.msra.mxu0 0.0
        %5401 = vmatprep.subr.mxu0 0.0
        %5402 = vmatpush2.msra.mxu0 0.0
        %5403 = vmatprep.subr.mxu0 0.0
        %5404 = vmatpush2.msra.mxu0 0.0
        %5405 = vmatprep.subr.mxu0 0.0
        %5406 = vmatpush2.msra.mxu0 0.0
        %5407 = vmatprep.subr.mxu0 0.0
        %5408 = vmatpush2.msra.mxu0 0.0
        %5409 = vmatprep.subr.mxu0 0.0
        %5410 = vmatpush2.msra.mxu0 0.0
        %5411 = vmatprep.subr.mxu0 0.0
        %5412 = vmatpush2.msra.mxu0 0.0
        %5413 = vmatprep.subr.mxu0 0.0
        %5414 = vmatpush2.msra.mxu0 0.0
        %5415 = vmatprep.subr.mxu0 0.0
        %5416 = vmatpush2.msra.mxu0 0.0
        %5417 = vmatprep.subr.mxu0 0.0
        %5418 = vmatpush2.msra.mxu0 0.0
        %5419 = vmatprep.subr.mxu0 0.0
        %5420 = vmatpush2.msra.mxu0 0.0
        %5421 = vmatprep.mubr.f32.mxu0 0.0
        %5422 = vmatmul.mubr.f32.gmra.mxu0 %v5262
        %v5423 = vpop.f32.mrf.mxu0
        %v5424 = vadd.f32 %v5254, %v5423
        %v5425 = vpop.f32.mrf.mxu0
        %v5426 = vadd.f32 %v5258, %v5425
        %5427 = vmatprep.mubr.f32.mxu0 0.0
        %5428 = vmatmul.mubr.f32.gmra.mxu0 %v5265
        %v5429 = vpop.f32.mrf.mxu0
        %v5430 = vadd.f32 %v5254, %v5429
        %v5431 = vpop.f32.mrf.mxu0
        %v5432 = vadd.f32 %v5258, %v5431
        %5433 = vmatprep.mubr.f32.mxu0 0.0
        %5434 = vmatmul.mubr.f32.gmra.mxu0 %v5268
        %v5435 = vpop.f32.mrf.mxu0
        %v5436 = vadd.f32 %v5254, %v5435
        %v5437 = vpop.f32.mrf.mxu0
        %v5438 = vadd.f32 %v5258, %v5437
        %5439 = vmatprep.mubr.f32.mxu0 0.0
        %5440 = vmatmul.mubr.f32.gmra.mxu0 %v5271
        %v5441 = vpop.f32.mrf.mxu0
        %v5442 = vadd.f32 %v5254, %v5441
        %v5443 = vpop.f32.mrf.mxu0
        %v5444 = vadd.f32 %v5258, %v5443
        %5445 = vmatprep.mubr.f32.mxu0 0.0
        %5446 = vmatmul.mubr.f32.gmra.mxu0 %v5274
        %v5447 = vpop.f32.mrf.mxu0
        %v5448 = vadd.f32 %v5254, %v5447
        %v5449 = vpop.f32.mrf.mxu0
        %v5450 = vadd.f32 %v5258, %v5449
        %5451 = vmatprep.mubr.f32.mxu0 0.0
        %5452 = vmatmul.mubr.f32.gmra.mxu0 %v5277
        %v5453 = vpop.f32.mrf.mxu0
        %v5454 = vadd.f32 %v5254, %v5453
        %v5455 = vpop.f32.mrf.mxu0
        %v5456 = vadd.f32 %v5258, %v5455
        %5457 = vmatprep.mubr.f32.mxu0 0.0
        %5458 = vmatmul.mubr.f32.gmra.mxu0 %v5280
        %v5459 = vpop.f32.mrf.mxu0
        %v5460 = vadd.f32 %v5254, %v5459
        %v5461 = vpop.f32.mrf.mxu0
        %v5462 = vadd.f32 %v5258, %v5461
        %5463 = vmatprep.mubr.f32.mxu0 0.0
        %5464 = vmatmul.mubr.f32.gmra.mxu0 %v5283
        %v5465 = vpop.f32.mrf.mxu0
        %v5466 = vadd.f32 %v5254, %v5465
        %v5467 = vpop.f32.mrf.mxu0
        %v5468 = vadd.f32 %v5258, %v5467
        %5469 = vmatprep.mubr.f32.mxu0 0.0
        %5470 = vmatmul.mubr.f32.gmra.mxu0 %v5286
        %v5471 = vpop.f32.mrf.mxu0
        %v5472 = vadd.f32 %v5254, %v5471
        %v5473 = vpop.f32.mrf.mxu0
        %v5474 = vadd.f32 %v5258, %v5473
        %5475 = vmatprep.mubr.f32.mxu0 0.0
        %5476 = vmatmul.mubr.f32.gmra.mxu0 %v5289
        %v5477 = vpop.f32.mrf.mxu0
        %v5478 = vadd.f32 %v5254, %v5477
        %v5479 = vpop.f32.mrf.mxu0
        %v5480 = vadd.f32 %v5258, %v5479
        %5481 = vmatprep.mubr.f32.mxu0 0.0
        %5482 = vmatmul.mubr.f32.gmra.mxu0 %v5292
        %v5483 = vpop.f32.mrf.mxu0
        %v5484 = vadd.f32 %v5254, %v5483
        %v5485 = vpop.f32.mrf.mxu0
        %v5486 = vadd.f32 %v5258, %v5485
        %5487 = vmatprep.mubr.f32.mxu0 0.0
        %5488 = vmatmul.mubr.f32.gmra.mxu0 %v5295
        %v5489 = vpop.f32.mrf.mxu0
        %v5490 = vadd.f32 %v5254, %v5489
        %v5491 = vpop.f32.mrf.mxu0
        %v5492 = vadd.f32 %v5258, %v5491
        %5493 = vmatprep.mubr.f32.mxu0 0.0
        %5494 = vmatmul.mubr.f32.gmra.mxu0 %v5298
        %v5495 = vpop.f32.mrf.mxu0
        %v5496 = vadd.f32 %v5254, %v5495
        %v5497 = vpop.f32.mrf.mxu0
        %v5498 = vadd.f32 %v5258, %v5497
        %5499 = vmatprep.mubr.f32.mxu0 0.0
        %5500 = vmatmul.mubr.f32.gmra.mxu0 %v5301
        %v5501 = vpop.f32.mrf.mxu0
        %v5502 = vadd.f32 %v5254, %v5501
        %v5503 = vpop.f32.mrf.mxu0
        %v5504 = vadd.f32 %v5258, %v5503
        %5505 = vmatprep.mubr.f32.mxu0 0.0
        %5506 = vmatmul.mubr.f32.gmra.mxu0 %v5304
        %v5507 = vpop.f32.mrf.mxu0
        %v5508 = vadd.f32 %v5254, %v5507
        %v5509 = vpop.f32.mrf.mxu0
        %v5510 = vadd.f32 %v5258, %v5509
        %5511 = vmatprep.mubr.f32.mxu0 0.0
        %5512 = vmatmul.mubr.f32.gmra.mxu0 %v5307
        %v5513 = vpop.f32.mrf.mxu0
        %v5514 = vadd.f32 %v5254, %v5513
        %v5515 = vpop.f32.mrf.mxu0
        %v5516 = vadd.f32 %v5258, %v5515
        %5517 = vmatprep.mubr.f32.mxu0 0.0
        %5518 = vmatmul.mubr.f32.gmra.mxu0 %v5310
        %v5519 = vpop.f32.mrf.mxu0
        %v5520 = vadd.f32 %v5254, %v5519
        %v5521 = vpop.f32.mrf.mxu0
        %v5522 = vadd.f32 %v5258, %v5521
        %5523 = vmatprep.mubr.f32.mxu0 0.0
        %5524 = vmatmul.mubr.f32.gmra.mxu0 %v5313
        %v5525 = vpop.f32.mrf.mxu0
        %v5526 = vadd.f32 %v5254, %v5525
        %v5527 = vpop.f32.mrf.mxu0
        %v5528 = vadd.f32 %v5258, %v5527
        %5529 = vmatprep.mubr.f32.mxu0 0.0
        %5530 = vmatmul.mubr.f32.gmra.mxu0 %v5316
        %v5531 = vpop.f32.mrf.mxu0
        %v5532 = vadd.f32 %v5254, %v5531
        %v5533 = vpop.f32.mrf.mxu0
        %v5534 = vadd.f32 %v5258, %v5533
        %5535 = vmatprep.mubr.f32.mxu0 0.0
        %5536 = vmatmul.mubr.f32.gmra.mxu0 %v5319
        %v5537 = vpop.f32.mrf.mxu0
        %v5538 = vadd.f32 %v5254, %v5537
        %v5539 = vpop.f32.mrf.mxu0
        %v5540 = vadd.f32 %v5258, %v5539
        %5541 = vmatprep.mubr.f32.mxu0 0.0
        %5542 = vmatmul.mubr.f32.gmra.mxu0 %v5322
        %v5543 = vpop.f32.mrf.mxu0
        %v5544 = vadd.f32 %v5254, %v5543
        %v5545 = vpop.f32.mrf.mxu0
        %v5546 = vadd.f32 %v5258, %v5545
        %5547 = vmatprep.mubr.f32.mxu0 0.0
        %5548 = vmatmul.mubr.f32.gmra.mxu0 %v5325
        %v5549 = vpop.f32.mrf.mxu0
        %v5550 = vadd.f32 %v5254, %v5549
        %v5551 = vpop.f32.mrf.mxu0
        %v5552 = vadd.f32 %v5258, %v5551
        %5553 = vmatprep.mubr.f32.mxu0 0.0
        %5554 = vmatmul.mubr.f32.gmra.mxu0 %v5328
        %v5555 = vpop.f32.mrf.mxu0
        %v5556 = vadd.f32 %v5254, %v5555
        %v5557 = vpop.f32.mrf.mxu0
        %v5558 = vadd.f32 %v5258, %v5557
        %5559 = vmatprep.mubr.f32.mxu0 0.0
        %5560 = vmatmul.mubr.f32.gmra.mxu0 %v5331
        %v5561 = vpop.f32.mrf.mxu0
        %v5562 = vadd.f32 %v5254, %v5561
        %v5563 = vpop.f32.mrf.mxu0
        %v5564 = vadd.f32 %v5258, %v5563
        %5565 = vmatprep.mubr.f32.mxu0 0.0
        %5566 = vmatmul.mubr.f32.gmra.mxu0 %v5334
        %v5567 = vpop.f32.mrf.mxu0
        %v5568 = vadd.f32 %v5254, %v5567
        %v5569 = vpop.f32.mrf.mxu0
        %v5570 = vadd.f32 %v5258, %v5569
        %5571 = vmatprep.mubr.f32.mxu0 0.0
        %5572 = vmatmul.mubr.f32.gmra.mxu0 %v5337
        %v5573 = vpop.f32.mrf.mxu0
        %v5574 = vadd.f32 %v5254, %v5573
        %v5575 = vpop.f32.mrf.mxu0
        %v5576 = vadd.f32 %v5258, %v5575
        %5577 = vmatprep.mubr.f32.mxu0 0.0
        %5578 = vmatmul.mubr.f32.gmra.mxu0 %v5340
        %v5579 = vpop.f32.mrf.mxu0
        %v5580 = vadd.f32 %v5254, %v5579
        %v5581 = vpop.f32.mrf.mxu0
        %v5582 = vadd.f32 %v5258, %v5581
        %5583 = vmatprep.mubr.f32.mxu0 0.0
        %5584 = vmatmul.mubr.f32.gmra.mxu0 %v5343
        %v5585 = vpop.f32.mrf.mxu0
        %v5586 = vadd.f32 %v5254, %v5585
        %v5587 = vpop.f32.mrf.mxu0
        %v5588 = vadd.f32 %v5258, %v5587
        %5589 = vmatprep.mubr.f32.mxu0 0.0
        %5590 = vmatmul.mubr.f32.gmra.mxu0 %v5346
        %v5591 = vpop.f32.mrf.mxu0
        %v5592 = vadd.f32 %v5254, %v5591
        %v5593 = vpop.f32.mrf.mxu0
        %v5594 = vadd.f32 %v5258, %v5593
        %5595 = vmatprep.mubr.f32.mxu0 0.0
        %5596 = vmatmul.mubr.f32.gmra.mxu0 %v5349
        %v5597 = vpop.f32.mrf.mxu0
        %v5598 = vadd.f32 %v5254, %v5597
        %v5599 = vpop.f32.mrf.mxu0
        %v5600 = vadd.f32 %v5258, %v5599
        %5601 = vmatprep.mubr.f32.mxu0 0.0
        %5602 = vmatmul.mubr.f32.gmra.mxu0 %v5352
        %v5603 = vpop.f32.mrf.mxu0
        %v5604 = vadd.f32 %v5254, %v5603
        %v5605 = vpop.f32.mrf.mxu0
        %v5606 = vadd.f32 %v5258, %v5605
        %5607 = vmatprep.mubr.f32.mxu0 0.0
        %5608 = vmatmul.mubr.f32.gmra.mxu0 %v5355
        %v5609 = vpop.f32.mrf.mxu0
        %v5610 = vadd.f32 %v5254, %v5609
        %v5611 = vpop.f32.mrf.mxu0
        %v5612 = vadd.f32 %v5258, %v5611
        %5613 = vdwg.mxu0
        %5614 = vst [vmem:[%s515] sm:$0xff] %v5424
        %5615 = vst [vmem:[%s515 + $0x8] sm:$0xff] %v5426
        %5616 = vst [vmem:[%s515 + $0x10] sm:$0xff] %v5430
        %5617 = vst [vmem:[%s515 + $0x18] sm:$0xff] %v5432
        %5618 = vst [vmem:[%s515 + $0x20] sm:$0xff] %v5436
        %5619 = vst [vmem:[%s515 + $0x28] sm:$0xff] %v5438
        %5620 = vst [vmem:[%s515 + $0x30] sm:$0xff] %v5442
        %5621 = vst [vmem:[%s515 + $0x38] sm:$0xff] %v5444
        %5622 = vst [vmem:[%s515 + $0x40] sm:$0xff] %v5448
        %5623 = vst [vmem:[%s515 + $0x48] sm:$0xff] %v5450
        %5624 = vst [vmem:[%s515 + $0x50] sm:$0xff] %v5454
        %5625 = vst [vmem:[%s515 + $0x58] sm:$0xff] %v5456
        %5626 = vst [vmem:[%s515 + $0x60] sm:$0xff] %v5460
        %5627 = vst [vmem:[%s515 + $0x68] sm:$0xff] %v5462
        %5628 = vst [vmem:[%s515 + $0x70] sm:$0xff] %v5466
        %5629 = vst [vmem:[%s515 + $0x78] sm:$0xff] %v5468
        %5630 = vst [vmem:[%s515 + $0x80] sm:$0xff] %v5472
        %5631 = vst [vmem:[%s515 + $0x88] sm:$0xff] %v5474
        %5632 = vst [vmem:[%s515 + $0x90] sm:$0xff] %v5478
        %5633 = vst [vmem:[%s515 + $0x98] sm:$0xff] %v5480
        %5634 = vst [vmem:[%s515 + $0xa0] sm:$0xff] %v5484
        %5635 = vst [vmem:[%s515 + $0xa8] sm:$0xff] %v5486
        %5636 = vst [vmem:[%s515 + $0xb0] sm:$0xff] %v5490
        %5637 = vst [vmem:[%s515 + $0xb8] sm:$0xff] %v5492
        %5638 = vst [vmem:[%s515 + $0xc0] sm:$0xff] %v5496
        %5639 = vst [vmem:[%s515 + $0xc8] sm:$0xff] %v5498
        %5640 = vst [vmem:[%s515 + $0xd0] sm:$0xff] %v5502
        %5641 = vst [vmem:[%s515 + $0xd8] sm:$0xff] %v5504
        %5642 = vst [vmem:[%s515 + $0xe0] sm:$0xff] %v5508
        %5643 = vst [vmem:[%s515 + $0xe8] sm:$0xff] %v5510
        %5644 = vst [vmem:[%s515 + $0xf0] sm:$0xff] %v5514
        %5645 = vst [vmem:[%s515 + $0xf8] sm:$0xff] %v5516
        %5646 = vst [vmem:[%s515 + $0x100] sm:$0xff] %v5520
        %5647 = vst [vmem:[%s515 + $0x108] sm:$0xff] %v5522
        %5648 = vst [vmem:[%s515 + $0x110] sm:$0xff] %v5526
        %5649 = vst [vmem:[%s515 + $0x118] sm:$0xff] %v5528
        %5650 = vst [vmem:[%s515 + $0x120] sm:$0xff] %v5532
        %5651 = vst [vmem:[%s515 + $0x128] sm:$0xff] %v5534
        %5652 = vst [vmem:[%s515 + $0x130] sm:$0xff] %v5538
        %5653 = vst [vmem:[%s515 + $0x138] sm:$0xff] %v5540
        %5654 = vst [vmem:[%s515 + $0x140] sm:$0xff] %v5544
        %5655 = vst [vmem:[%s515 + $0x148] sm:$0xff] %v5546
        %5656 = vst [vmem:[%s515 + $0x150] sm:$0xff] %v5550
        %5657 = vst [vmem:[%s515 + $0x158] sm:$0xff] %v5552
        %5658 = vst [vmem:[%s515 + $0x160] sm:$0xff] %v5556
        %5659 = vst [vmem:[%s515 + $0x168] sm:$0xff] %v5558
        %5660 = vst [vmem:[%s515 + $0x170] sm:$0xff] %v5562
        %5661 = vst [vmem:[%s515 + $0x178] sm:$0xff] %v5564
        %5662 = vst [vmem:[%s515 + $0x180] sm:$0xff] %v5568
        %5663 = vst [vmem:[%s515 + $0x188] sm:$0xff] %v5570
        %5664 = vst [vmem:[%s515 + $0x190] sm:$0xff] %v5574
        %5665 = vst [vmem:[%s515 + $0x198] sm:$0xff] %v5576
        %5666 = vst [vmem:[%s515 + $0x1a0] sm:$0xff] %v5580
        %5667 = vst [vmem:[%s515 + $0x1a8] sm:$0xff] %v5582
        %5668 = vst [vmem:[%s515 + $0x1b0] sm:$0xff] %v5586
        %5669 = vst [vmem:[%s515 + $0x1b8] sm:$0xff] %v5588
        %5670 = vst [vmem:[%s515 + $0x1c0] sm:$0xff] %v5592
        %5671 = vst [vmem:[%s515 + $0x1c8] sm:$0xff] %v5594
        %5672 = vst [vmem:[%s515 + $0x1d0] sm:$0xff] %v5598
        %5673 = vst [vmem:[%s515 + $0x1d8] sm:$0xff] %v5600
        %5674 = vst [vmem:[%s515 + $0x1e0] sm:$0xff] %v5604
        %5675 = vst [vmem:[%s515 + $0x1e8] sm:$0xff] %v5606
        %5676 = vst [vmem:[%s515 + $0x1f0] sm:$0xff] %v5610
        %5677 = vst [vmem:[%s515 + $0x1f8] sm:$0xff] %v5612
        %s5678 = sand.u32 %s379, 1
        %s5679 = scalar_lea.sflag [#allocation3], %s5678
        %s5680 = sand.u32 %s379, 1
        %s5681 = smul.addr %s5680, 512
        %s5682 = scalar_lea.vmem [#allocation2], %s5681
        // Predicated region
        $region85: #{tpu_custom_call.1} parent=83 // pred_check
          %p5683 = pneg %p389
        $region86: #{tpu_custom_call.1} parent=83 // pred_check_branch
          %5685 = sbr.rel (%p5683) target = $region88
        $region87: #{tpu_custom_call.1} parent=83 // pred_region
          %s5686 = smul.u32 32, %s30
          %s5688 = ssub.s32 8192, 8192
          %5689 = vsyncadd %s5679, %s5688
          %s5690 = smul.addr %s5686, 2
          %s5691 = smul.addr %s5690, 128
          %s5692 = scalar_lea.hbm %s16, %s5691
          %s5693 = sshll.u32 %s5682, 4
          %s5694 = int_to_ptr.vmem [resolvable:$true] %s5693
          %5699 = dma.vmem_to_hbm [thread:$0]  %s5694, 8192, %s5692, %s5679, 256, 256, 16
        $region88: #{tpu_custom_call.1} parent=83 // pred_fallthru
          _
      $region84: #{tpu_custom_call.1} parent=5 // pred_fallthru
        _
      %p5700 = scmp.le.s32.totalorder 2, %s25
      // Predicated region
      $region89: #{tpu_custom_call.1} parent=5 // pred_check
        %p5701 = pneg %p5700
      $region90: #{tpu_custom_call.1} parent=5 // pred_check_branch
        %5703 = sbr.rel (%p5701) target = $region92
      $region91: #{tpu_custom_call.1} parent=5 // pred_region
        %s5704 = ssub.s32 %s25, 2
        // Predicated region
        $region93: #{tpu_custom_call.1} parent=91 // pred_check
          %p5705 = pneg %p395
        $region94: #{tpu_custom_call.1} parent=91 // pred_check_branch
          %5707 = sbr.rel (%p5705) target = $region96
        $region95: #{tpu_custom_call.1} parent=91 // pred_region
          %s5708 = sand.u32 %s380, 1
          %s5709 = scalar_lea.sflag [#allocation3], %s5708
          %s5710 = sand.u32 %s380, 1
          %s5711 = smul.addr %s5710, 512
          %s5712 = scalar_lea.vmem [#allocation2], %s5711
          %5713 = dma.done %s5709, 8192
        $region96: #{tpu_custom_call.1} parent=91 // pred_fallthru
          _
      $region92: #{tpu_custom_call.1} parent=5 // pred_fallthru
        _
    $region6: #{tpu_custom_call.1} parent=1 // loop_footer
      %s29 = sadd.s32 1, %s25
    $region7: #{tpu_custom_call.1} parent=1 // loop_footer_branch
      %24 = sbr.rel target = $region3
    $region8: #{tpu_custom_call.1} parent=1 // loop_exit
      _
    %5714 = vsyncpa [#allocation3], 1
    %s5715 = scalar_lea.sflag [#allocation3], 1
    %5716 = vsyncpa %s5715, 1

</llo_original>
